<compile_context>
chip_gen: v5e
topology: v5e:2x2
jax: 0.10.0
libtpu: 0.0.40
codegen_flags: <defaults>
</compile_context>

<pallas_src>
import functools
import numpy as np
import jax
import jax.numpy as jnp
from jax import lax
from jax.experimental import pallas as pl
from jax.experimental.pallas import tpu as pltpu

A_CUBIC = -0.75   # PyTorch bicubic kernel coefficient
EPS = 1e-5        # InstanceNorm2d default eps
LEAK = 0.01       # leakiness


# ---------------------------------------------------------------------------
# Host-side glue: dense 1-D bicubic interpolation matrices with exact PyTorch
# semantics (the module constructs Upsample(..., align_corners=True), a=-0.75,
# edge-clamped taps). Bicubic is separable:  up = Ah @ x @ Aw^T  per plane.
# ---------------------------------------------------------------------------
def _cubic_conv1(t, a=A_CUBIC):
    return ((a + 2.0) * t - (a + 3.0)) * t * t + 1.0


def _cubic_conv2(t, a=A_CUBIC):
    return ((a * t - 5.0 * a) * t + 8.0 * a) * t - 4.0 * a


def bicubic_matrix(in_size, out_size):
    m = np.zeros((out_size, in_size), dtype=np.float64)
    for i in range(out_size):
        real = i * (in_size - 1) / (out_size - 1) if out_size > 1 else 0.0
        idx = int(np.floor(real))
        t = real - idx
        coeffs = (_cubic_conv2(t + 1.0), _cubic_conv1(t),
                  _cubic_conv1(1.0 - t), _cubic_conv2(2.0 - t))
        for k, c in enumerate(coeffs):
            j = min(max(idx - 1 + k, 0), in_size - 1)
            m[i, j] += c
    return m.astype(np.float32)


def _lane_shift(a, s):
    """b[:, p] = a[:, p + s] for 0 <= p + s < P, else 0 (static shift s)."""
    if s == 0:
        return a
    z = jnp.zeros((a.shape[0], abs(s)), a.dtype)
    if s > 0:
        return jnp.concatenate([a[:, s:], z], axis=1)
    return jnp.concatenate([z, a[:, :s]], axis=1)


# ---------------------------------------------------------------------------
# Pallas kernel: one batch element per grid step. Everything lane-dense (P lanes).
# ---------------------------------------------------------------------------
def upsampling_module_kernel(x_ref, m_ref, w_ref, hm_ref, g_ref, bt_ref, o_ref, *,
                             c_out, h_out, w_out, leak, eps):
    P = h_out * w_out

    # --- bicubic x2 upsample: single MXU matmul, lane-dense (C_in, P) output ---
    up = jnp.dot(x_ref[0], m_ref[...], preferred_element_type=jnp.float32)

    # --- 3x3 conv (stride 1, pad 1) as 9 per-tap MXU matmuls over C_in ---
    # plane_k[ci, y*W + x] = up[ci, y+dy-1, x+dx-1] (zero-padded), built via a static
    # lane shift of the flattened plane + a horizontal edge-validity mask.
    # Conv bias is omitted: InstanceNorm's mean subtraction cancels it exactly.
    acc = jnp.zeros((c_out, P), jnp.float32)
    for k in range(9):
        dy, dx = k // 3, k % 3
        s = (dy - 1) * w_out + (dx - 1)
        plane = _lane_shift(up, s)
        if dx != 1:                                   # dx==1 needs no edge mask
            plane = plane * hm_ref[dx:dx + 1, :]      # (1, P) mask broadcast over C_in
        acc = acc + jnp.dot(w_ref[k], plane, preferred_element_type=jnp.float32)

    # --- InstanceNorm2d (instance statistics, biased variance) + affine + LeakyReLU ---
    # TODO(synk): track_running_stats=True running_mean/var buffer updates (a training-
    # time side effect) are not materialized; the forward output uses instance stats as
    # PyTorch does, so the returned tensor is unaffected.
    mean = jnp.mean(acc, axis=1, keepdims=True)               # (C_out, 1)
    cen = acc - mean
    var = jnp.mean(cen * cen, axis=1, keepdims=True)          # biased variance
    y = cen * (lax.rsqrt(var + eps) * g_ref[...]) + bt_ref[...]
    o_ref[0] = jnp.where(y >= 0.0, y, leak * y).astype(o_ref.dtype)


def upsampling_module(x, conv_w, conv_b, gamma, beta):
    # conv bias is mathematically a no-op under the following InstanceNorm.
    del conv_b
    B, C_in, H, W = x.shape
    C_out = conv_w.shape[0]
    H_out, W_out = 2 * H, 2 * W
    P = H_out * W_out

    ah = bicubic_matrix(H, H_out)                    # (H_out, H)
    aw = bicubic_matrix(W, W_out)                    # (W_out, W)
    # M[h*W + w, y*W_out + x] = Ah[y, h] * Aw[x, w]  -> upsample as one flat matmul.
    m_up = jnp.asarray(np.kron(ah.T, aw.T))          # (H*W, P)

    # Horizontal edge-validity masks per dx (row dx=1 unused): 1 where x+dx-1 in range.
    xs = np.arange(P) % W_out
    hmask = np.stack([(xs >= 1), np.ones(P, bool), (xs <= W_out - 2)]).astype(np.float32)

    x_flat = x.reshape(B, C_in, H * W).astype(jnp.float32)
    # Tap-major weights: w_taps[k, co, ci] = conv_w[co, ci, k//3, k%3]
    w_taps = jnp.transpose(conv_w.reshape(C_out, C_in, 9), (2, 0, 1)).astype(jnp.float32)
    g2 = gamma.reshape(C_out, 1).astype(jnp.float32)
    b2 = beta.reshape(C_out, 1).astype(jnp.float32)

    kernel = functools.partial(upsampling_module_kernel, c_out=C_out,
                               h_out=H_out, w_out=W_out, leak=LEAK, eps=EPS)

    out_flat = pl.pallas_call(
        kernel,
        out_shape=jax.ShapeDtypeStruct((B, C_out, P), jnp.float32),
        grid=(B,),
        in_specs=[
            pl.BlockSpec((1, C_in, H * W), lambda b: (b, 0, 0)),   # x (one batch elem)
            pl.BlockSpec((H * W, P), lambda b: (0, 0)),            # upsample matrix
            pl.BlockSpec((9, C_out, C_in), lambda b: (0, 0, 0)),   # conv tap weights
            pl.BlockSpec((3, P), lambda b: (0, 0)),                # horizontal edge masks
            pl.BlockSpec((C_out, 1), lambda b: (0, 0)),            # instnorm gamma
            pl.BlockSpec((C_out, 1), lambda b: (0, 0)),            # instnorm beta
        ],
        out_specs=pl.BlockSpec((1, C_out, P), lambda b: (b, 0, 0)),
        compiler_params=pltpu.CompilerParams(
            dimension_semantics=("parallel",),        # batch elems independent (v7x: 2 TCs)
            vmem_limit_bytes=32 * 1024 * 1024),
    )(x_flat, m_up, w_taps, jnp.asarray(hmask), g2, b2)

    return out_flat.reshape(B, C_out, H_out, W_out)


# ---------------------------------------------------------------------------
# Pure-JAX reference (same math, XLA ops, HIGHEST precision) for a correctness check.
# ---------------------------------------------------------------------------
def reference(x, conv_w, conv_b, gamma, beta):
    B, C_in, H, W = x.shape
    H_out, W_out = 2 * H, 2 * W
    ah = jnp.asarray(bicubic_matrix(H, H_out))
    aw = jnp.asarray(bicubic_matrix(W, W_out))
    up = jnp.einsum('oh,nchw,pw->ncop', ah, x, aw, precision=lax.Precision.HIGHEST)
    y = lax.conv_general_dilated(up, conv_w, (1, 1), 'SAME',
                                 dimension_numbers=('NCHW', 'OIHW', 'NCHW'),
                                 precision=lax.Precision.HIGHEST)
    y = y + conv_b[None, :, None, None]
    mean = y.mean(axis=(2, 3), keepdims=True)
    var = ((y - mean) ** 2).mean(axis=(2, 3), keepdims=True)
    y = (y - mean) * lax.rsqrt(var + EPS) * gamma[None, :, None, None] \
        + beta[None, :, None, None]
    return jnp.where(y >= 0, y, LEAK * y)


if __name__ == "__main__":
    key = jax.random.PRNGKey(0)
    kx, kw, kb, kg, kbt = jax.random.split(key, 5)

    B, C_in, C_out, H, W = 2, 4, 8, 16, 16
    x = jax.random.normal(kx, (B, C_in, H, W), jnp.float32)
    # deterministic synthetic parameters (shapes match nn.Conv2d / InstanceNorm2d)
    conv_w = jax.random.normal(kw, (C_out, C_in, 3, 3), jnp.float32) / np.sqrt(C_in * 9)
    conv_b = jax.random.normal(kb, (C_out,), jnp.float32) * 0.1
    gamma = 1.0 + 0.1 * jax.random.normal(kg, (C_out,), jnp.float32)
    beta = 0.1 * jax.random.normal(kbt, (C_out,), jnp.float32)

    out = jax.block_until_ready(upsampling_module(x, conv_w, conv_b, gamma, beta))
    ref = jax.block_until_ready(reference(x, conv_w, conv_b, gamma, beta))

    assert out.shape == (B, C_out, 2 * H, 2 * W), out.shape
    np.testing.assert_allclose(np.asarray(out), np.asarray(ref), rtol=2e-2, atol=2e-2)
    print("KERNEL_OK")
</pallas_src>

<mosaic_0001>
module attributes {stable_mosaic.version = 11 : i64} {
  func.func @upsampling_module_kernel(%arg0: i32, %arg1: memref<1x4x256xf32, #tpu.memory_space<vmem>>, %arg2: memref<256x1024xf32, #tpu.memory_space<vmem>>, %arg3: memref<9x8x4xf32, #tpu.memory_space<vmem>>, %arg4: memref<3x1024xf32, #tpu.memory_space<vmem>>, %arg5: memref<8x1xf32, #tpu.memory_space<vmem>>, %arg6: memref<8x1xf32, #tpu.memory_space<vmem>>, %arg7: memref<1x8x1024xf32, #tpu.memory_space<vmem>>) attributes {dimension_semantics = [#tpu.dimension_semantics<parallel>], iteration_bounds = array<i64: 2>, scalar_prefetch = 0 : i64, scratch_operands = 0 : i64, tpu.core_type = #tpu.core_type<tc>, window_params = [{transform_indices = @transform_0, window_bounds = array<i64: 1, 4, 256>}, {pipeline_mode = #tpu.pipeline_mode<synchronous>, transform_indices = @transform_1, window_bounds = array<i64: 256, 1024>}, {pipeline_mode = #tpu.pipeline_mode<synchronous>, transform_indices = @transform_2, window_bounds = array<i64: 9, 8, 4>}, {pipeline_mode = #tpu.pipeline_mode<synchronous>, transform_indices = @transform_3, window_bounds = array<i64: 3, 1024>}, {pipeline_mode = #tpu.pipeline_mode<synchronous>, transform_indices = @transform_4, window_bounds = array<i64: 8, 1>}, {pipeline_mode = #tpu.pipeline_mode<synchronous>, transform_indices = @transform_5, window_bounds = array<i64: 8, 1>}, {transform_indices = @transform_6, window_bounds = array<i64: 1, 8, 1024>}]} {
    %c0 = arith.constant 0 : index
    %c0_0 = arith.constant 0 : index
    %c0_1 = arith.constant 0 : index
    %0 = vector.load %arg1[%c0, %c0_0, %c0_1] : memref<1x4x256xf32, #tpu.memory_space<vmem>>, vector<1x4x256xf32>
    %1 = vector.shape_cast %0 : vector<1x4x256xf32> to vector<4x256xf32>
    %c0_2 = arith.constant 0 : index
    %c0_3 = arith.constant 0 : index
    %2 = vector.load %arg2[%c0_2, %c0_3] : memref<256x1024xf32, #tpu.memory_space<vmem>>, vector<256x1024xf32>
    %cst = arith.constant dense<0.000000e+00> : vector<4x1024xf32>
    %3 = tpu.matmul %1, %2, %cst {dimension_numbers = #tpu.dot_dimension_numbers<[1], [0], [0], [1], [0, 0, 1, 1], [], []>} : vector<4x256xf32>, vector<256x1024xf32>, vector<4x1024xf32> -> vector<4x1024xf32>
    %cst_4 = arith.constant 0.000000e+00 : f32
    %4 = vector.broadcast %cst_4 : f32 to vector<8x1024xf32>
    %cst_5 = arith.constant 0.000000e+00 : f32
    %5 = vector.broadcast %cst_5 : f32 to vector<4x33xf32>
    %6 = vector.extract_strided_slice %3 {offsets = [0, 0], sizes = [4, 991], strides = [1, 1]} : vector<4x1024xf32> to vector<4x991xf32>
    %7 = tpu.concatenate %5, %6 in 1 : vector<4x33xf32>, vector<4x991xf32> -> vector<4x1024xf32>
    %c0_6 = arith.constant 0 : index
    %c0_7 = arith.constant 0 : index
    %8 = vector.load %arg4[%c0_6, %c0_7] : memref<3x1024xf32, #tpu.memory_space<vmem>>, vector<1x1024xf32>
    %9 = vector.broadcast %8 : vector<1x1024xf32> to vector<4x1024xf32>
    %10 = arith.mulf %7, %9 : vector<4x1024xf32>
    %c0_8 = arith.constant 0 : index
    %c0_9 = arith.constant 0 : index
    %c0_10 = arith.constant 0 : index
    %11 = vector.load %arg3[%c0_8, %c0_9, %c0_10] : memref<9x8x4xf32, #tpu.memory_space<vmem>>, vector<1x8x4xf32>
    %12 = vector.shape_cast %11 : vector<1x8x4xf32> to vector<8x4xf32>
    %cst_11 = arith.constant dense<0.000000e+00> : vector<8x1024xf32>
    %13 = tpu.matmul %12, %10, %cst_11 {dimension_numbers = #tpu.dot_dimension_numbers<[1], [0], [0], [1], [0, 0, 1, 1], [], []>} : vector<8x4xf32>, vector<4x1024xf32>, vector<8x1024xf32> -> vector<8x1024xf32>
    %14 = arith.addf %4, %13 : vector<8x1024xf32>
    %cst_12 = arith.constant 0.000000e+00 : f32
    %15 = vector.broadcast %cst_12 : f32 to vector<4x32xf32>
    %16 = vector.extract_strided_slice %3 {offsets = [0, 0], sizes = [4, 992], strides = [1, 1]} : vector<4x1024xf32> to vector<4x992xf32>
    %17 = tpu.concatenate %15, %16 in 1 : vector<4x32xf32>, vector<4x992xf32> -> vector<4x1024xf32>
    %c1 = arith.constant 1 : index
    %c0_13 = arith.constant 0 : index
    %c0_14 = arith.constant 0 : index
    %18 = vector.load %arg3[%c1, %c0_13, %c0_14] : memref<9x8x4xf32, #tpu.memory_space<vmem>>, vector<1x8x4xf32>
    %19 = vector.shape_cast %18 : vector<1x8x4xf32> to vector<8x4xf32>
    %cst_15 = arith.constant dense<0.000000e+00> : vector<8x1024xf32>
    %20 = tpu.matmul %19, %17, %cst_15 {dimension_numbers = #tpu.dot_dimension_numbers<[1], [0], [0], [1], [0, 0, 1, 1], [], []>} : vector<8x4xf32>, vector<4x1024xf32>, vector<8x1024xf32> -> vector<8x1024xf32>
    %21 = arith.addf %14, %20 : vector<8x1024xf32>
    %cst_16 = arith.constant 0.000000e+00 : f32
    %22 = vector.broadcast %cst_16 : f32 to vector<4x31xf32>
    %23 = vector.extract_strided_slice %3 {offsets = [0, 0], sizes = [4, 993], strides = [1, 1]} : vector<4x1024xf32> to vector<4x993xf32>
    %24 = tpu.concatenate %22, %23 in 1 : vector<4x31xf32>, vector<4x993xf32> -> vector<4x1024xf32>
    %c2 = arith.constant 2 : index
    %c0_17 = arith.constant 0 : index
    %25 = vector.load %arg4[%c2, %c0_17] : memref<3x1024xf32, #tpu.memory_space<vmem>>, vector<1x1024xf32>
    %26 = vector.broadcast %25 : vector<1x1024xf32> to vector<4x1024xf32>
    %27 = arith.mulf %24, %26 : vector<4x1024xf32>
    %c2_18 = arith.constant 2 : index
    %c0_19 = arith.constant 0 : index
    %c0_20 = arith.constant 0 : index
    %28 = vector.load %arg3[%c2_18, %c0_19, %c0_20] : memref<9x8x4xf32, #tpu.memory_space<vmem>>, vector<1x8x4xf32>
    %29 = vector.shape_cast %28 : vector<1x8x4xf32> to vector<8x4xf32>
    %cst_21 = arith.constant dense<0.000000e+00> : vector<8x1024xf32>
    %30 = tpu.matmul %29, %27, %cst_21 {dimension_numbers = #tpu.dot_dimension_numbers<[1], [0], [0], [1], [0, 0, 1, 1], [], []>} : vector<8x4xf32>, vector<4x1024xf32>, vector<8x1024xf32> -> vector<8x1024xf32>
    %31 = arith.addf %21, %30 : vector<8x1024xf32>
    %cst_22 = arith.constant 0.000000e+00 : f32
    %32 = vector.broadcast %cst_22 : f32 to vector<4x1xf32>
    %33 = vector.extract_strided_slice %3 {offsets = [0, 0], sizes = [4, 1023], strides = [1, 1]} : vector<4x1024xf32> to vector<4x1023xf32>
    %34 = tpu.concatenate %32, %33 in 1 : vector<4x1xf32>, vector<4x1023xf32> -> vector<4x1024xf32>
    %c0_23 = arith.constant 0 : index
    %c0_24 = arith.constant 0 : index
    %35 = vector.load %arg4[%c0_23, %c0_24] : memref<3x1024xf32, #tpu.memory_space<vmem>>, vector<1x1024xf32>
    %36 = vector.broadcast %35 : vector<1x1024xf32> to vector<4x1024xf32>
    %37 = arith.mulf %34, %36 : vector<4x1024xf32>
    %c3 = arith.constant 3 : index
    %c0_25 = arith.constant 0 : index
    %c0_26 = arith.constant 0 : index
    %38 = vector.load %arg3[%c3, %c0_25, %c0_26] : memref<9x8x4xf32, #tpu.memory_space<vmem>>, vector<1x8x4xf32>
    %39 = vector.shape_cast %38 : vector<1x8x4xf32> to vector<8x4xf32>
    %cst_27 = arith.constant dense<0.000000e+00> : vector<8x1024xf32>
    %40 = tpu.matmul %39, %37, %cst_27 {dimension_numbers = #tpu.dot_dimension_numbers<[1], [0], [0], [1], [0, 0, 1, 1], [], []>} : vector<8x4xf32>, vector<4x1024xf32>, vector<8x1024xf32> -> vector<8x1024xf32>
    %41 = arith.addf %31, %40 : vector<8x1024xf32>
    %c4 = arith.constant 4 : index
    %c0_28 = arith.constant 0 : index
    %c0_29 = arith.constant 0 : index
    %42 = vector.load %arg3[%c4, %c0_28, %c0_29] : memref<9x8x4xf32, #tpu.memory_space<vmem>>, vector<1x8x4xf32>
    %43 = vector.shape_cast %42 : vector<1x8x4xf32> to vector<8x4xf32>
    %cst_30 = arith.constant dense<0.000000e+00> : vector<8x1024xf32>
    %44 = tpu.matmul %43, %3, %cst_30 {dimension_numbers = #tpu.dot_dimension_numbers<[1], [0], [0], [1], [0, 0, 1, 1], [], []>} : vector<8x4xf32>, vector<4x1024xf32>, vector<8x1024xf32> -> vector<8x1024xf32>
    %45 = arith.addf %41, %44 : vector<8x1024xf32>
    %cst_31 = arith.constant 0.000000e+00 : f32
    %46 = vector.broadcast %cst_31 : f32 to vector<4x1xf32>
    %47 = vector.extract_strided_slice %3 {offsets = [0, 1], sizes = [4, 1023], strides = [1, 1]} : vector<4x1024xf32> to vector<4x1023xf32>
    %48 = tpu.concatenate %47, %46 in 1 : vector<4x1023xf32>, vector<4x1xf32> -> vector<4x1024xf32>
    %c2_32 = arith.constant 2 : index
    %c0_33 = arith.constant 0 : index
    %49 = vector.load %arg4[%c2_32, %c0_33] : memref<3x1024xf32, #tpu.memory_space<vmem>>, vector<1x1024xf32>
    %50 = vector.broadcast %49 : vector<1x1024xf32> to vector<4x1024xf32>
    %51 = arith.mulf %48, %50 : vector<4x1024xf32>
    %c5 = arith.constant 5 : index
    %c0_34 = arith.constant 0 : index
    %c0_35 = arith.constant 0 : index
    %52 = vector.load %arg3[%c5, %c0_34, %c0_35] : memref<9x8x4xf32, #tpu.memory_space<vmem>>, vector<1x8x4xf32>
    %53 = vector.shape_cast %52 : vector<1x8x4xf32> to vector<8x4xf32>
    %cst_36 = arith.constant dense<0.000000e+00> : vector<8x1024xf32>
    %54 = tpu.matmul %53, %51, %cst_36 {dimension_numbers = #tpu.dot_dimension_numbers<[1], [0], [0], [1], [0, 0, 1, 1], [], []>} : vector<8x4xf32>, vector<4x1024xf32>, vector<8x1024xf32> -> vector<8x1024xf32>
    %55 = arith.addf %45, %54 : vector<8x1024xf32>
    %cst_37 = arith.constant 0.000000e+00 : f32
    %56 = vector.broadcast %cst_37 : f32 to vector<4x31xf32>
    %57 = vector.extract_strided_slice %3 {offsets = [0, 31], sizes = [4, 993], strides = [1, 1]} : vector<4x1024xf32> to vector<4x993xf32>
    %58 = tpu.concatenate %57, %56 in 1 : vector<4x993xf32>, vector<4x31xf32> -> vector<4x1024xf32>
    %c0_38 = arith.constant 0 : index
    %c0_39 = arith.constant 0 : index
    %59 = vector.load %arg4[%c0_38, %c0_39] : memref<3x1024xf32, #tpu.memory_space<vmem>>, vector<1x1024xf32>
    %60 = vector.broadcast %59 : vector<1x1024xf32> to vector<4x1024xf32>
    %61 = arith.mulf %58, %60 : vector<4x1024xf32>
    %c6 = arith.constant 6 : index
    %c0_40 = arith.constant 0 : index
    %c0_41 = arith.constant 0 : index
    %62 = vector.load %arg3[%c6, %c0_40, %c0_41] : memref<9x8x4xf32, #tpu.memory_space<vmem>>, vector<1x8x4xf32>
    %63 = vector.shape_cast %62 : vector<1x8x4xf32> to vector<8x4xf32>
    %cst_42 = arith.constant dense<0.000000e+00> : vector<8x1024xf32>
    %64 = tpu.matmul %63, %61, %cst_42 {dimension_numbers = #tpu.dot_dimension_numbers<[1], [0], [0], [1], [0, 0, 1, 1], [], []>} : vector<8x4xf32>, vector<4x1024xf32>, vector<8x1024xf32> -> vector<8x1024xf32>
    %65 = arith.addf %55, %64 : vector<8x1024xf32>
    %cst_43 = arith.constant 0.000000e+00 : f32
    %66 = vector.broadcast %cst_43 : f32 to vector<4x32xf32>
    %67 = vector.extract_strided_slice %3 {offsets = [0, 32], sizes = [4, 992], strides = [1, 1]} : vector<4x1024xf32> to vector<4x992xf32>
    %68 = tpu.concatenate %67, %66 in 1 : vector<4x992xf32>, vector<4x32xf32> -> vector<4x1024xf32>
    %c7 = arith.constant 7 : index
    %c0_44 = arith.constant 0 : index
    %c0_45 = arith.constant 0 : index
    %69 = vector.load %arg3[%c7, %c0_44, %c0_45] : memref<9x8x4xf32, #tpu.memory_space<vmem>>, vector<1x8x4xf32>
    %70 = vector.shape_cast %69 : vector<1x8x4xf32> to vector<8x4xf32>
    %cst_46 = arith.constant dense<0.000000e+00> : vector<8x1024xf32>
    %71 = tpu.matmul %70, %68, %cst_46 {dimension_numbers = #tpu.dot_dimension_numbers<[1], [0], [0], [1], [0, 0, 1, 1], [], []>} : vector<8x4xf32>, vector<4x1024xf32>, vector<8x1024xf32> -> vector<8x1024xf32>
    %72 = arith.addf %65, %71 : vector<8x1024xf32>
    %cst_47 = arith.constant 0.000000e+00 : f32
    %73 = vector.broadcast %cst_47 : f32 to vector<4x33xf32>
    %74 = vector.extract_strided_slice %3 {offsets = [0, 33], sizes = [4, 991], strides = [1, 1]} : vector<4x1024xf32> to vector<4x991xf32>
    %75 = tpu.concatenate %74, %73 in 1 : vector<4x991xf32>, vector<4x33xf32> -> vector<4x1024xf32>
    %c2_48 = arith.constant 2 : index
    %c0_49 = arith.constant 0 : index
    %76 = vector.load %arg4[%c2_48, %c0_49] : memref<3x1024xf32, #tpu.memory_space<vmem>>, vector<1x1024xf32>
    %77 = vector.broadcast %76 : vector<1x1024xf32> to vector<4x1024xf32>
    %78 = arith.mulf %75, %77 : vector<4x1024xf32>
    %c8 = arith.constant 8 : index
    %c0_50 = arith.constant 0 : index
    %c0_51 = arith.constant 0 : index
    %79 = vector.load %arg3[%c8, %c0_50, %c0_51] : memref<9x8x4xf32, #tpu.memory_space<vmem>>, vector<1x8x4xf32>
    %80 = vector.shape_cast %79 : vector<1x8x4xf32> to vector<8x4xf32>
    %cst_52 = arith.constant dense<0.000000e+00> : vector<8x1024xf32>
    %81 = tpu.matmul %80, %78, %cst_52 {dimension_numbers = #tpu.dot_dimension_numbers<[1], [0], [0], [1], [0, 0, 1, 1], [], []>} : vector<8x4xf32>, vector<4x1024xf32>, vector<8x1024xf32> -> vector<8x1024xf32>
    %82 = arith.addf %72, %81 : vector<8x1024xf32>
    %cst_53 = arith.constant dense<0.000000e+00> : vector<8xf32>
    %83 = vector.multi_reduction <add>, %82, %cst_53 [1] : vector<8x1024xf32> to vector<8xf32>
    %84 = vector.shape_cast %83 : vector<8xf32> to vector<8x1xf32>
    %cst_54 = arith.constant 1.024000e+03 : f32
    %85 = vector.broadcast %cst_54 : f32 to vector<8x1xf32>
    %86 = arith.divf %84, %85 : vector<8x1xf32>
    %87 = vector.broadcast %86 : vector<8x1xf32> to vector<8x1024xf32>
    %88 = arith.subf %82, %87 : vector<8x1024xf32>
    %89 = arith.mulf %88, %88 : vector<8x1024xf32>
    %cst_55 = arith.constant dense<0.000000e+00> : vector<8xf32>
    %90 = vector.multi_reduction <add>, %89, %cst_55 [1] : vector<8x1024xf32> to vector<8xf32>
    %91 = vector.shape_cast %90 : vector<8xf32> to vector<8x1xf32>
    %cst_56 = arith.constant 1.024000e+03 : f32
    %92 = vector.broadcast %cst_56 : f32 to vector<8x1xf32>
    %93 = arith.divf %91, %92 : vector<8x1xf32>
    %cst_57 = arith.constant 9.99999974E-6 : f32
    %94 = vector.broadcast %cst_57 : f32 to vector<8x1xf32>
    %95 = arith.addf %93, %94 : vector<8x1xf32>
    %96 = math.rsqrt %95 : vector<8x1xf32>
    %c0_58 = arith.constant 0 : index
    %c0_59 = arith.constant 0 : index
    %97 = vector.load %arg5[%c0_58, %c0_59] : memref<8x1xf32, #tpu.memory_space<vmem>>, vector<8x1xf32>
    %98 = arith.mulf %96, %97 : vector<8x1xf32>
    %99 = vector.broadcast %98 : vector<8x1xf32> to vector<8x1024xf32>
    %100 = arith.mulf %88, %99 : vector<8x1024xf32>
    %c0_60 = arith.constant 0 : index
    %c0_61 = arith.constant 0 : index
    %101 = vector.load %arg6[%c0_60, %c0_61] : memref<8x1xf32, #tpu.memory_space<vmem>>, vector<8x1xf32>
    %102 = vector.broadcast %101 : vector<8x1xf32> to vector<8x1024xf32>
    %103 = arith.addf %100, %102 : vector<8x1024xf32>
    %cst_62 = arith.constant 0.000000e+00 : f32
    %104 = vector.broadcast %cst_62 : f32 to vector<8x1024xf32>
    %105 = arith.cmpf oge, %103, %104 : vector<8x1024xf32>
    %cst_63 = arith.constant 0.00999999977 : f32
    %106 = vector.broadcast %cst_63 : f32 to vector<8x1024xf32>
    %107 = arith.mulf %106, %103 : vector<8x1024xf32>
    %108 = arith.select %105, %103, %107 : vector<8x1024xi1>, vector<8x1024xf32>
    %c0_64 = arith.constant 0 : index
    %c0_65 = arith.constant 0 : index
    %c0_66 = arith.constant 0 : index
    %109 = vector.load %arg7[%c0_64, %c0_65, %c0_66] : memref<1x8x1024xf32, #tpu.memory_space<vmem>>, vector<1x8x1024xf32>
    %110 = vector.shape_cast %109 : vector<1x8x1024xf32> to vector<8x1024xf32>
    %111 = vector.shape_cast %108 : vector<8x1024xf32> to vector<1x8x1024xf32>
    tpu.vector_store %arg7[%c0_64, %c0_65, %c0_66], %111 {strides = array<i32>} : memref<1x8x1024xf32, #tpu.memory_space<vmem>>, vector<1x8x1024xf32>,
    return
  }
  func.func @transform_0(%arg0: i32) -> (i32, i32, i32) {
    %c0_i32 = arith.constant 0 : i32
    %c0_i32_0 = arith.constant 0 : i32
    %c0_i32_1 = arith.constant 0 : i32
    return %arg0, %c0_i32, %c0_i32_0 : i32, i32, i32
  }
  func.func @transform_1(%arg0: i32) -> (i32, i32) {
    %c0_i32 = arith.constant 0 : i32
    %c0_i32_0 = arith.constant 0 : i32
    %c0_i32_1 = arith.constant 0 : i32
    return %c0_i32, %c0_i32_0 : i32, i32
  }
  func.func @transform_2(%arg0: i32) -> (i32, i32, i32) {
    %c0_i32 = arith.constant 0 : i32
    %c0_i32_0 = arith.constant 0 : i32
    %c0_i32_1 = arith.constant 0 : i32
    %c0_i32_2 = arith.constant 0 : i32
    return %c0_i32, %c0_i32_0, %c0_i32_1 : i32, i32, i32
  }
  func.func @transform_3(%arg0: i32) -> (i32, i32) {
    %c0_i32 = arith.constant 0 : i32
    %c0_i32_0 = arith.constant 0 : i32
    %c0_i32_1 = arith.constant 0 : i32
    return %c0_i32, %c0_i32_0 : i32, i32
  }
  func.func @transform_4(%arg0: i32) -> (i32, i32) {
    %c0_i32 = arith.constant 0 : i32
    %c0_i32_0 = arith.constant 0 : i32
    %c0_i32_1 = arith.constant 0 : i32
    return %c0_i32, %c0_i32_0 : i32, i32
  }
  func.func @transform_5(%arg0: i32) -> (i32, i32) {
    %c0_i32 = arith.constant 0 : i32
    %c0_i32_0 = arith.constant 0 : i32
    %c0_i32_1 = arith.constant 0 : i32
    return %c0_i32, %c0_i32_0 : i32, i32
  }
  func.func @transform_6(%arg0: i32) -> (i32, i32, i32) {
    %c0_i32 = arith.constant 0 : i32
    %c0_i32_0 = arith.constant 0 : i32
    %c0_i32_1 = arith.constant 0 : i32
    return %arg0, %c0_i32, %c0_i32_0 : i32, i32, i32
  }
}

</mosaic_0001>

<llo_original>
// kernel: tpu_custom_call.1
$region0: #{tpu_custom_call.1}
  #allocation0 [shape = 'u32[]', space=smem, size = 0x4, offset = 0x4, fixed_abs, tag = 'smem constant byte address 0x4 - core index']
  #allocation1 [shape = 'u32[72,128]{1,0:T(1,128)}', space=vmem, size = 0x9000, scoped, tag = 'internal scratch']
  %s0 = inlined_call_operand.vmem [shape: f32[2,4,256], index: 0, kind: input, shape index: {}]
  %s1 = inlined_call_operand.hbm [shape: f32[256,1024], index: 1, kind: input, shape index: {}]
  %s2 = inlined_call_operand.vmem [shape: f32[9,8,4], index: 2, kind: input, shape index: {}]
  %s3 = inlined_call_operand.vmem [shape: f32[3,1024], index: 3, kind: input, shape index: {}]
  %s4 = inlined_call_operand.vmem [shape: f32[8,1], index: 4, kind: input, shape index: {}]
  %s5 = inlined_call_operand.vmem [shape: f32[8,1], index: 5, kind: input, shape index: {}]
  %s6 = inlined_call_operand.hbm [shape: f32[2,8,1024], index: 6, kind: output, shape index: {}]
  %s7 = sld [smem:[#allocation0]]
  $region61: #{tpu_custom_call.1} parent=0
    _
  %s9 = ssub.s32 1, %s7
  %s10 = scalar_select 0, %s9, %s7
  $region1: #{tpu_custom_call.1} parent=0
    #allocation2 [shape = 'u8[1048576]{0}', space=vmem, size = 0x100000, scoped, tag = 'input window, operand 1, single buffered']
    #allocation3 [shape = 's32[2]{0}', space=sflag, size = 0x8, scoped, tag = 'scoped memory for tpu_custom_call.1']
    #allocation4 [shape = 's32[2]{0}', space=sflag, size = 0x8, scoped, tag = 'scoped memory for tpu_custom_call.1']
    #allocation5 [shape = 'u8[65536]{0}', space=vmem, size = 0x10000, scoped, tag = 'output window, operand 0']
    %11 = vsyncpa [#allocation3], 0
    %12 = vsyncpa [#allocation4], 0
    %s13 = scalar_lea.sflag [#allocation4], 1
    %14 = vsyncpa %s13, 0
    loop: start=0, step=1, limit=4
    $region2: #{tpu_custom_call.1} parent=1 // loop_pre_header
      _
    $region3: #{tpu_custom_call.1} parent=1 // loop_header
      %s16 = sphi 0, %s20
      %p17 = scmp.ge.s32.totalorder %s16, 4
      %s26 = sphi 0, %s28
      %s29 = sphi 0, %s26
      %s30 = sphi 0, %s29
      %s46 = sphi 0, %s30
      %s50 = sphi 0, %s50
      %s52 = sphi 0, %s50
      %s53 = sphi 0, %s52
      %s67 = sphi 0, %s53
      %s71 = sphi 0, %s71
      %s73 = sphi 0, %s71
      %s74 = sphi 0, %s73
      %s88 = sphi 0, %s74
      %s92 = sphi 0, %s92
      %s94 = sphi 0, %s92
      %s95 = sphi 0, %s94
      %s109 = sphi 0, %s95
      %s113 = sphi 0, %s113
      %s115 = sphi 0, %s113
      %s116 = sphi 0, %s115
      %s130 = sphi 0, %s116
      %s134 = sphi 0, %s134
      %s136 = sphi 0, %s134
      %s137 = sphi 0, %s136
      %s151 = sphi 0, %s137
      %s157 = sphi 0, %s159
      %s160 = sphi 0, %s157
      %s161 = sphi 0, %s160
      %s177 = sphi 0, %s161
    $region4: #{tpu_custom_call.1} parent=1 // loop_header_branch
      %19 = sbr.rel (%p17) target = $region8
    $region5: #{tpu_custom_call.1} parent=1 // loop_body
      %s21 = ssub.s32 %s16, 1
      %s22 = ssub.s32 %s16, 2
      %s23 = sadd.s32 %s16, 1
      %s24 = ssub.s32 %s16, %s23
      %p25 = scmp.eq.s32.totalorder %s24, 0
      %s27 = sadd.s32 %s26, 1
      %s28 = scalar_select %p25, %s26, %s27
      %p31 = pneg %p25
      %p32 = scmp.eq.s32.totalorder %s16, 1
      %p33 = por %p31, %p32
      %p34 = scmp.ne.s32.totalorder %s26, %s29
      %p35 = scmp.eq.s32.totalorder %s16, 0
      %p36 = por %p34, %p35
      %p37 = scmp.ne.s32.totalorder %s26, %s29
      %p38 = scmp.eq.s32.totalorder %s21, 1
      %p39 = por %p37, %p38
      %p40 = scmp.ne.s32.totalorder %s29, %s30
      %p41 = scmp.eq.s32.totalorder %s21, 0
      %p42 = por %p40, %p41
      %p43 = scmp.ne.s32.totalorder %s29, %s30
      %p44 = scmp.eq.s32.totalorder %s22, 1
      %p45 = por %p43, %p44
      %p47 = scmp.ne.s32.totalorder %s30, %s46
      %p48 = scmp.eq.s32.totalorder %s22, 0
      %p49 = por %p47, %p48
      %s51 = sadd.s32 %s50, 1
      %p54 = scmp.eq.s32.totalorder %s16, 1
      %p55 = scmp.ne.s32.totalorder %s50, %s52
      %p56 = scmp.eq.s32.totalorder %s16, 0
      %p57 = por %p55, %p56
      %p58 = scmp.ne.s32.totalorder %s50, %s52
      %p59 = scmp.eq.s32.totalorder %s21, 1
      %p60 = por %p58, %p59
      %p61 = scmp.ne.s32.totalorder %s52, %s53
      %p62 = scmp.eq.s32.totalorder %s21, 0
      %p63 = por %p61, %p62
      %p64 = scmp.ne.s32.totalorder %s52, %s53
      %p65 = scmp.eq.s32.totalorder %s22, 1
      %p66 = por %p64, %p65
      %p68 = scmp.ne.s32.totalorder %s53, %s67
      %p69 = scmp.eq.s32.totalorder %s22, 0
      %p70 = por %p68, %p69
      %s72 = sadd.s32 %s71, 1
      %p75 = scmp.eq.s32.totalorder %s16, 1
      %p76 = scmp.ne.s32.totalorder %s71, %s73
      %p77 = scmp.eq.s32.totalorder %s16, 0
      %p78 = por %p76, %p77
      %p79 = scmp.ne.s32.totalorder %s71, %s73
      %p80 = scmp.eq.s32.totalorder %s21, 1
      %p81 = por %p79, %p80
      %p82 = scmp.ne.s32.totalorder %s73, %s74
      %p83 = scmp.eq.s32.totalorder %s21, 0
      %p84 = por %p82, %p83
      %p85 = scmp.ne.s32.totalorder %s73, %s74
      %p86 = scmp.eq.s32.totalorder %s22, 1
      %p87 = por %p85, %p86
      %p89 = scmp.ne.s32.totalorder %s74, %s88
      %p90 = scmp.eq.s32.totalorder %s22, 0
      %p91 = por %p89, %p90
      %s93 = sadd.s32 %s92, 1
      %p96 = scmp.eq.s32.totalorder %s16, 1
      %p97 = scmp.ne.s32.totalorder %s92, %s94
      %p98 = scmp.eq.s32.totalorder %s16, 0
      %p99 = por %p97, %p98
      %p100 = scmp.ne.s32.totalorder %s92, %s94
      %p101 = scmp.eq.s32.totalorder %s21, 1
      %p102 = por %p100, %p101
      %p103 = scmp.ne.s32.totalorder %s94, %s95
      %p104 = scmp.eq.s32.totalorder %s21, 0
      %p105 = por %p103, %p104
      %p106 = scmp.ne.s32.totalorder %s94, %s95
      %p107 = scmp.eq.s32.totalorder %s22, 1
      %p108 = por %p106, %p107
      %p110 = scmp.ne.s32.totalorder %s95, %s109
      %p111 = scmp.eq.s32.totalorder %s22, 0
      %p112 = por %p110, %p111
      %s114 = sadd.s32 %s113, 1
      %p117 = scmp.eq.s32.totalorder %s16, 1
      %p118 = scmp.ne.s32.totalorder %s113, %s115
      %p119 = scmp.eq.s32.totalorder %s16, 0
      %p120 = por %p118, %p119
      %p121 = scmp.ne.s32.totalorder %s113, %s115
      %p122 = scmp.eq.s32.totalorder %s21, 1
      %p123 = por %p121, %p122
      %p124 = scmp.ne.s32.totalorder %s115, %s116
      %p125 = scmp.eq.s32.totalorder %s21, 0
      %p126 = por %p124, %p125
      %p127 = scmp.ne.s32.totalorder %s115, %s116
      %p128 = scmp.eq.s32.totalorder %s22, 1
      %p129 = por %p127, %p128
      %p131 = scmp.ne.s32.totalorder %s116, %s130
      %p132 = scmp.eq.s32.totalorder %s22, 0
      %p133 = por %p131, %p132
      %s135 = sadd.s32 %s134, 1
      %p138 = scmp.eq.s32.totalorder %s16, 1
      %p139 = scmp.ne.s32.totalorder %s134, %s136
      %p140 = scmp.eq.s32.totalorder %s16, 0
      %p141 = por %p139, %p140
      %p142 = scmp.ne.s32.totalorder %s134, %s136
      %p143 = scmp.eq.s32.totalorder %s21, 1
      %p144 = por %p142, %p143
      %p145 = scmp.ne.s32.totalorder %s136, %s137
      %p146 = scmp.eq.s32.totalorder %s21, 0
      %p147 = por %p145, %p146
      %p148 = scmp.ne.s32.totalorder %s136, %s137
      %p149 = scmp.eq.s32.totalorder %s22, 1
      %p150 = por %p148, %p149
      %p152 = scmp.ne.s32.totalorder %s137, %s151
      %p153 = scmp.eq.s32.totalorder %s22, 0
      %p154 = por %p152, %p153
      %s155 = ssub.s32 %s16, %s23
      %p156 = scmp.eq.s32.totalorder %s155, 0
      %s158 = sadd.s32 %s157, 1
      %s159 = scalar_select %p156, %s157, %s158
      %p162 = pneg %p156
      %p163 = scmp.eq.s32.totalorder %s16, 1
      %p164 = por %p162, %p163
      %p165 = scmp.ne.s32.totalorder %s157, %s160
      %p166 = scmp.eq.s32.totalorder %s16, 0
      %p167 = por %p165, %p166
      %p168 = scmp.ne.s32.totalorder %s157, %s160
      %p169 = scmp.eq.s32.totalorder %s21, 1
      %p170 = por %p168, %p169
      %p171 = scmp.ne.s32.totalorder %s160, %s161
      %p172 = scmp.eq.s32.totalorder %s21, 0
      %p173 = por %p171, %p172
      %p174 = scmp.ne.s32.totalorder %s160, %s161
      %p175 = scmp.eq.s32.totalorder %s22, 1
      %p176 = por %p174, %p175
      %p178 = scmp.ne.s32.totalorder %s161, %s177
      %p179 = scmp.eq.s32.totalorder %s22, 0
      %p180 = por %p178, %p179
      %p181 = scmp.le.s32.totalorder 1, %s16
      %p182 = scmp.lt.s32.totalorder %s16, 3
      %p183 = pnand %p181, %p182
      %p184 = pneg %p183
      // Predicated region
      $region9: #{tpu_custom_call.1} parent=5 // pred_check
        _
      $region10: #{tpu_custom_call.1} parent=5 // pred_check_branch
        %186 = sbr.rel (%p183) target = $region12
      $region11: #{tpu_custom_call.1} parent=5 // pred_region
        %s187 = ssub.s32 %s16, 1
        // Predicated region
        $region13: #{tpu_custom_call.1} parent=11 // pred_check
          %p188 = pneg %p63
        $region14: #{tpu_custom_call.1} parent=11 // pred_check_branch
          %190 = sbr.rel (%p188) target = $region16
        $region15: #{tpu_custom_call.1} parent=11 // pred_region
          %192 = vsyncadd [#allocation3], 0
          %s193 = sshll.u32 %s1, 4
          %s194 = int_to_ptr.hbm [resolvable:$true] %s193
          %s195 = sshll.u32 [#allocation2], 4
          %s196 = int_to_ptr.vmem [resolvable:$true] %s195
          %201 = dma.hbm_to_vmem [thread:$0]  %s194, 32768, %s196, [#allocation3], 1024, 1024, 64
        $region16: #{tpu_custom_call.1} parent=11 // pred_fallthru
          _
        // Predicated region
        $region17: #{tpu_custom_call.1} parent=11 // pred_check
          %p202 = pneg %p84
        $region18: #{tpu_custom_call.1} parent=11 // pred_check_branch
          %204 = sbr.rel (%p202) target = $region20
        $region19: #{tpu_custom_call.1} parent=11 // pred_region
          _
        $region20: #{tpu_custom_call.1} parent=11 // pred_fallthru
          _
        // Predicated region
        $region21: #{tpu_custom_call.1} parent=11 // pred_check
          %p205 = pneg %p105
        $region22: #{tpu_custom_call.1} parent=11 // pred_check_branch
          %207 = sbr.rel (%p205) target = $region24
        $region23: #{tpu_custom_call.1} parent=11 // pred_region
          _
        $region24: #{tpu_custom_call.1} parent=11 // pred_fallthru
          _
        // Predicated region
        $region25: #{tpu_custom_call.1} parent=11 // pred_check
          %p208 = pneg %p126
        $region26: #{tpu_custom_call.1} parent=11 // pred_check_branch
          %210 = sbr.rel (%p208) target = $region28
        $region27: #{tpu_custom_call.1} parent=11 // pred_region
          _
        $region28: #{tpu_custom_call.1} parent=11 // pred_fallthru
          _
        // Predicated region
        $region29: #{tpu_custom_call.1} parent=11 // pred_check
          %p211 = pneg %p147
        $region30: #{tpu_custom_call.1} parent=11 // pred_check_branch
          %213 = sbr.rel (%p211) target = $region32
        $region31: #{tpu_custom_call.1} parent=11 // pred_region
          _
        $region32: #{tpu_custom_call.1} parent=11 // pred_fallthru
          _
      $region12: #{tpu_custom_call.1} parent=5 // pred_fallthru
        _
      %p214 = scmp.lt.s32.totalorder %s16, 2
      // Predicated region
      $region33: #{tpu_custom_call.1} parent=5 // pred_check
        %p215 = pneg %p214
      $region34: #{tpu_custom_call.1} parent=5 // pred_check_branch
        %217 = sbr.rel (%p215) target = $region36
      $region35: #{tpu_custom_call.1} parent=5 // pred_region
        // Predicated region
        $region37: #{tpu_custom_call.1} parent=35 // pred_check
          %p218 = pneg %p36
        $region38: #{tpu_custom_call.1} parent=35 // pred_check_branch
          %220 = sbr.rel (%p218) target = $region40
        $region39: #{tpu_custom_call.1} parent=35 // pred_region
          %p221 = scmp.lt.s32.totalorder %s16, 1
          %s222 = scalar_select %p221, %s16, 1
          %s223 = smul.addr %s222, 2
          %s224 = smul.addr %s223, 4
          %s225 = scalar_lea.vmem %s0, %s224
        $region40: #{tpu_custom_call.1} parent=35 // pred_fallthru
          _
      $region36: #{tpu_custom_call.1} parent=5 // pred_fallthru
        _
      %p226 = scmp.le.s32.totalorder 1, %s16
      %p227 = scmp.lt.s32.totalorder %s16, 3
      %p228 = pnand %p226, %p227
      %p229 = pneg %p228
      // Predicated region
      $region41: #{tpu_custom_call.1} parent=5 // pred_check
        _
      $region42: #{tpu_custom_call.1} parent=5 // pred_check_branch
        %231 = sbr.rel (%p228) target = $region44
      $region43: #{tpu_custom_call.1} parent=5 // pred_region
        %s232 = ssub.s32 %s16, 1
        // Predicated region
        $region45: #{tpu_custom_call.1} parent=43 // pred_check
          %p233 = pneg %p63
        $region46: #{tpu_custom_call.1} parent=43 // pred_check_branch
          %235 = sbr.rel (%p233) target = $region48
        $region47: #{tpu_custom_call.1} parent=43 // pred_region
          %237 = dma.done [#allocation3], 32768
        $region48: #{tpu_custom_call.1} parent=43 // pred_fallthru
          _
        %p238 = scmp.lt.s32.totalorder %s21, 1
        %s239 = scalar_select %p238, %s21, 1
        %s240 = smul.addr %s239, 2
        %s241 = smul.addr %s240, 4
        %s242 = scalar_lea.vmem %s0, %s241
        %p243 = pneg %p42
        %p244 = pneg %p39
        %p245 = pneg %p63
        %p246 = pneg %p60
        %p247 = pneg %p84
        %p248 = pneg %p81
        %p249 = pneg %p105
        %p250 = pneg %p102
        %p251 = pneg %p126
        %p252 = pneg %p123
        %p253 = pneg %p147
        %p254 = pneg %p144
        %p255 = pneg %p173
        %p256 = pneg %p170
        %s257 = sand.u32 %s160, 1
        %s258 = scalar_lea.sflag [#allocation4], %s257
        %s259 = sand.u32 %s160, 1
        %s260 = smul.addr %s259, 64
        %s261 = scalar_lea.vmem [#allocation5], %s260
        %p262 = scmp.lt.s32.totalorder %s21, 1
        %s263 = scalar_select %p262, %s21, 1
        %s264 = smul.addr %s263, 2
        %s265 = smul.addr %s264, 4
        %s266 = scalar_lea.vmem %s0, %s265
        %v267 = vld [vmem:[%s266] sm:$0xff]
        %v268 = vld [vmem:[#allocation2] sm:$0xff]
        %v269 = vld [vmem:[#allocation2 + $0x8] sm:$0xff]
        %v270 = vld [vmem:[#allocation2 + $0x10] sm:$0xff]
        %v271 = vld [vmem:[#allocation2 + $0x18] sm:$0xff]
        %v272 = vld [vmem:[#allocation2 + $0x20] sm:$0xff]
        %v273 = vld [vmem:[#allocation2 + $0x28] sm:$0xff]
        %v274 = vld [vmem:[#allocation2 + $0x30] sm:$0xff]
        %v275 = vld [vmem:[#allocation2 + $0x38] sm:$0xff]
        %v276 = vld [vmem:[#allocation2 + $0x40] sm:$0xff]
        %v277 = vld [vmem:[#allocation2 + $0x48] sm:$0xff]
        %v278 = vld [vmem:[#allocation2 + $0x50] sm:$0xff]
        %v279 = vld [vmem:[#allocation2 + $0x58] sm:$0xff]
        %v280 = vld [vmem:[#allocation2 + $0x60] sm:$0xff]
        %v281 = vld [vmem:[#allocation2 + $0x68] sm:$0xff]
        %v282 = vld [vmem:[#allocation2 + $0x70] sm:$0xff]
        %v283 = vld [vmem:[#allocation2 + $0x78] sm:$0xff]
        %v284 = vld [vmem:[#allocation2 + $0x80] sm:$0xff]
        %v285 = vld [vmem:[#allocation2 + $0x88] sm:$0xff]
        %v286 = vld [vmem:[#allocation2 + $0x90] sm:$0xff]
        %v287 = vld [vmem:[#allocation2 + $0x98] sm:$0xff]
        %v288 = vld [vmem:[#allocation2 + $0xa0] sm:$0xff]
        %v289 = vld [vmem:[#allocation2 + $0xa8] sm:$0xff]
        %v290 = vld [vmem:[#allocation2 + $0xb0] sm:$0xff]
        %v291 = vld [vmem:[#allocation2 + $0xb8] sm:$0xff]
        %v292 = vld [vmem:[#allocation2 + $0xc0] sm:$0xff]
        %v293 = vld [vmem:[#allocation2 + $0xc8] sm:$0xff]
        %v294 = vld [vmem:[#allocation2 + $0xd0] sm:$0xff]
        %v295 = vld [vmem:[#allocation2 + $0xd8] sm:$0xff]
        %v296 = vld [vmem:[#allocation2 + $0xe0] sm:$0xff]
        %v297 = vld [vmem:[#allocation2 + $0xe8] sm:$0xff]
        %v298 = vld [vmem:[#allocation2 + $0xf0] sm:$0xff]
        %v299 = vld [vmem:[#allocation2 + $0xf8] sm:$0xff]
        %v300 = vld [vmem:[#allocation2 + $0x100] sm:$0xff]
        %v301 = vld [vmem:[#allocation2 + $0x108] sm:$0xff]
        %v302 = vld [vmem:[#allocation2 + $0x110] sm:$0xff]
        %v303 = vld [vmem:[#allocation2 + $0x118] sm:$0xff]
        %v304 = vld [vmem:[#allocation2 + $0x120] sm:$0xff]
        %v305 = vld [vmem:[#allocation2 + $0x128] sm:$0xff]
        %v306 = vld [vmem:[#allocation2 + $0x130] sm:$0xff]
        %v307 = vld [vmem:[#allocation2 + $0x138] sm:$0xff]
        %v308 = vld [vmem:[#allocation2 + $0x140] sm:$0xff]
        %v309 = vld [vmem:[#allocation2 + $0x148] sm:$0xff]
        %v310 = vld [vmem:[#allocation2 + $0x150] sm:$0xff]
        %v311 = vld [vmem:[#allocation2 + $0x158] sm:$0xff]
        %v312 = vld [vmem:[#allocation2 + $0x160] sm:$0xff]
        %v313 = vld [vmem:[#allocation2 + $0x168] sm:$0xff]
        %v314 = vld [vmem:[#allocation2 + $0x170] sm:$0xff]
        %v315 = vld [vmem:[#allocation2 + $0x178] sm:$0xff]
        %v316 = vld [vmem:[#allocation2 + $0x180] sm:$0xff]
        %v317 = vld [vmem:[#allocation2 + $0x188] sm:$0xff]
        %v318 = vld [vmem:[#allocation2 + $0x190] sm:$0xff]
        %v319 = vld [vmem:[#allocation2 + $0x198] sm:$0xff]
        %v320 = vld [vmem:[#allocation2 + $0x1a0] sm:$0xff]
        %v321 = vld [vmem:[#allocation2 + $0x1a8] sm:$0xff]
        %v322 = vld [vmem:[#allocation2 + $0x1b0] sm:$0xff]
        %v323 = vld [vmem:[#allocation2 + $0x1b8] sm:$0xff]
        %v324 = vld [vmem:[#allocation2 + $0x1c0] sm:$0xff]
        %v325 = vld [vmem:[#allocation2 + $0x1c8] sm:$0xff]
        %v326 = vld [vmem:[#allocation2 + $0x1d0] sm:$0xff]
        %v327 = vld [vmem:[#allocation2 + $0x1d8] sm:$0xff]
        %v328 = vld [vmem:[#allocation2 + $0x1e0] sm:$0xff]
        %v329 = vld [vmem:[#allocation2 + $0x1e8] sm:$0xff]
        %v330 = vld [vmem:[#allocation2 + $0x1f0] sm:$0xff]
        %v331 = vld [vmem:[#allocation2 + $0x1f8] sm:$0xff]
        %v332 = vld [vmem:[#allocation2 + $0x200] sm:$0xff]
        %v333 = vld [vmem:[#allocation2 + $0x208] sm:$0xff]
        %v334 = vld [vmem:[#allocation2 + $0x210] sm:$0xff]
        %v335 = vld [vmem:[#allocation2 + $0x218] sm:$0xff]
        %v336 = vld [vmem:[#allocation2 + $0x220] sm:$0xff]
        %v337 = vld [vmem:[#allocation2 + $0x228] sm:$0xff]
        %v338 = vld [vmem:[#allocation2 + $0x230] sm:$0xff]
        %v339 = vld [vmem:[#allocation2 + $0x238] sm:$0xff]
        %v340 = vld [vmem:[#allocation2 + $0x240] sm:$0xff]
        %v341 = vld [vmem:[#allocation2 + $0x248] sm:$0xff]
        %v342 = vld [vmem:[#allocation2 + $0x250] sm:$0xff]
        %v343 = vld [vmem:[#allocation2 + $0x258] sm:$0xff]
        %v344 = vld [vmem:[#allocation2 + $0x260] sm:$0xff]
        %v345 = vld [vmem:[#allocation2 + $0x268] sm:$0xff]
        %v346 = vld [vmem:[#allocation2 + $0x270] sm:$0xff]
        %v347 = vld [vmem:[#allocation2 + $0x278] sm:$0xff]
        %v348 = vld [vmem:[#allocation2 + $0x280] sm:$0xff]
        %v349 = vld [vmem:[#allocation2 + $0x288] sm:$0xff]
        %v350 = vld [vmem:[#allocation2 + $0x290] sm:$0xff]
        %v351 = vld [vmem:[#allocation2 + $0x298] sm:$0xff]
        %v352 = vld [vmem:[#allocation2 + $0x2a0] sm:$0xff]
        %v353 = vld [vmem:[#allocation2 + $0x2a8] sm:$0xff]
        %v354 = vld [vmem:[#allocation2 + $0x2b0] sm:$0xff]
        %v355 = vld [vmem:[#allocation2 + $0x2b8] sm:$0xff]
        %v356 = vld [vmem:[#allocation2 + $0x2c0] sm:$0xff]
        %v357 = vld [vmem:[#allocation2 + $0x2c8] sm:$0xff]
        %v358 = vld [vmem:[#allocation2 + $0x2d0] sm:$0xff]
        %v359 = vld [vmem:[#allocation2 + $0x2d8] sm:$0xff]
        %v360 = vld [vmem:[#allocation2 + $0x2e0] sm:$0xff]
        %v361 = vld [vmem:[#allocation2 + $0x2e8] sm:$0xff]
        %v362 = vld [vmem:[#allocation2 + $0x2f0] sm:$0xff]
        %v363 = vld [vmem:[#allocation2 + $0x2f8] sm:$0xff]
        %v364 = vld [vmem:[#allocation2 + $0x300] sm:$0xff]
        %v365 = vld [vmem:[#allocation2 + $0x308] sm:$0xff]
        %v366 = vld [vmem:[#allocation2 + $0x310] sm:$0xff]
        %v367 = vld [vmem:[#allocation2 + $0x318] sm:$0xff]
        %v368 = vld [vmem:[#allocation2 + $0x320] sm:$0xff]
        %v369 = vld [vmem:[#allocation2 + $0x328] sm:$0xff]
        %v370 = vld [vmem:[#allocation2 + $0x330] sm:$0xff]
        %v371 = vld [vmem:[#allocation2 + $0x338] sm:$0xff]
        %v372 = vld [vmem:[#allocation2 + $0x340] sm:$0xff]
        %v373 = vld [vmem:[#allocation2 + $0x348] sm:$0xff]
        %v374 = vld [vmem:[#allocation2 + $0x350] sm:$0xff]
        %v375 = vld [vmem:[#allocation2 + $0x358] sm:$0xff]
        %v376 = vld [vmem:[#allocation2 + $0x360] sm:$0xff]
        %v377 = vld [vmem:[#allocation2 + $0x368] sm:$0xff]
        %v378 = vld [vmem:[#allocation2 + $0x370] sm:$0xff]
        %v379 = vld [vmem:[#allocation2 + $0x378] sm:$0xff]
        %v380 = vld [vmem:[#allocation2 + $0x380] sm:$0xff]
        %v381 = vld [vmem:[#allocation2 + $0x388] sm:$0xff]
        %v382 = vld [vmem:[#allocation2 + $0x390] sm:$0xff]
        %v383 = vld [vmem:[#allocation2 + $0x398] sm:$0xff]
        %v384 = vld [vmem:[#allocation2 + $0x3a0] sm:$0xff]
        %v385 = vld [vmem:[#allocation2 + $0x3a8] sm:$0xff]
        %v386 = vld [vmem:[#allocation2 + $0x3b0] sm:$0xff]
        %v387 = vld [vmem:[#allocation2 + $0x3b8] sm:$0xff]
        %v388 = vld [vmem:[#allocation2 + $0x3c0] sm:$0xff]
        %v389 = vld [vmem:[#allocation2 + $0x3c8] sm:$0xff]
        %v390 = vld [vmem:[#allocation2 + $0x3d0] sm:$0xff]
        %v391 = vld [vmem:[#allocation2 + $0x3d8] sm:$0xff]
        %v392 = vld [vmem:[#allocation2 + $0x3e0] sm:$0xff]
        %v393 = vld [vmem:[#allocation2 + $0x3e8] sm:$0xff]
        %v394 = vld [vmem:[#allocation2 + $0x3f0] sm:$0xff]
        %v395 = vld [vmem:[#allocation2 + $0x3f8] sm:$0xff]
        %v396 = vld [vmem:[#allocation2 + $0x400] sm:$0xff]
        %v397 = vld [vmem:[#allocation2 + $0x408] sm:$0xff]
        %v398 = vld [vmem:[#allocation2 + $0x410] sm:$0xff]
        %v399 = vld [vmem:[#allocation2 + $0x418] sm:$0xff]
        %v400 = vld [vmem:[#allocation2 + $0x420] sm:$0xff]
        %v401 = vld [vmem:[#allocation2 + $0x428] sm:$0xff]
        %v402 = vld [vmem:[#allocation2 + $0x430] sm:$0xff]
        %v403 = vld [vmem:[#allocation2 + $0x438] sm:$0xff]
        %v404 = vld [vmem:[#allocation2 + $0x440] sm:$0xff]
        %v405 = vld [vmem:[#allocation2 + $0x448] sm:$0xff]
        %v406 = vld [vmem:[#allocation2 + $0x450] sm:$0xff]
        %v407 = vld [vmem:[#allocation2 + $0x458] sm:$0xff]
        %v408 = vld [vmem:[#allocation2 + $0x460] sm:$0xff]
        %v409 = vld [vmem:[#allocation2 + $0x468] sm:$0xff]
        %v410 = vld [vmem:[#allocation2 + $0x470] sm:$0xff]
        %v411 = vld [vmem:[#allocation2 + $0x478] sm:$0xff]
        %v412 = vld [vmem:[#allocation2 + $0x480] sm:$0xff]
        %v413 = vld [vmem:[#allocation2 + $0x488] sm:$0xff]
        %v414 = vld [vmem:[#allocation2 + $0x490] sm:$0xff]
        %v415 = vld [vmem:[#allocation2 + $0x498] sm:$0xff]
        %v416 = vld [vmem:[#allocation2 + $0x4a0] sm:$0xff]
        %v417 = vld [vmem:[#allocation2 + $0x4a8] sm:$0xff]
        %v418 = vld [vmem:[#allocation2 + $0x4b0] sm:$0xff]
        %v419 = vld [vmem:[#allocation2 + $0x4b8] sm:$0xff]
        %v420 = vld [vmem:[#allocation2 + $0x4c0] sm:$0xff]
        %v421 = vld [vmem:[#allocation2 + $0x4c8] sm:$0xff]
        %v422 = vld [vmem:[#allocation2 + $0x4d0] sm:$0xff]
        %v423 = vld [vmem:[#allocation2 + $0x4d8] sm:$0xff]
        %v424 = vld [vmem:[#allocation2 + $0x4e0] sm:$0xff]
        %v425 = vld [vmem:[#allocation2 + $0x4e8] sm:$0xff]
        %v426 = vld [vmem:[#allocation2 + $0x4f0] sm:$0xff]
        %v427 = vld [vmem:[#allocation2 + $0x4f8] sm:$0xff]
        %v428 = vld [vmem:[#allocation2 + $0x500] sm:$0xff]
        %v429 = vld [vmem:[#allocation2 + $0x508] sm:$0xff]
        %v430 = vld [vmem:[#allocation2 + $0x510] sm:$0xff]
        %v431 = vld [vmem:[#allocation2 + $0x518] sm:$0xff]
        %v432 = vld [vmem:[#allocation2 + $0x520] sm:$0xff]
        %v433 = vld [vmem:[#allocation2 + $0x528] sm:$0xff]
        %v434 = vld [vmem:[#allocation2 + $0x530] sm:$0xff]
        %v435 = vld [vmem:[#allocation2 + $0x538] sm:$0xff]
        %v436 = vld [vmem:[#allocation2 + $0x540] sm:$0xff]
        %v437 = vld [vmem:[#allocation2 + $0x548] sm:$0xff]
        %v438 = vld [vmem:[#allocation2 + $0x550] sm:$0xff]
        %v439 = vld [vmem:[#allocation2 + $0x558] sm:$0xff]
        %v440 = vld [vmem:[#allocation2 + $0x560] sm:$0xff]
        %v441 = vld [vmem:[#allocation2 + $0x568] sm:$0xff]
        %v442 = vld [vmem:[#allocation2 + $0x570] sm:$0xff]
        %v443 = vld [vmem:[#allocation2 + $0x578] sm:$0xff]
        %v444 = vld [vmem:[#allocation2 + $0x580] sm:$0xff]
        %v445 = vld [vmem:[#allocation2 + $0x588] sm:$0xff]
        %v446 = vld [vmem:[#allocation2 + $0x590] sm:$0xff]
        %v447 = vld [vmem:[#allocation2 + $0x598] sm:$0xff]
        %v448 = vld [vmem:[#allocation2 + $0x5a0] sm:$0xff]
        %v449 = vld [vmem:[#allocation2 + $0x5a8] sm:$0xff]
        %v450 = vld [vmem:[#allocation2 + $0x5b0] sm:$0xff]
        %v451 = vld [vmem:[#allocation2 + $0x5b8] sm:$0xff]
        %v452 = vld [vmem:[#allocation2 + $0x5c0] sm:$0xff]
        %v453 = vld [vmem:[#allocation2 + $0x5c8] sm:$0xff]
        %v454 = vld [vmem:[#allocation2 + $0x5d0] sm:$0xff]
        %v455 = vld [vmem:[#allocation2 + $0x5d8] sm:$0xff]
        %v456 = vld [vmem:[#allocation2 + $0x5e0] sm:$0xff]
        %v457 = vld [vmem:[#allocation2 + $0x5e8] sm:$0xff]
        %v458 = vld [vmem:[#allocation2 + $0x5f0] sm:$0xff]
        %v459 = vld [vmem:[#allocation2 + $0x5f8] sm:$0xff]
        %v460 = vld [vmem:[#allocation2 + $0x600] sm:$0xff]
        %v461 = vld [vmem:[#allocation2 + $0x608] sm:$0xff]
        %v462 = vld [vmem:[#allocation2 + $0x610] sm:$0xff]
        %v463 = vld [vmem:[#allocation2 + $0x618] sm:$0xff]
        %v464 = vld [vmem:[#allocation2 + $0x620] sm:$0xff]
        %v465 = vld [vmem:[#allocation2 + $0x628] sm:$0xff]
        %v466 = vld [vmem:[#allocation2 + $0x630] sm:$0xff]
        %v467 = vld [vmem:[#allocation2 + $0x638] sm:$0xff]
        %v468 = vld [vmem:[#allocation2 + $0x640] sm:$0xff]
        %v469 = vld [vmem:[#allocation2 + $0x648] sm:$0xff]
        %v470 = vld [vmem:[#allocation2 + $0x650] sm:$0xff]
        %v471 = vld [vmem:[#allocation2 + $0x658] sm:$0xff]
        %v472 = vld [vmem:[#allocation2 + $0x660] sm:$0xff]
        %v473 = vld [vmem:[#allocation2 + $0x668] sm:$0xff]
        %v474 = vld [vmem:[#allocation2 + $0x670] sm:$0xff]
        %v475 = vld [vmem:[#allocation2 + $0x678] sm:$0xff]
        %v476 = vld [vmem:[#allocation2 + $0x680] sm:$0xff]
        %v477 = vld [vmem:[#allocation2 + $0x688] sm:$0xff]
        %v478 = vld [vmem:[#allocation2 + $0x690] sm:$0xff]
        %v479 = vld [vmem:[#allocation2 + $0x698] sm:$0xff]
        %v480 = vld [vmem:[#allocation2 + $0x6a0] sm:$0xff]
        %v481 = vld [vmem:[#allocation2 + $0x6a8] sm:$0xff]
        %v482 = vld [vmem:[#allocation2 + $0x6b0] sm:$0xff]
        %v483 = vld [vmem:[#allocation2 + $0x6b8] sm:$0xff]
        %v484 = vld [vmem:[#allocation2 + $0x6c0] sm:$0xff]
        %v485 = vld [vmem:[#allocation2 + $0x6c8] sm:$0xff]
        %v486 = vld [vmem:[#allocation2 + $0x6d0] sm:$0xff]
        %v487 = vld [vmem:[#allocation2 + $0x6d8] sm:$0xff]
        %v488 = vld [vmem:[#allocation2 + $0x6e0] sm:$0xff]
        %v489 = vld [vmem:[#allocation2 + $0x6e8] sm:$0xff]
        %v490 = vld [vmem:[#allocation2 + $0x6f0] sm:$0xff]
        %v491 = vld [vmem:[#allocation2 + $0x6f8] sm:$0xff]
        %v492 = vld [vmem:[#allocation2 + $0x700] sm:$0xff]
        %v493 = vld [vmem:[#allocation2 + $0x708] sm:$0xff]
        %v494 = vld [vmem:[#allocation2 + $0x710] sm:$0xff]
        %v495 = vld [vmem:[#allocation2 + $0x718] sm:$0xff]
        %v496 = vld [vmem:[#allocation2 + $0x720] sm:$0xff]
        %v497 = vld [vmem:[#allocation2 + $0x728] sm:$0xff]
        %v498 = vld [vmem:[#allocation2 + $0x730] sm:$0xff]
        %v499 = vld [vmem:[#allocation2 + $0x738] sm:$0xff]
        %v500 = vld [vmem:[#allocation2 + $0x740] sm:$0xff]
        %v501 = vld [vmem:[#allocation2 + $0x748] sm:$0xff]
        %v502 = vld [vmem:[#allocation2 + $0x750] sm:$0xff]
        %v503 = vld [vmem:[#allocation2 + $0x758] sm:$0xff]
        %v504 = vld [vmem:[#allocation2 + $0x760] sm:$0xff]
        %v505 = vld [vmem:[#allocation2 + $0x768] sm:$0xff]
        %v506 = vld [vmem:[#allocation2 + $0x770] sm:$0xff]
        %v507 = vld [vmem:[#allocation2 + $0x778] sm:$0xff]
        %v508 = vld [vmem:[#allocation2 + $0x780] sm:$0xff]
        %v509 = vld [vmem:[#allocation2 + $0x788] sm:$0xff]
        %v510 = vld [vmem:[#allocation2 + $0x790] sm:$0xff]
        %v511 = vld [vmem:[#allocation2 + $0x798] sm:$0xff]
        %v512 = vld [vmem:[#allocation2 + $0x7a0] sm:$0xff]
        %v513 = vld [vmem:[#allocation2 + $0x7a8] sm:$0xff]
        %v514 = vld [vmem:[#allocation2 + $0x7b0] sm:$0xff]
        %v515 = vld [vmem:[#allocation2 + $0x7b8] sm:$0xff]
        %v516 = vld [vmem:[#allocation2 + $0x7c0] sm:$0xff]
        %v517 = vld [vmem:[#allocation2 + $0x7c8] sm:$0xff]
        %v518 = vld [vmem:[#allocation2 + $0x7d0] sm:$0xff]
        %v519 = vld [vmem:[#allocation2 + $0x7d8] sm:$0xff]
        %v520 = vld [vmem:[#allocation2 + $0x7e0] sm:$0xff]
        %v521 = vld [vmem:[#allocation2 + $0x7e8] sm:$0xff]
        %v522 = vld [vmem:[#allocation2 + $0x7f0] sm:$0xff]
        %v523 = vld [vmem:[#allocation2 + $0x7f8] sm:$0xff]
        %525 = vst [vmem:[#allocation1] ss:$2 sm:$0xff] %v267
        %v526 = vld.sshfl [vmem:[#allocation1] sm:$0xff pattern:$0x75316420]
        %v527 = vld.sshfl [vmem:[#allocation1 + $0x8] sm:$0xff pattern:$0x75316420]
        %530 = vmatpush.msra.mxu0 %v388
        %531 = vmatpush.msra.mxu0 %v380
        %532 = vmatpush.msra.mxu0 %v372
        %533 = vmatpush.msra.mxu0 %v364
        %534 = vmatpush.msra.mxu0 %v356
        %535 = vmatpush.msra.mxu0 %v348
        %536 = vmatpush.msra.mxu0 %v340
        %537 = vmatpush.msra.mxu0 %v332
        %538 = vmatpush.msra.mxu0 %v324
        %539 = vmatpush.msra.mxu0 %v316
        %540 = vmatpush.msra.mxu0 %v308
        %541 = vmatpush.msra.mxu0 %v300
        %542 = vmatpush.msra.mxu0 %v292
        %543 = vmatpush.msra.mxu0 %v284
        %544 = vmatpush.msra.mxu0 %v276
        %545 = vmatpush.msra.mxu0 %v268
        %546 = vmatmul.f32.gmra.mxu0 %v526
        %v547 = vpop.f32.mrf.mxu0
        %v548 = vadd.f32 0.0, %v547
        %549 = vdwg.mxu0
        %550 = vmatpush.msra.mxu0 %v516
        %551 = vmatpush.msra.mxu0 %v508
        %552 = vmatpush.msra.mxu0 %v500
        %553 = vmatpush.msra.mxu0 %v492
        %554 = vmatpush.msra.mxu0 %v484
        %555 = vmatpush.msra.mxu0 %v476
        %556 = vmatpush.msra.mxu0 %v468
        %557 = vmatpush.msra.mxu0 %v460
        %558 = vmatpush.msra.mxu0 %v452
        %559 = vmatpush.msra.mxu0 %v444
        %560 = vmatpush.msra.mxu0 %v436
        %561 = vmatpush.msra.mxu0 %v428
        %562 = vmatpush.msra.mxu0 %v420
        %563 = vmatpush.msra.mxu0 %v412
        %564 = vmatpush.msra.mxu0 %v404
        %565 = vmatpush.msra.mxu0 %v396
        %566 = vmatmul.f32.gmra.mxu0 %v527
        %v567 = vpop.f32.mrf.mxu0
        %v568 = vadd.f32 %v548, %v567
        %569 = vdwg.mxu0
        %570 = vmatpush.msra.mxu0 %v389
        %571 = vmatpush.msra.mxu0 %v381
        %572 = vmatpush.msra.mxu0 %v373
        %573 = vmatpush.msra.mxu0 %v365
        %574 = vmatpush.msra.mxu0 %v357
        %575 = vmatpush.msra.mxu0 %v349
        %576 = vmatpush.msra.mxu0 %v341
        %577 = vmatpush.msra.mxu0 %v333
        %578 = vmatpush.msra.mxu0 %v325
        %579 = vmatpush.msra.mxu0 %v317
        %580 = vmatpush.msra.mxu0 %v309
        %581 = vmatpush.msra.mxu0 %v301
        %582 = vmatpush.msra.mxu0 %v293
        %583 = vmatpush.msra.mxu0 %v285
        %584 = vmatpush.msra.mxu0 %v277
        %585 = vmatpush.msra.mxu0 %v269
        %586 = vmatmul.f32.gmra.mxu0 %v526
        %v587 = vpop.f32.mrf.mxu0
        %v588 = vadd.f32 0.0, %v587
        %589 = vdwg.mxu0
        %590 = vmatpush.msra.mxu0 %v517
        %591 = vmatpush.msra.mxu0 %v509
        %592 = vmatpush.msra.mxu0 %v501
        %593 = vmatpush.msra.mxu0 %v493
        %594 = vmatpush.msra.mxu0 %v485
        %595 = vmatpush.msra.mxu0 %v477
        %596 = vmatpush.msra.mxu0 %v469
        %597 = vmatpush.msra.mxu0 %v461
        %598 = vmatpush.msra.mxu0 %v453
        %599 = vmatpush.msra.mxu0 %v445
        %600 = vmatpush.msra.mxu0 %v437
        %601 = vmatpush.msra.mxu0 %v429
        %602 = vmatpush.msra.mxu0 %v421
        %603 = vmatpush.msra.mxu0 %v413
        %604 = vmatpush.msra.mxu0 %v405
        %605 = vmatpush.msra.mxu0 %v397
        %606 = vmatmul.f32.gmra.mxu0 %v527
        %v607 = vpop.f32.mrf.mxu0
        %v608 = vadd.f32 %v588, %v607
        %609 = vdwg.mxu0
        %610 = vmatpush.msra.mxu0 %v390
        %611 = vmatpush.msra.mxu0 %v382
        %612 = vmatpush.msra.mxu0 %v374
        %613 = vmatpush.msra.mxu0 %v366
        %614 = vmatpush.msra.mxu0 %v358
        %615 = vmatpush.msra.mxu0 %v350
        %616 = vmatpush.msra.mxu0 %v342
        %617 = vmatpush.msra.mxu0 %v334
        %618 = vmatpush.msra.mxu0 %v326
        %619 = vmatpush.msra.mxu0 %v318
        %620 = vmatpush.msra.mxu0 %v310
        %621 = vmatpush.msra.mxu0 %v302
        %622 = vmatpush.msra.mxu0 %v294
        %623 = vmatpush.msra.mxu0 %v286
        %624 = vmatpush.msra.mxu0 %v278
        %625 = vmatpush.msra.mxu0 %v270
        %626 = vmatmul.f32.gmra.mxu0 %v526
        %v627 = vpop.f32.mrf.mxu0
        %v628 = vadd.f32 0.0, %v627
        %629 = vdwg.mxu0
        %630 = vmatpush.msra.mxu0 %v518
        %631 = vmatpush.msra.mxu0 %v510
        %632 = vmatpush.msra.mxu0 %v502
        %633 = vmatpush.msra.mxu0 %v494
        %634 = vmatpush.msra.mxu0 %v486
        %635 = vmatpush.msra.mxu0 %v478
        %636 = vmatpush.msra.mxu0 %v470
        %637 = vmatpush.msra.mxu0 %v462
        %638 = vmatpush.msra.mxu0 %v454
        %639 = vmatpush.msra.mxu0 %v446
        %640 = vmatpush.msra.mxu0 %v438
        %641 = vmatpush.msra.mxu0 %v430
        %642 = vmatpush.msra.mxu0 %v422
        %643 = vmatpush.msra.mxu0 %v414
        %644 = vmatpush.msra.mxu0 %v406
        %645 = vmatpush.msra.mxu0 %v398
        %646 = vmatmul.f32.gmra.mxu0 %v527
        %v647 = vpop.f32.mrf.mxu0
        %v648 = vadd.f32 %v628, %v647
        %649 = vdwg.mxu0
        %650 = vmatpush.msra.mxu0 %v391
        %651 = vmatpush.msra.mxu0 %v383
        %652 = vmatpush.msra.mxu0 %v375
        %653 = vmatpush.msra.mxu0 %v367
        %654 = vmatpush.msra.mxu0 %v359
        %655 = vmatpush.msra.mxu0 %v351
        %656 = vmatpush.msra.mxu0 %v343
        %657 = vmatpush.msra.mxu0 %v335
        %658 = vmatpush.msra.mxu0 %v327
        %659 = vmatpush.msra.mxu0 %v319
        %660 = vmatpush.msra.mxu0 %v311
        %661 = vmatpush.msra.mxu0 %v303
        %662 = vmatpush.msra.mxu0 %v295
        %663 = vmatpush.msra.mxu0 %v287
        %664 = vmatpush.msra.mxu0 %v279
        %665 = vmatpush.msra.mxu0 %v271
        %666 = vmatmul.f32.gmra.mxu0 %v526
        %v667 = vpop.f32.mrf.mxu0
        %v668 = vadd.f32 0.0, %v667
        %669 = vdwg.mxu0
        %670 = vmatpush.msra.mxu0 %v519
        %671 = vmatpush.msra.mxu0 %v511
        %672 = vmatpush.msra.mxu0 %v503
        %673 = vmatpush.msra.mxu0 %v495
        %674 = vmatpush.msra.mxu0 %v487
        %675 = vmatpush.msra.mxu0 %v479
        %676 = vmatpush.msra.mxu0 %v471
        %677 = vmatpush.msra.mxu0 %v463
        %678 = vmatpush.msra.mxu0 %v455
        %679 = vmatpush.msra.mxu0 %v447
        %680 = vmatpush.msra.mxu0 %v439
        %681 = vmatpush.msra.mxu0 %v431
        %682 = vmatpush.msra.mxu0 %v423
        %683 = vmatpush.msra.mxu0 %v415
        %684 = vmatpush.msra.mxu0 %v407
        %685 = vmatpush.msra.mxu0 %v399
        %686 = vmatmul.f32.gmra.mxu0 %v527
        %v687 = vpop.f32.mrf.mxu0
        %v688 = vadd.f32 %v668, %v687
        %689 = vdwg.mxu0
        %690 = vmatpush.msra.mxu0 %v392
        %691 = vmatpush.msra.mxu0 %v384
        %692 = vmatpush.msra.mxu0 %v376
        %693 = vmatpush.msra.mxu0 %v368
        %694 = vmatpush.msra.mxu0 %v360
        %695 = vmatpush.msra.mxu0 %v352
        %696 = vmatpush.msra.mxu0 %v344
        %697 = vmatpush.msra.mxu0 %v336
        %698 = vmatpush.msra.mxu0 %v328
        %699 = vmatpush.msra.mxu0 %v320
        %700 = vmatpush.msra.mxu0 %v312
        %701 = vmatpush.msra.mxu0 %v304
        %702 = vmatpush.msra.mxu0 %v296
        %703 = vmatpush.msra.mxu0 %v288
        %704 = vmatpush.msra.mxu0 %v280
        %705 = vmatpush.msra.mxu0 %v272
        %706 = vmatmul.f32.gmra.mxu0 %v526
        %v707 = vpop.f32.mrf.mxu0
        %v708 = vadd.f32 0.0, %v707
        %709 = vdwg.mxu0
        %710 = vmatpush.msra.mxu0 %v520
        %711 = vmatpush.msra.mxu0 %v512
        %712 = vmatpush.msra.mxu0 %v504
        %713 = vmatpush.msra.mxu0 %v496
        %714 = vmatpush.msra.mxu0 %v488
        %715 = vmatpush.msra.mxu0 %v480
        %716 = vmatpush.msra.mxu0 %v472
        %717 = vmatpush.msra.mxu0 %v464
        %718 = vmatpush.msra.mxu0 %v456
        %719 = vmatpush.msra.mxu0 %v448
        %720 = vmatpush.msra.mxu0 %v440
        %721 = vmatpush.msra.mxu0 %v432
        %722 = vmatpush.msra.mxu0 %v424
        %723 = vmatpush.msra.mxu0 %v416
        %724 = vmatpush.msra.mxu0 %v408
        %725 = vmatpush.msra.mxu0 %v400
        %726 = vmatmul.f32.gmra.mxu0 %v527
        %v727 = vpop.f32.mrf.mxu0
        %v728 = vadd.f32 %v708, %v727
        %729 = vdwg.mxu0
        %730 = vmatpush.msra.mxu0 %v393
        %731 = vmatpush.msra.mxu0 %v385
        %732 = vmatpush.msra.mxu0 %v377
        %733 = vmatpush.msra.mxu0 %v369
        %734 = vmatpush.msra.mxu0 %v361
        %735 = vmatpush.msra.mxu0 %v353
        %736 = vmatpush.msra.mxu0 %v345
        %737 = vmatpush.msra.mxu0 %v337
        %738 = vmatpush.msra.mxu0 %v329
        %739 = vmatpush.msra.mxu0 %v321
        %740 = vmatpush.msra.mxu0 %v313
        %741 = vmatpush.msra.mxu0 %v305
        %742 = vmatpush.msra.mxu0 %v297
        %743 = vmatpush.msra.mxu0 %v289
        %744 = vmatpush.msra.mxu0 %v281
        %745 = vmatpush.msra.mxu0 %v273
        %746 = vmatmul.f32.gmra.mxu0 %v526
        %v747 = vpop.f32.mrf.mxu0
        %v748 = vadd.f32 0.0, %v747
        %749 = vdwg.mxu0
        %750 = vmatpush.msra.mxu0 %v521
        %751 = vmatpush.msra.mxu0 %v513
        %752 = vmatpush.msra.mxu0 %v505
        %753 = vmatpush.msra.mxu0 %v497
        %754 = vmatpush.msra.mxu0 %v489
        %755 = vmatpush.msra.mxu0 %v481
        %756 = vmatpush.msra.mxu0 %v473
        %757 = vmatpush.msra.mxu0 %v465
        %758 = vmatpush.msra.mxu0 %v457
        %759 = vmatpush.msra.mxu0 %v449
        %760 = vmatpush.msra.mxu0 %v441
        %761 = vmatpush.msra.mxu0 %v433
        %762 = vmatpush.msra.mxu0 %v425
        %763 = vmatpush.msra.mxu0 %v417
        %764 = vmatpush.msra.mxu0 %v409
        %765 = vmatpush.msra.mxu0 %v401
        %766 = vmatmul.f32.gmra.mxu0 %v527
        %v767 = vpop.f32.mrf.mxu0
        %v768 = vadd.f32 %v748, %v767
        %769 = vdwg.mxu0
        %770 = vmatpush.msra.mxu0 %v394
        %771 = vmatpush.msra.mxu0 %v386
        %772 = vmatpush.msra.mxu0 %v378
        %773 = vmatpush.msra.mxu0 %v370
        %774 = vmatpush.msra.mxu0 %v362
        %775 = vmatpush.msra.mxu0 %v354
        %776 = vmatpush.msra.mxu0 %v346
        %777 = vmatpush.msra.mxu0 %v338
        %778 = vmatpush.msra.mxu0 %v330
        %779 = vmatpush.msra.mxu0 %v322
        %780 = vmatpush.msra.mxu0 %v314
        %781 = vmatpush.msra.mxu0 %v306
        %782 = vmatpush.msra.mxu0 %v298
        %783 = vmatpush.msra.mxu0 %v290
        %784 = vmatpush.msra.mxu0 %v282
        %785 = vmatpush.msra.mxu0 %v274
        %786 = vmatmul.f32.gmra.mxu0 %v526
        %v787 = vpop.f32.mrf.mxu0
        %v788 = vadd.f32 0.0, %v787
        %789 = vdwg.mxu0
        %790 = vmatpush.msra.mxu0 %v522
        %791 = vmatpush.msra.mxu0 %v514
        %792 = vmatpush.msra.mxu0 %v506
        %793 = vmatpush.msra.mxu0 %v498
        %794 = vmatpush.msra.mxu0 %v490
        %795 = vmatpush.msra.mxu0 %v482
        %796 = vmatpush.msra.mxu0 %v474
        %797 = vmatpush.msra.mxu0 %v466
        %798 = vmatpush.msra.mxu0 %v458
        %799 = vmatpush.msra.mxu0 %v450
        %800 = vmatpush.msra.mxu0 %v442
        %801 = vmatpush.msra.mxu0 %v434
        %802 = vmatpush.msra.mxu0 %v426
        %803 = vmatpush.msra.mxu0 %v418
        %804 = vmatpush.msra.mxu0 %v410
        %805 = vmatpush.msra.mxu0 %v402
        %806 = vmatmul.f32.gmra.mxu0 %v527
        %v807 = vpop.f32.mrf.mxu0
        %v808 = vadd.f32 %v788, %v807
        %809 = vdwg.mxu0
        %810 = vmatpush.msra.mxu0 %v395
        %811 = vmatpush.msra.mxu0 %v387
        %812 = vmatpush.msra.mxu0 %v379
        %813 = vmatpush.msra.mxu0 %v371
        %814 = vmatpush.msra.mxu0 %v363
        %815 = vmatpush.msra.mxu0 %v355
        %816 = vmatpush.msra.mxu0 %v347
        %817 = vmatpush.msra.mxu0 %v339
        %818 = vmatpush.msra.mxu0 %v331
        %819 = vmatpush.msra.mxu0 %v323
        %820 = vmatpush.msra.mxu0 %v315
        %821 = vmatpush.msra.mxu0 %v307
        %822 = vmatpush.msra.mxu0 %v299
        %823 = vmatpush.msra.mxu0 %v291
        %824 = vmatpush.msra.mxu0 %v283
        %825 = vmatpush.msra.mxu0 %v275
        %826 = vmatmul.f32.gmra.mxu0 %v526
        %v827 = vpop.f32.mrf.mxu0
        %v828 = vadd.f32 0.0, %v827
        %829 = vdwg.mxu0
        %830 = vmatpush.msra.mxu0 %v523
        %831 = vmatpush.msra.mxu0 %v515
        %832 = vmatpush.msra.mxu0 %v507
        %833 = vmatpush.msra.mxu0 %v499
        %834 = vmatpush.msra.mxu0 %v491
        %835 = vmatpush.msra.mxu0 %v483
        %836 = vmatpush.msra.mxu0 %v475
        %837 = vmatpush.msra.mxu0 %v467
        %838 = vmatpush.msra.mxu0 %v459
        %839 = vmatpush.msra.mxu0 %v451
        %840 = vmatpush.msra.mxu0 %v443
        %841 = vmatpush.msra.mxu0 %v435
        %842 = vmatpush.msra.mxu0 %v427
        %843 = vmatpush.msra.mxu0 %v419
        %844 = vmatpush.msra.mxu0 %v411
        %845 = vmatpush.msra.mxu0 %v403
        %846 = vmatmul.f32.gmra.mxu0 %v527
        %v847 = vpop.f32.mrf.mxu0
        %v848 = vadd.f32 %v828, %v847
        %849 = vdwg.mxu0
        %858 = vrot.lane.b32.xlu0 %v568, 33
        %v859 = vpop.permute.xlu0 %858
        %860 = vrot.lane.b32.xlu0 %v608, 33
        %v861 = vpop.permute.xlu0 %860
        %862 = vrot.lane.b32.xlu0 %v648, 33
        %v863 = vpop.permute.xlu0 %862
        %864 = vrot.lane.b32.xlu0 %v688, 33
        %v865 = vpop.permute.xlu0 %864
        %866 = vrot.lane.b32.xlu0 %v728, 33
        %v867 = vpop.permute.xlu0 %866
        %868 = vrot.lane.b32.xlu0 %v768, 33
        %v869 = vpop.permute.xlu0 %868
        %870 = vrot.lane.b32.xlu0 %v808, 33
        %v871 = vpop.permute.xlu0 %870
        %872 = vrot.lane.b32.xlu0 %v848, 33
        %v873 = vpop.permute.xlu0 %872
        %vm874 = vcmask 269312
        %v875 = vsel %vm874, %v859, %v861
        %v876 = vsel %vm874, %v861, %v863
        %v877 = vsel %vm874, %v863, %v865
        %v878 = vsel %vm874, %v865, %v867
        %v879 = vsel %vm874, %v867, %v869
        %v880 = vsel %vm874, %v869, %v871
        %v881 = vsel %vm874, %v871, %v873
        %v890 = vsel %vm874, 0.0, %v859
        %v891 = vld [vmem:[%s3] ss:$4 sm:$0xff]
        %v893 = vperm.slane %v891, 0
        %v894 = vperm.slane %v891, 1
        %v895 = vperm.slane %v891, 2
        %v896 = vperm.slane %v891, 3
        %v897 = vperm.slane %v891, 4
        %v898 = vperm.slane %v891, 5
        %v899 = vperm.slane %v891, 6
        %v900 = vperm.slane %v891, 7
        %v909 = vmul.f32 %v890, %v893
        %v910 = vmul.f32 %v875, %v894
        %v911 = vmul.f32 %v876, %v895
        %v912 = vmul.f32 %v877, %v896
        %v913 = vmul.f32 %v878, %v897
        %v914 = vmul.f32 %v879, %v898
        %v915 = vmul.f32 %v880, %v899
        %v916 = vmul.f32 %v881, %v900
        %v917 = vld [vmem:[%s2] sm:$0xff]
        %918 = vrot.lane.b32.xlu0 %v568, 32
        %v919 = vpop.permute.xlu0 %918
        %920 = vrot.lane.b32.xlu0 %v608, 32
        %v921 = vpop.permute.xlu0 %920
        %922 = vrot.lane.b32.xlu0 %v648, 32
        %v923 = vpop.permute.xlu0 %922
        %924 = vrot.lane.b32.xlu0 %v688, 32
        %v925 = vpop.permute.xlu0 %924
        %926 = vrot.lane.b32.xlu0 %v728, 32
        %v927 = vpop.permute.xlu0 %926
        %928 = vrot.lane.b32.xlu0 %v768, 32
        %v929 = vpop.permute.xlu0 %928
        %930 = vrot.lane.b32.xlu0 %v808, 32
        %v931 = vpop.permute.xlu0 %930
        %932 = vrot.lane.b32.xlu0 %v848, 32
        %v933 = vpop.permute.xlu0 %932
        %vm934 = vcmask 261120
        %v935 = vsel %vm934, %v919, %v921
        %v936 = vsel %vm934, %v921, %v923
        %v937 = vsel %vm934, %v923, %v925
        %v938 = vsel %vm934, %v925, %v927
        %v939 = vsel %vm934, %v927, %v929
        %v940 = vsel %vm934, %v929, %v931
        %v941 = vsel %vm934, %v931, %v933
        %v943 = vsel %vm934, 0.0, %v919
        %s944 = scalar_lea.vmem %s2, 8
        %v945 = vld [vmem:[%s944] sm:$0xff]
        %vm946 = vcmask 31744
        %v948 = vsel %vm946, %v945, 0
        %vm950 = vcmask 1043456
        %v952 = vsel %vm950, %v943, 0
        %v954 = vsel %vm950, %v935, 0
        %v956 = vsel %vm950, %v936, 0
        %v958 = vsel %vm950, %v937, 0
        %v960 = vsel %vm950, %v938, 0
        %v962 = vsel %vm950, %v939, 0
        %v964 = vsel %vm950, %v940, 0
        %v966 = vsel %vm950, %v941, 0
        %968 = vmatpush.msra.mxu0 0.0
        %969 = vmatpush.msra.mxu0 0.0
        %970 = vmatpush.msra.mxu0 0.0
        %971 = vmatpush.msra.mxu0 0.0
        %972 = vmatpush.msra.mxu0 0.0
        %973 = vmatpush.msra.mxu0 0.0
        %974 = vmatpush.msra.mxu0 0.0
        %975 = vmatpush.msra.mxu0 0.0
        %976 = vmatpush.msra.mxu0 0.0
        %977 = vmatpush.msra.mxu0 0.0
        %978 = vmatpush.msra.mxu0 0.0
        %979 = vmatpush.msra.mxu0 0.0
        %980 = vmatpush.msra.mxu0 0.0
        %981 = vmatpush.msra.mxu0 0.0
        %982 = vmatpush.msra.mxu0 0.0
        %983 = vmatpush.msra.mxu0 %v952
        %984 = vmatmul.f32.gmra.mxu0 %v948
        %v985 = vpop.f32.mrf.mxu0
        %v986 = vadd.f32 0.0, %v985
        %987 = vdwg.mxu0
        %988 = vmatpush.msra.mxu0 0.0
        %989 = vmatpush.msra.mxu0 0.0
        %990 = vmatpush.msra.mxu0 0.0
        %991 = vmatpush.msra.mxu0 0.0
        %992 = vmatpush.msra.mxu0 0.0
        %993 = vmatpush.msra.mxu0 0.0
        %994 = vmatpush.msra.mxu0 0.0
        %995 = vmatpush.msra.mxu0 0.0
        %996 = vmatpush.msra.mxu0 0.0
        %997 = vmatpush.msra.mxu0 0.0
        %998 = vmatpush.msra.mxu0 0.0
        %999 = vmatpush.msra.mxu0 0.0
        %1000 = vmatpush.msra.mxu0 0.0
        %1001 = vmatpush.msra.mxu0 0.0
        %1002 = vmatpush.msra.mxu0 0.0
        %1003 = vmatpush.msra.mxu0 %v954
        %1004 = vmatmul.f32.gmra.mxu0 %v948
        %v1005 = vpop.f32.mrf.mxu0
        %v1006 = vadd.f32 0.0, %v1005
        %1007 = vdwg.mxu0
        %1008 = vmatpush.msra.mxu0 0.0
        %1009 = vmatpush.msra.mxu0 0.0
        %1010 = vmatpush.msra.mxu0 0.0
        %1011 = vmatpush.msra.mxu0 0.0
        %1012 = vmatpush.msra.mxu0 0.0
        %1013 = vmatpush.msra.mxu0 0.0
        %1014 = vmatpush.msra.mxu0 0.0
        %1015 = vmatpush.msra.mxu0 0.0
        %1016 = vmatpush.msra.mxu0 0.0
        %1017 = vmatpush.msra.mxu0 0.0
        %1018 = vmatpush.msra.mxu0 0.0
        %1019 = vmatpush.msra.mxu0 0.0
        %1020 = vmatpush.msra.mxu0 0.0
        %1021 = vmatpush.msra.mxu0 0.0
        %1022 = vmatpush.msra.mxu0 0.0
        %1023 = vmatpush.msra.mxu0 %v956
        %1024 = vmatmul.f32.gmra.mxu0 %v948
        %v1025 = vpop.f32.mrf.mxu0
        %v1026 = vadd.f32 0.0, %v1025
        %1027 = vdwg.mxu0
        %1028 = vmatpush.msra.mxu0 0.0
        %1029 = vmatpush.msra.mxu0 0.0
        %1030 = vmatpush.msra.mxu0 0.0
        %1031 = vmatpush.msra.mxu0 0.0
        %1032 = vmatpush.msra.mxu0 0.0
        %1033 = vmatpush.msra.mxu0 0.0
        %1034 = vmatpush.msra.mxu0 0.0
        %1035 = vmatpush.msra.mxu0 0.0
        %1036 = vmatpush.msra.mxu0 0.0
        %1037 = vmatpush.msra.mxu0 0.0
        %1038 = vmatpush.msra.mxu0 0.0
        %1039 = vmatpush.msra.mxu0 0.0
        %1040 = vmatpush.msra.mxu0 0.0
        %1041 = vmatpush.msra.mxu0 0.0
        %1042 = vmatpush.msra.mxu0 0.0
        %1043 = vmatpush.msra.mxu0 %v958
        %1044 = vmatmul.f32.gmra.mxu0 %v948
        %v1045 = vpop.f32.mrf.mxu0
        %v1046 = vadd.f32 0.0, %v1045
        %1047 = vdwg.mxu0
        %1048 = vmatpush.msra.mxu0 0.0
        %1049 = vmatpush.msra.mxu0 0.0
        %1050 = vmatpush.msra.mxu0 0.0
        %1051 = vmatpush.msra.mxu0 0.0
        %1052 = vmatpush.msra.mxu0 0.0
        %1053 = vmatpush.msra.mxu0 0.0
        %1054 = vmatpush.msra.mxu0 0.0
        %1055 = vmatpush.msra.mxu0 0.0
        %1056 = vmatpush.msra.mxu0 0.0
        %1057 = vmatpush.msra.mxu0 0.0
        %1058 = vmatpush.msra.mxu0 0.0
        %1059 = vmatpush.msra.mxu0 0.0
        %1060 = vmatpush.msra.mxu0 0.0
        %1061 = vmatpush.msra.mxu0 0.0
        %1062 = vmatpush.msra.mxu0 0.0
        %1063 = vmatpush.msra.mxu0 %v960
        %1064 = vmatmul.f32.gmra.mxu0 %v948
        %v1065 = vpop.f32.mrf.mxu0
        %v1066 = vadd.f32 0.0, %v1065
        %1067 = vdwg.mxu0
        %1068 = vmatpush.msra.mxu0 0.0
        %1069 = vmatpush.msra.mxu0 0.0
        %1070 = vmatpush.msra.mxu0 0.0
        %1071 = vmatpush.msra.mxu0 0.0
        %1072 = vmatpush.msra.mxu0 0.0
        %1073 = vmatpush.msra.mxu0 0.0
        %1074 = vmatpush.msra.mxu0 0.0
        %1075 = vmatpush.msra.mxu0 0.0
        %1076 = vmatpush.msra.mxu0 0.0
        %1077 = vmatpush.msra.mxu0 0.0
        %1078 = vmatpush.msra.mxu0 0.0
        %1079 = vmatpush.msra.mxu0 0.0
        %1080 = vmatpush.msra.mxu0 0.0
        %1081 = vmatpush.msra.mxu0 0.0
        %1082 = vmatpush.msra.mxu0 0.0
        %1083 = vmatpush.msra.mxu0 %v962
        %1084 = vmatmul.f32.gmra.mxu0 %v948
        %v1085 = vpop.f32.mrf.mxu0
        %v1086 = vadd.f32 0.0, %v1085
        %1087 = vdwg.mxu0
        %1088 = vmatpush.msra.mxu0 0.0
        %1089 = vmatpush.msra.mxu0 0.0
        %1090 = vmatpush.msra.mxu0 0.0
        %1091 = vmatpush.msra.mxu0 0.0
        %1092 = vmatpush.msra.mxu0 0.0
        %1093 = vmatpush.msra.mxu0 0.0
        %1094 = vmatpush.msra.mxu0 0.0
        %1095 = vmatpush.msra.mxu0 0.0
        %1096 = vmatpush.msra.mxu0 0.0
        %1097 = vmatpush.msra.mxu0 0.0
        %1098 = vmatpush.msra.mxu0 0.0
        %1099 = vmatpush.msra.mxu0 0.0
        %1100 = vmatpush.msra.mxu0 0.0
        %1101 = vmatpush.msra.mxu0 0.0
        %1102 = vmatpush.msra.mxu0 0.0
        %1103 = vmatpush.msra.mxu0 %v964
        %1104 = vmatmul.f32.gmra.mxu0 %v948
        %v1105 = vpop.f32.mrf.mxu0
        %v1106 = vadd.f32 0.0, %v1105
        %1107 = vdwg.mxu0
        %1108 = vmatpush.msra.mxu0 0.0
        %1109 = vmatpush.msra.mxu0 0.0
        %1110 = vmatpush.msra.mxu0 0.0
        %1111 = vmatpush.msra.mxu0 0.0
        %1112 = vmatpush.msra.mxu0 0.0
        %1113 = vmatpush.msra.mxu0 0.0
        %1114 = vmatpush.msra.mxu0 0.0
        %1115 = vmatpush.msra.mxu0 0.0
        %1116 = vmatpush.msra.mxu0 0.0
        %1117 = vmatpush.msra.mxu0 0.0
        %1118 = vmatpush.msra.mxu0 0.0
        %1119 = vmatpush.msra.mxu0 0.0
        %1120 = vmatpush.msra.mxu0 0.0
        %1121 = vmatpush.msra.mxu0 0.0
        %1122 = vmatpush.msra.mxu0 0.0
        %1123 = vmatpush.msra.mxu0 %v966
        %1124 = vmatmul.f32.gmra.mxu0 %v948
        %v1125 = vpop.f32.mrf.mxu0
        %v1126 = vadd.f32 0.0, %v1125
        %1127 = vdwg.mxu0
        %v1129 = vsel %vm946, %v917, 0
        %v1132 = vsel %vm950, %v909, 0
        %v1135 = vsel %vm950, %v910, 0
        %v1138 = vsel %vm950, %v911, 0
        %v1141 = vsel %vm950, %v912, 0
        %v1144 = vsel %vm950, %v913, 0
        %v1147 = vsel %vm950, %v914, 0
        %v1150 = vsel %vm950, %v915, 0
        %v1153 = vsel %vm950, %v916, 0
        %1155 = vmatpush.msra.mxu0 0.0
        %1156 = vmatpush.msra.mxu0 0.0
        %1157 = vmatpush.msra.mxu0 0.0
        %1158 = vmatpush.msra.mxu0 0.0
        %1159 = vmatpush.msra.mxu0 0.0
        %1160 = vmatpush.msra.mxu0 0.0
        %1161 = vmatpush.msra.mxu0 0.0
        %1162 = vmatpush.msra.mxu0 0.0
        %1163 = vmatpush.msra.mxu0 0.0
        %1164 = vmatpush.msra.mxu0 0.0
        %1165 = vmatpush.msra.mxu0 0.0
        %1166 = vmatpush.msra.mxu0 0.0
        %1167 = vmatpush.msra.mxu0 0.0
        %1168 = vmatpush.msra.mxu0 0.0
        %1169 = vmatpush.msra.mxu0 0.0
        %1170 = vmatpush.msra.mxu0 %v1132
        %1171 = vmatmul.f32.gmra.mxu0 %v1129
        %v1172 = vpop.f32.mrf.mxu0
        %v1173 = vadd.f32 %v986, %v1172
        %1174 = vdwg.mxu0
        %1175 = vmatpush.msra.mxu0 0.0
        %1176 = vmatpush.msra.mxu0 0.0
        %1177 = vmatpush.msra.mxu0 0.0
        %1178 = vmatpush.msra.mxu0 0.0
        %1179 = vmatpush.msra.mxu0 0.0
        %1180 = vmatpush.msra.mxu0 0.0
        %1181 = vmatpush.msra.mxu0 0.0
        %1182 = vmatpush.msra.mxu0 0.0
        %1183 = vmatpush.msra.mxu0 0.0
        %1184 = vmatpush.msra.mxu0 0.0
        %1185 = vmatpush.msra.mxu0 0.0
        %1186 = vmatpush.msra.mxu0 0.0
        %1187 = vmatpush.msra.mxu0 0.0
        %1188 = vmatpush.msra.mxu0 0.0
        %1189 = vmatpush.msra.mxu0 0.0
        %1190 = vmatpush.msra.mxu0 %v1135
        %1191 = vmatmul.f32.gmra.mxu0 %v1129
        %v1192 = vpop.f32.mrf.mxu0
        %v1193 = vadd.f32 %v1006, %v1192
        %1194 = vdwg.mxu0
        %1195 = vmatpush.msra.mxu0 0.0
        %1196 = vmatpush.msra.mxu0 0.0
        %1197 = vmatpush.msra.mxu0 0.0
        %1198 = vmatpush.msra.mxu0 0.0
        %1199 = vmatpush.msra.mxu0 0.0
        %1200 = vmatpush.msra.mxu0 0.0
        %1201 = vmatpush.msra.mxu0 0.0
        %1202 = vmatpush.msra.mxu0 0.0
        %1203 = vmatpush.msra.mxu0 0.0
        %1204 = vmatpush.msra.mxu0 0.0
        %1205 = vmatpush.msra.mxu0 0.0
        %1206 = vmatpush.msra.mxu0 0.0
        %1207 = vmatpush.msra.mxu0 0.0
        %1208 = vmatpush.msra.mxu0 0.0
        %1209 = vmatpush.msra.mxu0 0.0
        %1210 = vmatpush.msra.mxu0 %v1138
        %1211 = vmatmul.f32.gmra.mxu0 %v1129
        %v1212 = vpop.f32.mrf.mxu0
        %v1213 = vadd.f32 %v1026, %v1212
        %1214 = vdwg.mxu0
        %1215 = vmatpush.msra.mxu0 0.0
        %1216 = vmatpush.msra.mxu0 0.0
        %1217 = vmatpush.msra.mxu0 0.0
        %1218 = vmatpush.msra.mxu0 0.0
        %1219 = vmatpush.msra.mxu0 0.0
        %1220 = vmatpush.msra.mxu0 0.0
        %1221 = vmatpush.msra.mxu0 0.0
        %1222 = vmatpush.msra.mxu0 0.0
        %1223 = vmatpush.msra.mxu0 0.0
        %1224 = vmatpush.msra.mxu0 0.0
        %1225 = vmatpush.msra.mxu0 0.0
        %1226 = vmatpush.msra.mxu0 0.0
        %1227 = vmatpush.msra.mxu0 0.0
        %1228 = vmatpush.msra.mxu0 0.0
        %1229 = vmatpush.msra.mxu0 0.0
        %1230 = vmatpush.msra.mxu0 %v1141
        %1231 = vmatmul.f32.gmra.mxu0 %v1129
        %v1232 = vpop.f32.mrf.mxu0
        %v1233 = vadd.f32 %v1046, %v1232
        %1234 = vdwg.mxu0
        %1235 = vmatpush.msra.mxu0 0.0
        %1236 = vmatpush.msra.mxu0 0.0
        %1237 = vmatpush.msra.mxu0 0.0
        %1238 = vmatpush.msra.mxu0 0.0
        %1239 = vmatpush.msra.mxu0 0.0
        %1240 = vmatpush.msra.mxu0 0.0
        %1241 = vmatpush.msra.mxu0 0.0
        %1242 = vmatpush.msra.mxu0 0.0
        %1243 = vmatpush.msra.mxu0 0.0
        %1244 = vmatpush.msra.mxu0 0.0
        %1245 = vmatpush.msra.mxu0 0.0
        %1246 = vmatpush.msra.mxu0 0.0
        %1247 = vmatpush.msra.mxu0 0.0
        %1248 = vmatpush.msra.mxu0 0.0
        %1249 = vmatpush.msra.mxu0 0.0
        %1250 = vmatpush.msra.mxu0 %v1144
        %1251 = vmatmul.f32.gmra.mxu0 %v1129
        %v1252 = vpop.f32.mrf.mxu0
        %v1253 = vadd.f32 %v1066, %v1252
        %1254 = vdwg.mxu0
        %1255 = vmatpush.msra.mxu0 0.0
        %1256 = vmatpush.msra.mxu0 0.0
        %1257 = vmatpush.msra.mxu0 0.0
        %1258 = vmatpush.msra.mxu0 0.0
        %1259 = vmatpush.msra.mxu0 0.0
        %1260 = vmatpush.msra.mxu0 0.0
        %1261 = vmatpush.msra.mxu0 0.0
        %1262 = vmatpush.msra.mxu0 0.0
        %1263 = vmatpush.msra.mxu0 0.0
        %1264 = vmatpush.msra.mxu0 0.0
        %1265 = vmatpush.msra.mxu0 0.0
        %1266 = vmatpush.msra.mxu0 0.0
        %1267 = vmatpush.msra.mxu0 0.0
        %1268 = vmatpush.msra.mxu0 0.0
        %1269 = vmatpush.msra.mxu0 0.0
        %1270 = vmatpush.msra.mxu0 %v1147
        %1271 = vmatmul.f32.gmra.mxu0 %v1129
        %v1272 = vpop.f32.mrf.mxu0
        %v1273 = vadd.f32 %v1086, %v1272
        %1274 = vdwg.mxu0
        %1275 = vmatpush.msra.mxu0 0.0
        %1276 = vmatpush.msra.mxu0 0.0
        %1277 = vmatpush.msra.mxu0 0.0
        %1278 = vmatpush.msra.mxu0 0.0
        %1279 = vmatpush.msra.mxu0 0.0
        %1280 = vmatpush.msra.mxu0 0.0
        %1281 = vmatpush.msra.mxu0 0.0
        %1282 = vmatpush.msra.mxu0 0.0
        %1283 = vmatpush.msra.mxu0 0.0
        %1284 = vmatpush.msra.mxu0 0.0
        %1285 = vmatpush.msra.mxu0 0.0
        %1286 = vmatpush.msra.mxu0 0.0
        %1287 = vmatpush.msra.mxu0 0.0
        %1288 = vmatpush.msra.mxu0 0.0
        %1289 = vmatpush.msra.mxu0 0.0
        %1290 = vmatpush.msra.mxu0 %v1150
        %1291 = vmatmul.f32.gmra.mxu0 %v1129
        %v1292 = vpop.f32.mrf.mxu0
        %v1293 = vadd.f32 %v1106, %v1292
        %1294 = vdwg.mxu0
        %1295 = vmatpush.msra.mxu0 0.0
        %1296 = vmatpush.msra.mxu0 0.0
        %1297 = vmatpush.msra.mxu0 0.0
        %1298 = vmatpush.msra.mxu0 0.0
        %1299 = vmatpush.msra.mxu0 0.0
        %1300 = vmatpush.msra.mxu0 0.0
        %1301 = vmatpush.msra.mxu0 0.0
        %1302 = vmatpush.msra.mxu0 0.0
        %1303 = vmatpush.msra.mxu0 0.0
        %1304 = vmatpush.msra.mxu0 0.0
        %1305 = vmatpush.msra.mxu0 0.0
        %1306 = vmatpush.msra.mxu0 0.0
        %1307 = vmatpush.msra.mxu0 0.0
        %1308 = vmatpush.msra.mxu0 0.0
        %1309 = vmatpush.msra.mxu0 0.0
        %1310 = vmatpush.msra.mxu0 %v1153
        %1311 = vmatmul.f32.gmra.mxu0 %v1129
        %v1312 = vpop.f32.mrf.mxu0
        %v1313 = vadd.f32 %v1126, %v1312
        %1314 = vdwg.mxu0
        %1315 = vrot.lane.b32.xlu0 %v568, 31
        %v1316 = vpop.permute.xlu0 %1315
        %1317 = vrot.lane.b32.xlu0 %v608, 31
        %v1318 = vpop.permute.xlu0 %1317
        %1319 = vrot.lane.b32.xlu0 %v648, 31
        %v1320 = vpop.permute.xlu0 %1319
        %1321 = vrot.lane.b32.xlu0 %v688, 31
        %v1322 = vpop.permute.xlu0 %1321
        %1323 = vrot.lane.b32.xlu0 %v728, 31
        %v1324 = vpop.permute.xlu0 %1323
        %1325 = vrot.lane.b32.xlu0 %v768, 31
        %v1326 = vpop.permute.xlu0 %1325
        %1327 = vrot.lane.b32.xlu0 %v808, 31
        %v1328 = vpop.permute.xlu0 %1327
        %1329 = vrot.lane.b32.xlu0 %v848, 31
        %v1330 = vpop.permute.xlu0 %1329
        %vm1331 = vcmask 252928
        %v1332 = vsel %vm1331, %v1316, %v1318
        %v1333 = vsel %vm1331, %v1318, %v1320
        %v1334 = vsel %vm1331, %v1320, %v1322
        %v1335 = vsel %vm1331, %v1322, %v1324
        %v1336 = vsel %vm1331, %v1324, %v1326
        %v1337 = vsel %vm1331, %v1326, %v1328
        %v1338 = vsel %vm1331, %v1328, %v1330
        %v1347 = vsel %vm1331, 0.0, %v1316
        %s1348 = scalar_lea.vmem %s3, 2
        %v1349 = vld [vmem:[%s1348] ss:$4 sm:$0xff]
        %v1351 = vperm.slane %v1349, 0
        %v1352 = vperm.slane %v1349, 1
        %v1353 = vperm.slane %v1349, 2
        %v1354 = vperm.slane %v1349, 3
        %v1355 = vperm.slane %v1349, 4
        %v1356 = vperm.slane %v1349, 5
        %v1357 = vperm.slane %v1349, 6
        %v1358 = vperm.slane %v1349, 7
        %v1367 = vmul.f32 %v1347, %v1351
        %v1368 = vmul.f32 %v1332, %v1352
        %v1369 = vmul.f32 %v1333, %v1353
        %v1370 = vmul.f32 %v1334, %v1354
        %v1371 = vmul.f32 %v1335, %v1355
        %v1372 = vmul.f32 %v1336, %v1356
        %v1373 = vmul.f32 %v1337, %v1357
        %v1374 = vmul.f32 %v1338, %v1358
        %s1375 = scalar_lea.vmem %s2, 16
        %v1376 = vld [vmem:[%s1375] sm:$0xff]
        %v1378 = vsel %vm946, %v1376, 0
        %v1381 = vsel %vm950, %v1367, 0
        %v1384 = vsel %vm950, %v1368, 0
        %v1387 = vsel %vm950, %v1369, 0
        %v1390 = vsel %vm950, %v1370, 0
        %v1393 = vsel %vm950, %v1371, 0
        %v1396 = vsel %vm950, %v1372, 0
        %v1399 = vsel %vm950, %v1373, 0
        %v1402 = vsel %vm950, %v1374, 0
        %1404 = vmatpush.msra.mxu0 0.0
        %1405 = vmatpush.msra.mxu0 0.0
        %1406 = vmatpush.msra.mxu0 0.0
        %1407 = vmatpush.msra.mxu0 0.0
        %1408 = vmatpush.msra.mxu0 0.0
        %1409 = vmatpush.msra.mxu0 0.0
        %1410 = vmatpush.msra.mxu0 0.0
        %1411 = vmatpush.msra.mxu0 0.0
        %1412 = vmatpush.msra.mxu0 0.0
        %1413 = vmatpush.msra.mxu0 0.0
        %1414 = vmatpush.msra.mxu0 0.0
        %1415 = vmatpush.msra.mxu0 0.0
        %1416 = vmatpush.msra.mxu0 0.0
        %1417 = vmatpush.msra.mxu0 0.0
        %1418 = vmatpush.msra.mxu0 0.0
        %1419 = vmatpush.msra.mxu0 %v1381
        %1420 = vmatmul.f32.gmra.mxu0 %v1378
        %v1421 = vpop.f32.mrf.mxu0
        %v1422 = vadd.f32 0.0, %v1421
        %1423 = vdwg.mxu0
        %1424 = vmatpush.msra.mxu0 0.0
        %1425 = vmatpush.msra.mxu0 0.0
        %1426 = vmatpush.msra.mxu0 0.0
        %1427 = vmatpush.msra.mxu0 0.0
        %1428 = vmatpush.msra.mxu0 0.0
        %1429 = vmatpush.msra.mxu0 0.0
        %1430 = vmatpush.msra.mxu0 0.0
        %1431 = vmatpush.msra.mxu0 0.0
        %1432 = vmatpush.msra.mxu0 0.0
        %1433 = vmatpush.msra.mxu0 0.0
        %1434 = vmatpush.msra.mxu0 0.0
        %1435 = vmatpush.msra.mxu0 0.0
        %1436 = vmatpush.msra.mxu0 0.0
        %1437 = vmatpush.msra.mxu0 0.0
        %1438 = vmatpush.msra.mxu0 0.0
        %1439 = vmatpush.msra.mxu0 %v1384
        %1440 = vmatmul.f32.gmra.mxu0 %v1378
        %v1441 = vpop.f32.mrf.mxu0
        %v1442 = vadd.f32 0.0, %v1441
        %1443 = vdwg.mxu0
        %1444 = vmatpush.msra.mxu0 0.0
        %1445 = vmatpush.msra.mxu0 0.0
        %1446 = vmatpush.msra.mxu0 0.0
        %1447 = vmatpush.msra.mxu0 0.0
        %1448 = vmatpush.msra.mxu0 0.0
        %1449 = vmatpush.msra.mxu0 0.0
        %1450 = vmatpush.msra.mxu0 0.0
        %1451 = vmatpush.msra.mxu0 0.0
        %1452 = vmatpush.msra.mxu0 0.0
        %1453 = vmatpush.msra.mxu0 0.0
        %1454 = vmatpush.msra.mxu0 0.0
        %1455 = vmatpush.msra.mxu0 0.0
        %1456 = vmatpush.msra.mxu0 0.0
        %1457 = vmatpush.msra.mxu0 0.0
        %1458 = vmatpush.msra.mxu0 0.0
        %1459 = vmatpush.msra.mxu0 %v1387
        %1460 = vmatmul.f32.gmra.mxu0 %v1378
        %v1461 = vpop.f32.mrf.mxu0
        %v1462 = vadd.f32 0.0, %v1461
        %1463 = vdwg.mxu0
        %1464 = vmatpush.msra.mxu0 0.0
        %1465 = vmatpush.msra.mxu0 0.0
        %1466 = vmatpush.msra.mxu0 0.0
        %1467 = vmatpush.msra.mxu0 0.0
        %1468 = vmatpush.msra.mxu0 0.0
        %1469 = vmatpush.msra.mxu0 0.0
        %1470 = vmatpush.msra.mxu0 0.0
        %1471 = vmatpush.msra.mxu0 0.0
        %1472 = vmatpush.msra.mxu0 0.0
        %1473 = vmatpush.msra.mxu0 0.0
        %1474 = vmatpush.msra.mxu0 0.0
        %1475 = vmatpush.msra.mxu0 0.0
        %1476 = vmatpush.msra.mxu0 0.0
        %1477 = vmatpush.msra.mxu0 0.0
        %1478 = vmatpush.msra.mxu0 0.0
        %1479 = vmatpush.msra.mxu0 %v1390
        %1480 = vmatmul.f32.gmra.mxu0 %v1378
        %v1481 = vpop.f32.mrf.mxu0
        %v1482 = vadd.f32 0.0, %v1481
        %1483 = vdwg.mxu0
        %1484 = vmatpush.msra.mxu0 0.0
        %1485 = vmatpush.msra.mxu0 0.0
        %1486 = vmatpush.msra.mxu0 0.0
        %1487 = vmatpush.msra.mxu0 0.0
        %1488 = vmatpush.msra.mxu0 0.0
        %1489 = vmatpush.msra.mxu0 0.0
        %1490 = vmatpush.msra.mxu0 0.0
        %1491 = vmatpush.msra.mxu0 0.0
        %1492 = vmatpush.msra.mxu0 0.0
        %1493 = vmatpush.msra.mxu0 0.0
        %1494 = vmatpush.msra.mxu0 0.0
        %1495 = vmatpush.msra.mxu0 0.0
        %1496 = vmatpush.msra.mxu0 0.0
        %1497 = vmatpush.msra.mxu0 0.0
        %1498 = vmatpush.msra.mxu0 0.0
        %1499 = vmatpush.msra.mxu0 %v1393
        %1500 = vmatmul.f32.gmra.mxu0 %v1378
        %v1501 = vpop.f32.mrf.mxu0
        %v1502 = vadd.f32 0.0, %v1501
        %1503 = vdwg.mxu0
        %1504 = vmatpush.msra.mxu0 0.0
        %1505 = vmatpush.msra.mxu0 0.0
        %1506 = vmatpush.msra.mxu0 0.0
        %1507 = vmatpush.msra.mxu0 0.0
        %1508 = vmatpush.msra.mxu0 0.0
        %1509 = vmatpush.msra.mxu0 0.0
        %1510 = vmatpush.msra.mxu0 0.0
        %1511 = vmatpush.msra.mxu0 0.0
        %1512 = vmatpush.msra.mxu0 0.0
        %1513 = vmatpush.msra.mxu0 0.0
        %1514 = vmatpush.msra.mxu0 0.0
        %1515 = vmatpush.msra.mxu0 0.0
        %1516 = vmatpush.msra.mxu0 0.0
        %1517 = vmatpush.msra.mxu0 0.0
        %1518 = vmatpush.msra.mxu0 0.0
        %1519 = vmatpush.msra.mxu0 %v1396
        %1520 = vmatmul.f32.gmra.mxu0 %v1378
        %v1521 = vpop.f32.mrf.mxu0
        %v1522 = vadd.f32 0.0, %v1521
        %1523 = vdwg.mxu0
        %1524 = vmatpush.msra.mxu0 0.0
        %1525 = vmatpush.msra.mxu0 0.0
        %1526 = vmatpush.msra.mxu0 0.0
        %1527 = vmatpush.msra.mxu0 0.0
        %1528 = vmatpush.msra.mxu0 0.0
        %1529 = vmatpush.msra.mxu0 0.0
        %1530 = vmatpush.msra.mxu0 0.0
        %1531 = vmatpush.msra.mxu0 0.0
        %1532 = vmatpush.msra.mxu0 0.0
        %1533 = vmatpush.msra.mxu0 0.0
        %1534 = vmatpush.msra.mxu0 0.0
        %1535 = vmatpush.msra.mxu0 0.0
        %1536 = vmatpush.msra.mxu0 0.0
        %1537 = vmatpush.msra.mxu0 0.0
        %1538 = vmatpush.msra.mxu0 0.0
        %1539 = vmatpush.msra.mxu0 %v1399
        %1540 = vmatmul.f32.gmra.mxu0 %v1378
        %v1541 = vpop.f32.mrf.mxu0
        %v1542 = vadd.f32 0.0, %v1541
        %1543 = vdwg.mxu0
        %1544 = vmatpush.msra.mxu0 0.0
        %1545 = vmatpush.msra.mxu0 0.0
        %1546 = vmatpush.msra.mxu0 0.0
        %1547 = vmatpush.msra.mxu0 0.0
        %1548 = vmatpush.msra.mxu0 0.0
        %1549 = vmatpush.msra.mxu0 0.0
        %1550 = vmatpush.msra.mxu0 0.0
        %1551 = vmatpush.msra.mxu0 0.0
        %1552 = vmatpush.msra.mxu0 0.0
        %1553 = vmatpush.msra.mxu0 0.0
        %1554 = vmatpush.msra.mxu0 0.0
        %1555 = vmatpush.msra.mxu0 0.0
        %1556 = vmatpush.msra.mxu0 0.0
        %1557 = vmatpush.msra.mxu0 0.0
        %1558 = vmatpush.msra.mxu0 0.0
        %1559 = vmatpush.msra.mxu0 %v1402
        %1560 = vmatmul.f32.gmra.mxu0 %v1378
        %v1561 = vpop.f32.mrf.mxu0
        %v1562 = vadd.f32 0.0, %v1561
        %1563 = vdwg.mxu0
        %v1564 = vadd.f32 %v1173, %v1422
        %v1565 = vadd.f32 %v1193, %v1442
        %v1566 = vadd.f32 %v1213, %v1462
        %v1567 = vadd.f32 %v1233, %v1482
        %v1568 = vadd.f32 %v1253, %v1502
        %v1569 = vadd.f32 %v1273, %v1522
        %v1570 = vadd.f32 %v1293, %v1542
        %v1571 = vadd.f32 %v1313, %v1562
        %1572 = vrot.lane.b32.xlu0 %v568, 1
        %v1573 = vpop.permute.xlu0 %1572
        %1574 = vrot.lane.b32.xlu0 %v608, 1
        %v1575 = vpop.permute.xlu0 %1574
        %1576 = vrot.lane.b32.xlu0 %v648, 1
        %v1577 = vpop.permute.xlu0 %1576
        %1578 = vrot.lane.b32.xlu0 %v688, 1
        %v1579 = vpop.permute.xlu0 %1578
        %1580 = vrot.lane.b32.xlu0 %v728, 1
        %v1581 = vpop.permute.xlu0 %1580
        %1582 = vrot.lane.b32.xlu0 %v768, 1
        %v1583 = vpop.permute.xlu0 %1582
        %1584 = vrot.lane.b32.xlu0 %v808, 1
        %v1585 = vpop.permute.xlu0 %1584
        %1586 = vrot.lane.b32.xlu0 %v848, 1
        %v1587 = vpop.permute.xlu0 %1586
        %vm1588 = vcmask 7168
        %v1589 = vsel %vm1588, %v1573, %v1575
        %v1590 = vsel %vm1588, %v1575, %v1577
        %v1591 = vsel %vm1588, %v1577, %v1579
        %v1592 = vsel %vm1588, %v1579, %v1581
        %v1593 = vsel %vm1588, %v1581, %v1583
        %v1594 = vsel %vm1588, %v1583, %v1585
        %v1595 = vsel %vm1588, %v1585, %v1587
        %v1604 = vsel %vm1588, 0.0, %v1573
        %v1605 = vmul.f32 %v1604, %v893
        %v1606 = vmul.f32 %v1589, %v894
        %v1607 = vmul.f32 %v1590, %v895
        %v1608 = vmul.f32 %v1591, %v896
        %v1609 = vmul.f32 %v1592, %v897
        %v1610 = vmul.f32 %v1593, %v898
        %v1611 = vmul.f32 %v1594, %v899
        %v1612 = vmul.f32 %v1595, %v900
        %s1613 = scalar_lea.vmem %s2, 24
        %v1614 = vld [vmem:[%s1613] sm:$0xff]
        %v1616 = vsel %vm946, %v1614, 0
        %v1619 = vsel %vm950, %v1605, 0
        %v1622 = vsel %vm950, %v1606, 0
        %v1625 = vsel %vm950, %v1607, 0
        %v1628 = vsel %vm950, %v1608, 0
        %v1631 = vsel %vm950, %v1609, 0
        %v1634 = vsel %vm950, %v1610, 0
        %v1637 = vsel %vm950, %v1611, 0
        %v1640 = vsel %vm950, %v1612, 0
        %1642 = vmatpush.msra.mxu0 0.0
        %1643 = vmatpush.msra.mxu0 0.0
        %1644 = vmatpush.msra.mxu0 0.0
        %1645 = vmatpush.msra.mxu0 0.0
        %1646 = vmatpush.msra.mxu0 0.0
        %1647 = vmatpush.msra.mxu0 0.0
        %1648 = vmatpush.msra.mxu0 0.0
        %1649 = vmatpush.msra.mxu0 0.0
        %1650 = vmatpush.msra.mxu0 0.0
        %1651 = vmatpush.msra.mxu0 0.0
        %1652 = vmatpush.msra.mxu0 0.0
        %1653 = vmatpush.msra.mxu0 0.0
        %1654 = vmatpush.msra.mxu0 0.0
        %1655 = vmatpush.msra.mxu0 0.0
        %1656 = vmatpush.msra.mxu0 0.0
        %1657 = vmatpush.msra.mxu0 %v1619
        %1658 = vmatmul.f32.gmra.mxu0 %v1616
        %v1659 = vpop.f32.mrf.mxu0
        %v1660 = vadd.f32 0.0, %v1659
        %1661 = vdwg.mxu0
        %1662 = vmatpush.msra.mxu0 0.0
        %1663 = vmatpush.msra.mxu0 0.0
        %1664 = vmatpush.msra.mxu0 0.0
        %1665 = vmatpush.msra.mxu0 0.0
        %1666 = vmatpush.msra.mxu0 0.0
        %1667 = vmatpush.msra.mxu0 0.0
        %1668 = vmatpush.msra.mxu0 0.0
        %1669 = vmatpush.msra.mxu0 0.0
        %1670 = vmatpush.msra.mxu0 0.0
        %1671 = vmatpush.msra.mxu0 0.0
        %1672 = vmatpush.msra.mxu0 0.0
        %1673 = vmatpush.msra.mxu0 0.0
        %1674 = vmatpush.msra.mxu0 0.0
        %1675 = vmatpush.msra.mxu0 0.0
        %1676 = vmatpush.msra.mxu0 0.0
        %1677 = vmatpush.msra.mxu0 %v1622
        %1678 = vmatmul.f32.gmra.mxu0 %v1616
        %v1679 = vpop.f32.mrf.mxu0
        %v1680 = vadd.f32 0.0, %v1679
        %1681 = vdwg.mxu0
        %1682 = vmatpush.msra.mxu0 0.0
        %1683 = vmatpush.msra.mxu0 0.0
        %1684 = vmatpush.msra.mxu0 0.0
        %1685 = vmatpush.msra.mxu0 0.0
        %1686 = vmatpush.msra.mxu0 0.0
        %1687 = vmatpush.msra.mxu0 0.0
        %1688 = vmatpush.msra.mxu0 0.0
        %1689 = vmatpush.msra.mxu0 0.0
        %1690 = vmatpush.msra.mxu0 0.0
        %1691 = vmatpush.msra.mxu0 0.0
        %1692 = vmatpush.msra.mxu0 0.0
        %1693 = vmatpush.msra.mxu0 0.0
        %1694 = vmatpush.msra.mxu0 0.0
        %1695 = vmatpush.msra.mxu0 0.0
        %1696 = vmatpush.msra.mxu0 0.0
        %1697 = vmatpush.msra.mxu0 %v1625
        %1698 = vmatmul.f32.gmra.mxu0 %v1616
        %v1699 = vpop.f32.mrf.mxu0
        %v1700 = vadd.f32 0.0, %v1699
        %1701 = vdwg.mxu0
        %1702 = vmatpush.msra.mxu0 0.0
        %1703 = vmatpush.msra.mxu0 0.0
        %1704 = vmatpush.msra.mxu0 0.0
        %1705 = vmatpush.msra.mxu0 0.0
        %1706 = vmatpush.msra.mxu0 0.0
        %1707 = vmatpush.msra.mxu0 0.0
        %1708 = vmatpush.msra.mxu0 0.0
        %1709 = vmatpush.msra.mxu0 0.0
        %1710 = vmatpush.msra.mxu0 0.0
        %1711 = vmatpush.msra.mxu0 0.0
        %1712 = vmatpush.msra.mxu0 0.0
        %1713 = vmatpush.msra.mxu0 0.0
        %1714 = vmatpush.msra.mxu0 0.0
        %1715 = vmatpush.msra.mxu0 0.0
        %1716 = vmatpush.msra.mxu0 0.0
        %1717 = vmatpush.msra.mxu0 %v1628
        %1718 = vmatmul.f32.gmra.mxu0 %v1616
        %v1719 = vpop.f32.mrf.mxu0
        %v1720 = vadd.f32 0.0, %v1719
        %1721 = vdwg.mxu0
        %1722 = vmatpush.msra.mxu0 0.0
        %1723 = vmatpush.msra.mxu0 0.0
        %1724 = vmatpush.msra.mxu0 0.0
        %1725 = vmatpush.msra.mxu0 0.0
        %1726 = vmatpush.msra.mxu0 0.0
        %1727 = vmatpush.msra.mxu0 0.0
        %1728 = vmatpush.msra.mxu0 0.0
        %1729 = vmatpush.msra.mxu0 0.0
        %1730 = vmatpush.msra.mxu0 0.0
        %1731 = vmatpush.msra.mxu0 0.0
        %1732 = vmatpush.msra.mxu0 0.0
        %1733 = vmatpush.msra.mxu0 0.0
        %1734 = vmatpush.msra.mxu0 0.0
        %1735 = vmatpush.msra.mxu0 0.0
        %1736 = vmatpush.msra.mxu0 0.0
        %1737 = vmatpush.msra.mxu0 %v1631
        %1738 = vmatmul.f32.gmra.mxu0 %v1616
        %v1739 = vpop.f32.mrf.mxu0
        %v1740 = vadd.f32 0.0, %v1739
        %1741 = vdwg.mxu0
        %1742 = vmatpush.msra.mxu0 0.0
        %1743 = vmatpush.msra.mxu0 0.0
        %1744 = vmatpush.msra.mxu0 0.0
        %1745 = vmatpush.msra.mxu0 0.0
        %1746 = vmatpush.msra.mxu0 0.0
        %1747 = vmatpush.msra.mxu0 0.0
        %1748 = vmatpush.msra.mxu0 0.0
        %1749 = vmatpush.msra.mxu0 0.0
        %1750 = vmatpush.msra.mxu0 0.0
        %1751 = vmatpush.msra.mxu0 0.0
        %1752 = vmatpush.msra.mxu0 0.0
        %1753 = vmatpush.msra.mxu0 0.0
        %1754 = vmatpush.msra.mxu0 0.0
        %1755 = vmatpush.msra.mxu0 0.0
        %1756 = vmatpush.msra.mxu0 0.0
        %1757 = vmatpush.msra.mxu0 %v1634
        %1758 = vmatmul.f32.gmra.mxu0 %v1616
        %v1759 = vpop.f32.mrf.mxu0
        %v1760 = vadd.f32 0.0, %v1759
        %1761 = vdwg.mxu0
        %1762 = vmatpush.msra.mxu0 0.0
        %1763 = vmatpush.msra.mxu0 0.0
        %1764 = vmatpush.msra.mxu0 0.0
        %1765 = vmatpush.msra.mxu0 0.0
        %1766 = vmatpush.msra.mxu0 0.0
        %1767 = vmatpush.msra.mxu0 0.0
        %1768 = vmatpush.msra.mxu0 0.0
        %1769 = vmatpush.msra.mxu0 0.0
        %1770 = vmatpush.msra.mxu0 0.0
        %1771 = vmatpush.msra.mxu0 0.0
        %1772 = vmatpush.msra.mxu0 0.0
        %1773 = vmatpush.msra.mxu0 0.0
        %1774 = vmatpush.msra.mxu0 0.0
        %1775 = vmatpush.msra.mxu0 0.0
        %1776 = vmatpush.msra.mxu0 0.0
        %1777 = vmatpush.msra.mxu0 %v1637
        %1778 = vmatmul.f32.gmra.mxu0 %v1616
        %v1779 = vpop.f32.mrf.mxu0
        %v1780 = vadd.f32 0.0, %v1779
        %1781 = vdwg.mxu0
        %1782 = vmatpush.msra.mxu0 0.0
        %1783 = vmatpush.msra.mxu0 0.0
        %1784 = vmatpush.msra.mxu0 0.0
        %1785 = vmatpush.msra.mxu0 0.0
        %1786 = vmatpush.msra.mxu0 0.0
        %1787 = vmatpush.msra.mxu0 0.0
        %1788 = vmatpush.msra.mxu0 0.0
        %1789 = vmatpush.msra.mxu0 0.0
        %1790 = vmatpush.msra.mxu0 0.0
        %1791 = vmatpush.msra.mxu0 0.0
        %1792 = vmatpush.msra.mxu0 0.0
        %1793 = vmatpush.msra.mxu0 0.0
        %1794 = vmatpush.msra.mxu0 0.0
        %1795 = vmatpush.msra.mxu0 0.0
        %1796 = vmatpush.msra.mxu0 0.0
        %1797 = vmatpush.msra.mxu0 %v1640
        %1798 = vmatmul.f32.gmra.mxu0 %v1616
        %v1799 = vpop.f32.mrf.mxu0
        %v1800 = vadd.f32 0.0, %v1799
        %1801 = vdwg.mxu0
        %v1802 = vadd.f32 %v1564, %v1660
        %v1803 = vadd.f32 %v1565, %v1680
        %v1804 = vadd.f32 %v1566, %v1700
        %v1805 = vadd.f32 %v1567, %v1720
        %v1806 = vadd.f32 %v1568, %v1740
        %v1807 = vadd.f32 %v1569, %v1760
        %v1808 = vadd.f32 %v1570, %v1780
        %v1809 = vadd.f32 %v1571, %v1800
        %s1810 = scalar_lea.vmem %s2, 32
        %v1811 = vld [vmem:[%s1810] sm:$0xff]
        %v1813 = vsel %vm946, %v1811, 0
        %v1815 = vsel %vm950, %v568, 0
        %v1817 = vsel %vm950, %v608, 0
        %v1819 = vsel %vm950, %v648, 0
        %v1821 = vsel %vm950, %v688, 0
        %v1823 = vsel %vm950, %v728, 0
        %v1825 = vsel %vm950, %v768, 0
        %v1827 = vsel %vm950, %v808, 0
        %v1829 = vsel %vm950, %v848, 0
        %1831 = vmatpush.msra.mxu0 0.0
        %1832 = vmatpush.msra.mxu0 0.0
        %1833 = vmatpush.msra.mxu0 0.0
        %1834 = vmatpush.msra.mxu0 0.0
        %1835 = vmatpush.msra.mxu0 0.0
        %1836 = vmatpush.msra.mxu0 0.0
        %1837 = vmatpush.msra.mxu0 0.0
        %1838 = vmatpush.msra.mxu0 0.0
        %1839 = vmatpush.msra.mxu0 0.0
        %1840 = vmatpush.msra.mxu0 0.0
        %1841 = vmatpush.msra.mxu0 0.0
        %1842 = vmatpush.msra.mxu0 0.0
        %1843 = vmatpush.msra.mxu0 0.0
        %1844 = vmatpush.msra.mxu0 0.0
        %1845 = vmatpush.msra.mxu0 0.0
        %1846 = vmatpush.msra.mxu0 %v1815
        %1847 = vmatmul.f32.gmra.mxu0 %v1813
        %v1848 = vpop.f32.mrf.mxu0
        %v1849 = vadd.f32 0.0, %v1848
        %1850 = vdwg.mxu0
        %1851 = vmatpush.msra.mxu0 0.0
        %1852 = vmatpush.msra.mxu0 0.0
        %1853 = vmatpush.msra.mxu0 0.0
        %1854 = vmatpush.msra.mxu0 0.0
        %1855 = vmatpush.msra.mxu0 0.0
        %1856 = vmatpush.msra.mxu0 0.0
        %1857 = vmatpush.msra.mxu0 0.0
        %1858 = vmatpush.msra.mxu0 0.0
        %1859 = vmatpush.msra.mxu0 0.0
        %1860 = vmatpush.msra.mxu0 0.0
        %1861 = vmatpush.msra.mxu0 0.0
        %1862 = vmatpush.msra.mxu0 0.0
        %1863 = vmatpush.msra.mxu0 0.0
        %1864 = vmatpush.msra.mxu0 0.0
        %1865 = vmatpush.msra.mxu0 0.0
        %1866 = vmatpush.msra.mxu0 %v1817
        %1867 = vmatmul.f32.gmra.mxu0 %v1813
        %v1868 = vpop.f32.mrf.mxu0
        %v1869 = vadd.f32 0.0, %v1868
        %1870 = vdwg.mxu0
        %1871 = vmatpush.msra.mxu0 0.0
        %1872 = vmatpush.msra.mxu0 0.0
        %1873 = vmatpush.msra.mxu0 0.0
        %1874 = vmatpush.msra.mxu0 0.0
        %1875 = vmatpush.msra.mxu0 0.0
        %1876 = vmatpush.msra.mxu0 0.0
        %1877 = vmatpush.msra.mxu0 0.0
        %1878 = vmatpush.msra.mxu0 0.0
        %1879 = vmatpush.msra.mxu0 0.0
        %1880 = vmatpush.msra.mxu0 0.0
        %1881 = vmatpush.msra.mxu0 0.0
        %1882 = vmatpush.msra.mxu0 0.0
        %1883 = vmatpush.msra.mxu0 0.0
        %1884 = vmatpush.msra.mxu0 0.0
        %1885 = vmatpush.msra.mxu0 0.0
        %1886 = vmatpush.msra.mxu0 %v1819
        %1887 = vmatmul.f32.gmra.mxu0 %v1813
        %v1888 = vpop.f32.mrf.mxu0
        %v1889 = vadd.f32 0.0, %v1888
        %1890 = vdwg.mxu0
        %1891 = vmatpush.msra.mxu0 0.0
        %1892 = vmatpush.msra.mxu0 0.0
        %1893 = vmatpush.msra.mxu0 0.0
        %1894 = vmatpush.msra.mxu0 0.0
        %1895 = vmatpush.msra.mxu0 0.0
        %1896 = vmatpush.msra.mxu0 0.0
        %1897 = vmatpush.msra.mxu0 0.0
        %1898 = vmatpush.msra.mxu0 0.0
        %1899 = vmatpush.msra.mxu0 0.0
        %1900 = vmatpush.msra.mxu0 0.0
        %1901 = vmatpush.msra.mxu0 0.0
        %1902 = vmatpush.msra.mxu0 0.0
        %1903 = vmatpush.msra.mxu0 0.0
        %1904 = vmatpush.msra.mxu0 0.0
        %1905 = vmatpush.msra.mxu0 0.0
        %1906 = vmatpush.msra.mxu0 %v1821
        %1907 = vmatmul.f32.gmra.mxu0 %v1813
        %v1908 = vpop.f32.mrf.mxu0
        %v1909 = vadd.f32 0.0, %v1908
        %1910 = vdwg.mxu0
        %1911 = vmatpush.msra.mxu0 0.0
        %1912 = vmatpush.msra.mxu0 0.0
        %1913 = vmatpush.msra.mxu0 0.0
        %1914 = vmatpush.msra.mxu0 0.0
        %1915 = vmatpush.msra.mxu0 0.0
        %1916 = vmatpush.msra.mxu0 0.0
        %1917 = vmatpush.msra.mxu0 0.0
        %1918 = vmatpush.msra.mxu0 0.0
        %1919 = vmatpush.msra.mxu0 0.0
        %1920 = vmatpush.msra.mxu0 0.0
        %1921 = vmatpush.msra.mxu0 0.0
        %1922 = vmatpush.msra.mxu0 0.0
        %1923 = vmatpush.msra.mxu0 0.0
        %1924 = vmatpush.msra.mxu0 0.0
        %1925 = vmatpush.msra.mxu0 0.0
        %1926 = vmatpush.msra.mxu0 %v1823
        %1927 = vmatmul.f32.gmra.mxu0 %v1813
        %v1928 = vpop.f32.mrf.mxu0
        %v1929 = vadd.f32 0.0, %v1928
        %1930 = vdwg.mxu0
        %1931 = vmatpush.msra.mxu0 0.0
        %1932 = vmatpush.msra.mxu0 0.0
        %1933 = vmatpush.msra.mxu0 0.0
        %1934 = vmatpush.msra.mxu0 0.0
        %1935 = vmatpush.msra.mxu0 0.0
        %1936 = vmatpush.msra.mxu0 0.0
        %1937 = vmatpush.msra.mxu0 0.0
        %1938 = vmatpush.msra.mxu0 0.0
        %1939 = vmatpush.msra.mxu0 0.0
        %1940 = vmatpush.msra.mxu0 0.0
        %1941 = vmatpush.msra.mxu0 0.0
        %1942 = vmatpush.msra.mxu0 0.0
        %1943 = vmatpush.msra.mxu0 0.0
        %1944 = vmatpush.msra.mxu0 0.0
        %1945 = vmatpush.msra.mxu0 0.0
        %1946 = vmatpush.msra.mxu0 %v1825
        %1947 = vmatmul.f32.gmra.mxu0 %v1813
        %v1948 = vpop.f32.mrf.mxu0
        %v1949 = vadd.f32 0.0, %v1948
        %1950 = vdwg.mxu0
        %1951 = vmatpush.msra.mxu0 0.0
        %1952 = vmatpush.msra.mxu0 0.0
        %1953 = vmatpush.msra.mxu0 0.0
        %1954 = vmatpush.msra.mxu0 0.0
        %1955 = vmatpush.msra.mxu0 0.0
        %1956 = vmatpush.msra.mxu0 0.0
        %1957 = vmatpush.msra.mxu0 0.0
        %1958 = vmatpush.msra.mxu0 0.0
        %1959 = vmatpush.msra.mxu0 0.0
        %1960 = vmatpush.msra.mxu0 0.0
        %1961 = vmatpush.msra.mxu0 0.0
        %1962 = vmatpush.msra.mxu0 0.0
        %1963 = vmatpush.msra.mxu0 0.0
        %1964 = vmatpush.msra.mxu0 0.0
        %1965 = vmatpush.msra.mxu0 0.0
        %1966 = vmatpush.msra.mxu0 %v1827
        %1967 = vmatmul.f32.gmra.mxu0 %v1813
        %v1968 = vpop.f32.mrf.mxu0
        %v1969 = vadd.f32 0.0, %v1968
        %1970 = vdwg.mxu0
        %1971 = vmatpush.msra.mxu0 0.0
        %1972 = vmatpush.msra.mxu0 0.0
        %1973 = vmatpush.msra.mxu0 0.0
        %1974 = vmatpush.msra.mxu0 0.0
        %1975 = vmatpush.msra.mxu0 0.0
        %1976 = vmatpush.msra.mxu0 0.0
        %1977 = vmatpush.msra.mxu0 0.0
        %1978 = vmatpush.msra.mxu0 0.0
        %1979 = vmatpush.msra.mxu0 0.0
        %1980 = vmatpush.msra.mxu0 0.0
        %1981 = vmatpush.msra.mxu0 0.0
        %1982 = vmatpush.msra.mxu0 0.0
        %1983 = vmatpush.msra.mxu0 0.0
        %1984 = vmatpush.msra.mxu0 0.0
        %1985 = vmatpush.msra.mxu0 0.0
        %1986 = vmatpush.msra.mxu0 %v1829
        %1987 = vmatmul.f32.gmra.mxu0 %v1813
        %v1988 = vpop.f32.mrf.mxu0
        %v1989 = vadd.f32 0.0, %v1988
        %1990 = vdwg.mxu0
        %v1991 = vadd.f32 %v1802, %v1849
        %v1992 = vadd.f32 %v1803, %v1869
        %v1993 = vadd.f32 %v1804, %v1889
        %v1994 = vadd.f32 %v1805, %v1909
        %v1995 = vadd.f32 %v1806, %v1929
        %v1996 = vadd.f32 %v1807, %v1949
        %v1997 = vadd.f32 %v1808, %v1969
        %v1998 = vadd.f32 %v1809, %v1989
        %1999 = vrot.lane.b32.xlu0 %v568, 127
        %v2000 = vpop.permute.xlu0 %1999
        %2001 = vrot.lane.b32.xlu0 %v608, 127
        %v2002 = vpop.permute.xlu0 %2001
        %2003 = vrot.lane.b32.xlu0 %v648, 127
        %v2004 = vpop.permute.xlu0 %2003
        %2005 = vrot.lane.b32.xlu0 %v688, 127
        %v2006 = vpop.permute.xlu0 %2005
        %2007 = vrot.lane.b32.xlu0 %v728, 127
        %v2008 = vpop.permute.xlu0 %2007
        %2009 = vrot.lane.b32.xlu0 %v768, 127
        %v2010 = vpop.permute.xlu0 %2009
        %2011 = vrot.lane.b32.xlu0 %v808, 127
        %v2012 = vpop.permute.xlu0 %2011
        %2013 = vrot.lane.b32.xlu0 %v848, 127
        %v2014 = vpop.permute.xlu0 %2013
        %vm2015 = vcmask 1039360
        %v2016 = vsel %vm2015, %v2000, %v2002
        %v2017 = vsel %vm2015, %v2002, %v2004
        %v2018 = vsel %vm2015, %v2004, %v2006
        %v2019 = vsel %vm2015, %v2006, %v2008
        %v2020 = vsel %vm2015, %v2008, %v2010
        %v2021 = vsel %vm2015, %v2010, %v2012
        %v2022 = vsel %vm2015, %v2012, %v2014
        %v2031 = vsel %vm2015, %v2014, 0.0
        %v2032 = vmul.f32 %v2016, %v1351
        %v2033 = vmul.f32 %v2017, %v1352
        %v2034 = vmul.f32 %v2018, %v1353
        %v2035 = vmul.f32 %v2019, %v1354
        %v2036 = vmul.f32 %v2020, %v1355
        %v2037 = vmul.f32 %v2021, %v1356
        %v2038 = vmul.f32 %v2022, %v1357
        %v2039 = vmul.f32 %v2031, %v1358
        %s2040 = scalar_lea.vmem %s2, 40
        %v2041 = vld [vmem:[%s2040] sm:$0xff]
        %v2043 = vsel %vm946, %v2041, 0
        %v2046 = vsel %vm950, %v2032, 0
        %v2049 = vsel %vm950, %v2033, 0
        %v2052 = vsel %vm950, %v2034, 0
        %v2055 = vsel %vm950, %v2035, 0
        %v2058 = vsel %vm950, %v2036, 0
        %v2061 = vsel %vm950, %v2037, 0
        %v2064 = vsel %vm950, %v2038, 0
        %v2067 = vsel %vm950, %v2039, 0
        %2069 = vmatpush.msra.mxu0 0.0
        %2070 = vmatpush.msra.mxu0 0.0
        %2071 = vmatpush.msra.mxu0 0.0
        %2072 = vmatpush.msra.mxu0 0.0
        %2073 = vmatpush.msra.mxu0 0.0
        %2074 = vmatpush.msra.mxu0 0.0
        %2075 = vmatpush.msra.mxu0 0.0
        %2076 = vmatpush.msra.mxu0 0.0
        %2077 = vmatpush.msra.mxu0 0.0
        %2078 = vmatpush.msra.mxu0 0.0
        %2079 = vmatpush.msra.mxu0 0.0
        %2080 = vmatpush.msra.mxu0 0.0
        %2081 = vmatpush.msra.mxu0 0.0
        %2082 = vmatpush.msra.mxu0 0.0
        %2083 = vmatpush.msra.mxu0 0.0
        %2084 = vmatpush.msra.mxu0 %v2046
        %2085 = vmatmul.f32.gmra.mxu0 %v2043
        %v2086 = vpop.f32.mrf.mxu0
        %v2087 = vadd.f32 0.0, %v2086
        %2088 = vdwg.mxu0
        %2089 = vmatpush.msra.mxu0 0.0
        %2090 = vmatpush.msra.mxu0 0.0
        %2091 = vmatpush.msra.mxu0 0.0
        %2092 = vmatpush.msra.mxu0 0.0
        %2093 = vmatpush.msra.mxu0 0.0
        %2094 = vmatpush.msra.mxu0 0.0
        %2095 = vmatpush.msra.mxu0 0.0
        %2096 = vmatpush.msra.mxu0 0.0
        %2097 = vmatpush.msra.mxu0 0.0
        %2098 = vmatpush.msra.mxu0 0.0
        %2099 = vmatpush.msra.mxu0 0.0
        %2100 = vmatpush.msra.mxu0 0.0
        %2101 = vmatpush.msra.mxu0 0.0
        %2102 = vmatpush.msra.mxu0 0.0
        %2103 = vmatpush.msra.mxu0 0.0
        %2104 = vmatpush.msra.mxu0 %v2049
        %2105 = vmatmul.f32.gmra.mxu0 %v2043
        %v2106 = vpop.f32.mrf.mxu0
        %v2107 = vadd.f32 0.0, %v2106
        %2108 = vdwg.mxu0
        %2109 = vmatpush.msra.mxu0 0.0
        %2110 = vmatpush.msra.mxu0 0.0
        %2111 = vmatpush.msra.mxu0 0.0
        %2112 = vmatpush.msra.mxu0 0.0
        %2113 = vmatpush.msra.mxu0 0.0
        %2114 = vmatpush.msra.mxu0 0.0
        %2115 = vmatpush.msra.mxu0 0.0
        %2116 = vmatpush.msra.mxu0 0.0
        %2117 = vmatpush.msra.mxu0 0.0
        %2118 = vmatpush.msra.mxu0 0.0
        %2119 = vmatpush.msra.mxu0 0.0
        %2120 = vmatpush.msra.mxu0 0.0
        %2121 = vmatpush.msra.mxu0 0.0
        %2122 = vmatpush.msra.mxu0 0.0
        %2123 = vmatpush.msra.mxu0 0.0
        %2124 = vmatpush.msra.mxu0 %v2052
        %2125 = vmatmul.f32.gmra.mxu0 %v2043
        %v2126 = vpop.f32.mrf.mxu0
        %v2127 = vadd.f32 0.0, %v2126
        %2128 = vdwg.mxu0
        %2129 = vmatpush.msra.mxu0 0.0
        %2130 = vmatpush.msra.mxu0 0.0
        %2131 = vmatpush.msra.mxu0 0.0
        %2132 = vmatpush.msra.mxu0 0.0
        %2133 = vmatpush.msra.mxu0 0.0
        %2134 = vmatpush.msra.mxu0 0.0
        %2135 = vmatpush.msra.mxu0 0.0
        %2136 = vmatpush.msra.mxu0 0.0
        %2137 = vmatpush.msra.mxu0 0.0
        %2138 = vmatpush.msra.mxu0 0.0
        %2139 = vmatpush.msra.mxu0 0.0
        %2140 = vmatpush.msra.mxu0 0.0
        %2141 = vmatpush.msra.mxu0 0.0
        %2142 = vmatpush.msra.mxu0 0.0
        %2143 = vmatpush.msra.mxu0 0.0
        %2144 = vmatpush.msra.mxu0 %v2055
        %2145 = vmatmul.f32.gmra.mxu0 %v2043
        %v2146 = vpop.f32.mrf.mxu0
        %v2147 = vadd.f32 0.0, %v2146
        %2148 = vdwg.mxu0
        %2149 = vmatpush.msra.mxu0 0.0
        %2150 = vmatpush.msra.mxu0 0.0
        %2151 = vmatpush.msra.mxu0 0.0
        %2152 = vmatpush.msra.mxu0 0.0
        %2153 = vmatpush.msra.mxu0 0.0
        %2154 = vmatpush.msra.mxu0 0.0
        %2155 = vmatpush.msra.mxu0 0.0
        %2156 = vmatpush.msra.mxu0 0.0
        %2157 = vmatpush.msra.mxu0 0.0
        %2158 = vmatpush.msra.mxu0 0.0
        %2159 = vmatpush.msra.mxu0 0.0
        %2160 = vmatpush.msra.mxu0 0.0
        %2161 = vmatpush.msra.mxu0 0.0
        %2162 = vmatpush.msra.mxu0 0.0
        %2163 = vmatpush.msra.mxu0 0.0
        %2164 = vmatpush.msra.mxu0 %v2058
        %2165 = vmatmul.f32.gmra.mxu0 %v2043
        %v2166 = vpop.f32.mrf.mxu0
        %v2167 = vadd.f32 0.0, %v2166
        %2168 = vdwg.mxu0
        %2169 = vmatpush.msra.mxu0 0.0
        %2170 = vmatpush.msra.mxu0 0.0
        %2171 = vmatpush.msra.mxu0 0.0
        %2172 = vmatpush.msra.mxu0 0.0
        %2173 = vmatpush.msra.mxu0 0.0
        %2174 = vmatpush.msra.mxu0 0.0
        %2175 = vmatpush.msra.mxu0 0.0
        %2176 = vmatpush.msra.mxu0 0.0
        %2177 = vmatpush.msra.mxu0 0.0
        %2178 = vmatpush.msra.mxu0 0.0
        %2179 = vmatpush.msra.mxu0 0.0
        %2180 = vmatpush.msra.mxu0 0.0
        %2181 = vmatpush.msra.mxu0 0.0
        %2182 = vmatpush.msra.mxu0 0.0
        %2183 = vmatpush.msra.mxu0 0.0
        %2184 = vmatpush.msra.mxu0 %v2061
        %2185 = vmatmul.f32.gmra.mxu0 %v2043
        %v2186 = vpop.f32.mrf.mxu0
        %v2187 = vadd.f32 0.0, %v2186
        %2188 = vdwg.mxu0
        %2189 = vmatpush.msra.mxu0 0.0
        %2190 = vmatpush.msra.mxu0 0.0
        %2191 = vmatpush.msra.mxu0 0.0
        %2192 = vmatpush.msra.mxu0 0.0
        %2193 = vmatpush.msra.mxu0 0.0
        %2194 = vmatpush.msra.mxu0 0.0
        %2195 = vmatpush.msra.mxu0 0.0
        %2196 = vmatpush.msra.mxu0 0.0
        %2197 = vmatpush.msra.mxu0 0.0
        %2198 = vmatpush.msra.mxu0 0.0
        %2199 = vmatpush.msra.mxu0 0.0
        %2200 = vmatpush.msra.mxu0 0.0
        %2201 = vmatpush.msra.mxu0 0.0
        %2202 = vmatpush.msra.mxu0 0.0
        %2203 = vmatpush.msra.mxu0 0.0
        %2204 = vmatpush.msra.mxu0 %v2064
        %2205 = vmatmul.f32.gmra.mxu0 %v2043
        %v2206 = vpop.f32.mrf.mxu0
        %v2207 = vadd.f32 0.0, %v2206
        %2208 = vdwg.mxu0
        %2209 = vmatpush.msra.mxu0 0.0
        %2210 = vmatpush.msra.mxu0 0.0
        %2211 = vmatpush.msra.mxu0 0.0
        %2212 = vmatpush.msra.mxu0 0.0
        %2213 = vmatpush.msra.mxu0 0.0
        %2214 = vmatpush.msra.mxu0 0.0
        %2215 = vmatpush.msra.mxu0 0.0
        %2216 = vmatpush.msra.mxu0 0.0
        %2217 = vmatpush.msra.mxu0 0.0
        %2218 = vmatpush.msra.mxu0 0.0
        %2219 = vmatpush.msra.mxu0 0.0
        %2220 = vmatpush.msra.mxu0 0.0
        %2221 = vmatpush.msra.mxu0 0.0
        %2222 = vmatpush.msra.mxu0 0.0
        %2223 = vmatpush.msra.mxu0 0.0
        %2224 = vmatpush.msra.mxu0 %v2067
        %2225 = vmatmul.f32.gmra.mxu0 %v2043
        %v2226 = vpop.f32.mrf.mxu0
        %v2227 = vadd.f32 0.0, %v2226
        %2228 = vdwg.mxu0
        %v2229 = vadd.f32 %v1991, %v2087
        %v2230 = vadd.f32 %v1992, %v2107
        %v2231 = vadd.f32 %v1993, %v2127
        %v2232 = vadd.f32 %v1994, %v2147
        %v2233 = vadd.f32 %v1995, %v2167
        %v2234 = vadd.f32 %v1996, %v2187
        %v2235 = vadd.f32 %v1997, %v2207
        %v2236 = vadd.f32 %v1998, %v2227
        %2237 = vrot.lane.b32.xlu0 %v568, 97
        %v2238 = vpop.permute.xlu0 %2237
        %2239 = vrot.lane.b32.xlu0 %v608, 97
        %v2240 = vpop.permute.xlu0 %2239
        %2241 = vrot.lane.b32.xlu0 %v648, 97
        %v2242 = vpop.permute.xlu0 %2241
        %2243 = vrot.lane.b32.xlu0 %v688, 97
        %v2244 = vpop.permute.xlu0 %2243
        %2245 = vrot.lane.b32.xlu0 %v728, 97
        %v2246 = vpop.permute.xlu0 %2245
        %2247 = vrot.lane.b32.xlu0 %v768, 97
        %v2248 = vpop.permute.xlu0 %2247
        %2249 = vrot.lane.b32.xlu0 %v808, 97
        %v2250 = vpop.permute.xlu0 %2249
        %2251 = vrot.lane.b32.xlu0 %v848, 97
        %v2252 = vpop.permute.xlu0 %2251
        %vm2253 = vcmask 793600
        %v2254 = vsel %vm2253, %v2238, %v2240
        %v2255 = vsel %vm2253, %v2240, %v2242
        %v2256 = vsel %vm2253, %v2242, %v2244
        %v2257 = vsel %vm2253, %v2244, %v2246
        %v2258 = vsel %vm2253, %v2246, %v2248
        %v2259 = vsel %vm2253, %v2248, %v2250
        %v2260 = vsel %vm2253, %v2250, %v2252
        %v2269 = vsel %vm2253, %v2252, 0.0
        %v2270 = vmul.f32 %v2254, %v893
        %v2271 = vmul.f32 %v2255, %v894
        %v2272 = vmul.f32 %v2256, %v895
        %v2273 = vmul.f32 %v2257, %v896
        %v2274 = vmul.f32 %v2258, %v897
        %v2275 = vmul.f32 %v2259, %v898
        %v2276 = vmul.f32 %v2260, %v899
        %v2277 = vmul.f32 %v2269, %v900
        %s2278 = scalar_lea.vmem %s2, 48
        %v2279 = vld [vmem:[%s2278] sm:$0xff]
        %v2281 = vsel %vm946, %v2279, 0
        %v2284 = vsel %vm950, %v2270, 0
        %v2287 = vsel %vm950, %v2271, 0
        %v2290 = vsel %vm950, %v2272, 0
        %v2293 = vsel %vm950, %v2273, 0
        %v2296 = vsel %vm950, %v2274, 0
        %v2299 = vsel %vm950, %v2275, 0
        %v2302 = vsel %vm950, %v2276, 0
        %v2305 = vsel %vm950, %v2277, 0
        %2307 = vmatpush.msra.mxu0 0.0
        %2308 = vmatpush.msra.mxu0 0.0
        %2309 = vmatpush.msra.mxu0 0.0
        %2310 = vmatpush.msra.mxu0 0.0
        %2311 = vmatpush.msra.mxu0 0.0
        %2312 = vmatpush.msra.mxu0 0.0
        %2313 = vmatpush.msra.mxu0 0.0
        %2314 = vmatpush.msra.mxu0 0.0
        %2315 = vmatpush.msra.mxu0 0.0
        %2316 = vmatpush.msra.mxu0 0.0
        %2317 = vmatpush.msra.mxu0 0.0
        %2318 = vmatpush.msra.mxu0 0.0
        %2319 = vmatpush.msra.mxu0 0.0
        %2320 = vmatpush.msra.mxu0 0.0
        %2321 = vmatpush.msra.mxu0 0.0
        %2322 = vmatpush.msra.mxu0 %v2284
        %2323 = vmatmul.f32.gmra.mxu0 %v2281
        %v2324 = vpop.f32.mrf.mxu0
        %v2325 = vadd.f32 0.0, %v2324
        %2326 = vdwg.mxu0
        %2327 = vmatpush.msra.mxu0 0.0
        %2328 = vmatpush.msra.mxu0 0.0
        %2329 = vmatpush.msra.mxu0 0.0
        %2330 = vmatpush.msra.mxu0 0.0
        %2331 = vmatpush.msra.mxu0 0.0
        %2332 = vmatpush.msra.mxu0 0.0
        %2333 = vmatpush.msra.mxu0 0.0
        %2334 = vmatpush.msra.mxu0 0.0
        %2335 = vmatpush.msra.mxu0 0.0
        %2336 = vmatpush.msra.mxu0 0.0
        %2337 = vmatpush.msra.mxu0 0.0
        %2338 = vmatpush.msra.mxu0 0.0
        %2339 = vmatpush.msra.mxu0 0.0
        %2340 = vmatpush.msra.mxu0 0.0
        %2341 = vmatpush.msra.mxu0 0.0
        %2342 = vmatpush.msra.mxu0 %v2287
        %2343 = vmatmul.f32.gmra.mxu0 %v2281
        %v2344 = vpop.f32.mrf.mxu0
        %v2345 = vadd.f32 0.0, %v2344
        %2346 = vdwg.mxu0
        %2347 = vmatpush.msra.mxu0 0.0
        %2348 = vmatpush.msra.mxu0 0.0
        %2349 = vmatpush.msra.mxu0 0.0
        %2350 = vmatpush.msra.mxu0 0.0
        %2351 = vmatpush.msra.mxu0 0.0
        %2352 = vmatpush.msra.mxu0 0.0
        %2353 = vmatpush.msra.mxu0 0.0
        %2354 = vmatpush.msra.mxu0 0.0
        %2355 = vmatpush.msra.mxu0 0.0
        %2356 = vmatpush.msra.mxu0 0.0
        %2357 = vmatpush.msra.mxu0 0.0
        %2358 = vmatpush.msra.mxu0 0.0
        %2359 = vmatpush.msra.mxu0 0.0
        %2360 = vmatpush.msra.mxu0 0.0
        %2361 = vmatpush.msra.mxu0 0.0
        %2362 = vmatpush.msra.mxu0 %v2290
        %2363 = vmatmul.f32.gmra.mxu0 %v2281
        %v2364 = vpop.f32.mrf.mxu0
        %v2365 = vadd.f32 0.0, %v2364
        %2366 = vdwg.mxu0
        %2367 = vmatpush.msra.mxu0 0.0
        %2368 = vmatpush.msra.mxu0 0.0
        %2369 = vmatpush.msra.mxu0 0.0
        %2370 = vmatpush.msra.mxu0 0.0
        %2371 = vmatpush.msra.mxu0 0.0
        %2372 = vmatpush.msra.mxu0 0.0
        %2373 = vmatpush.msra.mxu0 0.0
        %2374 = vmatpush.msra.mxu0 0.0
        %2375 = vmatpush.msra.mxu0 0.0
        %2376 = vmatpush.msra.mxu0 0.0
        %2377 = vmatpush.msra.mxu0 0.0
        %2378 = vmatpush.msra.mxu0 0.0
        %2379 = vmatpush.msra.mxu0 0.0
        %2380 = vmatpush.msra.mxu0 0.0
        %2381 = vmatpush.msra.mxu0 0.0
        %2382 = vmatpush.msra.mxu0 %v2293
        %2383 = vmatmul.f32.gmra.mxu0 %v2281
        %v2384 = vpop.f32.mrf.mxu0
        %v2385 = vadd.f32 0.0, %v2384
        %2386 = vdwg.mxu0
        %2387 = vmatpush.msra.mxu0 0.0
        %2388 = vmatpush.msra.mxu0 0.0
        %2389 = vmatpush.msra.mxu0 0.0
        %2390 = vmatpush.msra.mxu0 0.0
        %2391 = vmatpush.msra.mxu0 0.0
        %2392 = vmatpush.msra.mxu0 0.0
        %2393 = vmatpush.msra.mxu0 0.0
        %2394 = vmatpush.msra.mxu0 0.0
        %2395 = vmatpush.msra.mxu0 0.0
        %2396 = vmatpush.msra.mxu0 0.0
        %2397 = vmatpush.msra.mxu0 0.0
        %2398 = vmatpush.msra.mxu0 0.0
        %2399 = vmatpush.msra.mxu0 0.0
        %2400 = vmatpush.msra.mxu0 0.0
        %2401 = vmatpush.msra.mxu0 0.0
        %2402 = vmatpush.msra.mxu0 %v2296
        %2403 = vmatmul.f32.gmra.mxu0 %v2281
        %v2404 = vpop.f32.mrf.mxu0
        %v2405 = vadd.f32 0.0, %v2404
        %2406 = vdwg.mxu0
        %2407 = vmatpush.msra.mxu0 0.0
        %2408 = vmatpush.msra.mxu0 0.0
        %2409 = vmatpush.msra.mxu0 0.0
        %2410 = vmatpush.msra.mxu0 0.0
        %2411 = vmatpush.msra.mxu0 0.0
        %2412 = vmatpush.msra.mxu0 0.0
        %2413 = vmatpush.msra.mxu0 0.0
        %2414 = vmatpush.msra.mxu0 0.0
        %2415 = vmatpush.msra.mxu0 0.0
        %2416 = vmatpush.msra.mxu0 0.0
        %2417 = vmatpush.msra.mxu0 0.0
        %2418 = vmatpush.msra.mxu0 0.0
        %2419 = vmatpush.msra.mxu0 0.0
        %2420 = vmatpush.msra.mxu0 0.0
        %2421 = vmatpush.msra.mxu0 0.0
        %2422 = vmatpush.msra.mxu0 %v2299
        %2423 = vmatmul.f32.gmra.mxu0 %v2281
        %v2424 = vpop.f32.mrf.mxu0
        %v2425 = vadd.f32 0.0, %v2424
        %2426 = vdwg.mxu0
        %2427 = vmatpush.msra.mxu0 0.0
        %2428 = vmatpush.msra.mxu0 0.0
        %2429 = vmatpush.msra.mxu0 0.0
        %2430 = vmatpush.msra.mxu0 0.0
        %2431 = vmatpush.msra.mxu0 0.0
        %2432 = vmatpush.msra.mxu0 0.0
        %2433 = vmatpush.msra.mxu0 0.0
        %2434 = vmatpush.msra.mxu0 0.0
        %2435 = vmatpush.msra.mxu0 0.0
        %2436 = vmatpush.msra.mxu0 0.0
        %2437 = vmatpush.msra.mxu0 0.0
        %2438 = vmatpush.msra.mxu0 0.0
        %2439 = vmatpush.msra.mxu0 0.0
        %2440 = vmatpush.msra.mxu0 0.0
        %2441 = vmatpush.msra.mxu0 0.0
        %2442 = vmatpush.msra.mxu0 %v2302
        %2443 = vmatmul.f32.gmra.mxu0 %v2281
        %v2444 = vpop.f32.mrf.mxu0
        %v2445 = vadd.f32 0.0, %v2444
        %2446 = vdwg.mxu0
        %2447 = vmatpush.msra.mxu0 0.0
        %2448 = vmatpush.msra.mxu0 0.0
        %2449 = vmatpush.msra.mxu0 0.0
        %2450 = vmatpush.msra.mxu0 0.0
        %2451 = vmatpush.msra.mxu0 0.0
        %2452 = vmatpush.msra.mxu0 0.0
        %2453 = vmatpush.msra.mxu0 0.0
        %2454 = vmatpush.msra.mxu0 0.0
        %2455 = vmatpush.msra.mxu0 0.0
        %2456 = vmatpush.msra.mxu0 0.0
        %2457 = vmatpush.msra.mxu0 0.0
        %2458 = vmatpush.msra.mxu0 0.0
        %2459 = vmatpush.msra.mxu0 0.0
        %2460 = vmatpush.msra.mxu0 0.0
        %2461 = vmatpush.msra.mxu0 0.0
        %2462 = vmatpush.msra.mxu0 %v2305
        %2463 = vmatmul.f32.gmra.mxu0 %v2281
        %v2464 = vpop.f32.mrf.mxu0
        %v2465 = vadd.f32 0.0, %v2464
        %2466 = vdwg.mxu0
        %v2467 = vadd.f32 %v2229, %v2325
        %v2468 = vadd.f32 %v2230, %v2345
        %v2469 = vadd.f32 %v2231, %v2365
        %v2470 = vadd.f32 %v2232, %v2385
        %v2471 = vadd.f32 %v2233, %v2405
        %v2472 = vadd.f32 %v2234, %v2425
        %v2473 = vadd.f32 %v2235, %v2445
        %v2474 = vadd.f32 %v2236, %v2465
        %2475 = vrot.lane.b32.xlu0 %v568, 96
        %v2476 = vpop.permute.xlu0 %2475
        %2477 = vrot.lane.b32.xlu0 %v608, 96
        %v2478 = vpop.permute.xlu0 %2477
        %2479 = vrot.lane.b32.xlu0 %v648, 96
        %v2480 = vpop.permute.xlu0 %2479
        %2481 = vrot.lane.b32.xlu0 %v688, 96
        %v2482 = vpop.permute.xlu0 %2481
        %2483 = vrot.lane.b32.xlu0 %v728, 96
        %v2484 = vpop.permute.xlu0 %2483
        %2485 = vrot.lane.b32.xlu0 %v768, 96
        %v2486 = vpop.permute.xlu0 %2485
        %2487 = vrot.lane.b32.xlu0 %v808, 96
        %v2488 = vpop.permute.xlu0 %2487
        %2489 = vrot.lane.b32.xlu0 %v848, 96
        %v2490 = vpop.permute.xlu0 %2489
        %vm2491 = vcmask 785408
        %v2492 = vsel %vm2491, %v2476, %v2478
        %v2493 = vsel %vm2491, %v2478, %v2480
        %v2494 = vsel %vm2491, %v2480, %v2482
        %v2495 = vsel %vm2491, %v2482, %v2484
        %v2496 = vsel %vm2491, %v2484, %v2486
        %v2497 = vsel %vm2491, %v2486, %v2488
        %v2498 = vsel %vm2491, %v2488, %v2490
        %v2500 = vsel %vm2491, %v2490, 0.0
        %s2501 = scalar_lea.vmem %s2, 56
        %v2502 = vld [vmem:[%s2501] sm:$0xff]
        %v2504 = vsel %vm946, %v2502, 0
        %v2506 = vsel %vm950, %v2492, 0
        %v2508 = vsel %vm950, %v2493, 0
        %v2510 = vsel %vm950, %v2494, 0
        %v2512 = vsel %vm950, %v2495, 0
        %v2514 = vsel %vm950, %v2496, 0
        %v2516 = vsel %vm950, %v2497, 0
        %v2518 = vsel %vm950, %v2498, 0
        %v2521 = vsel %vm950, %v2500, 0
        %2523 = vmatpush.msra.mxu0 0.0
        %2524 = vmatpush.msra.mxu0 0.0
        %2525 = vmatpush.msra.mxu0 0.0
        %2526 = vmatpush.msra.mxu0 0.0
        %2527 = vmatpush.msra.mxu0 0.0
        %2528 = vmatpush.msra.mxu0 0.0
        %2529 = vmatpush.msra.mxu0 0.0
        %2530 = vmatpush.msra.mxu0 0.0
        %2531 = vmatpush.msra.mxu0 0.0
        %2532 = vmatpush.msra.mxu0 0.0
        %2533 = vmatpush.msra.mxu0 0.0
        %2534 = vmatpush.msra.mxu0 0.0
        %2535 = vmatpush.msra.mxu0 0.0
        %2536 = vmatpush.msra.mxu0 0.0
        %2537 = vmatpush.msra.mxu0 0.0
        %2538 = vmatpush.msra.mxu0 %v2506
        %2539 = vmatmul.f32.gmra.mxu0 %v2504
        %v2540 = vpop.f32.mrf.mxu0
        %v2541 = vadd.f32 0.0, %v2540
        %2542 = vdwg.mxu0
        %2543 = vmatpush.msra.mxu0 0.0
        %2544 = vmatpush.msra.mxu0 0.0
        %2545 = vmatpush.msra.mxu0 0.0
        %2546 = vmatpush.msra.mxu0 0.0
        %2547 = vmatpush.msra.mxu0 0.0
        %2548 = vmatpush.msra.mxu0 0.0
        %2549 = vmatpush.msra.mxu0 0.0
        %2550 = vmatpush.msra.mxu0 0.0
        %2551 = vmatpush.msra.mxu0 0.0
        %2552 = vmatpush.msra.mxu0 0.0
        %2553 = vmatpush.msra.mxu0 0.0
        %2554 = vmatpush.msra.mxu0 0.0
        %2555 = vmatpush.msra.mxu0 0.0
        %2556 = vmatpush.msra.mxu0 0.0
        %2557 = vmatpush.msra.mxu0 0.0
        %2558 = vmatpush.msra.mxu0 %v2508
        %2559 = vmatmul.f32.gmra.mxu0 %v2504
        %v2560 = vpop.f32.mrf.mxu0
        %v2561 = vadd.f32 0.0, %v2560
        %2562 = vdwg.mxu0
        %2563 = vmatpush.msra.mxu0 0.0
        %2564 = vmatpush.msra.mxu0 0.0
        %2565 = vmatpush.msra.mxu0 0.0
        %2566 = vmatpush.msra.mxu0 0.0
        %2567 = vmatpush.msra.mxu0 0.0
        %2568 = vmatpush.msra.mxu0 0.0
        %2569 = vmatpush.msra.mxu0 0.0
        %2570 = vmatpush.msra.mxu0 0.0
        %2571 = vmatpush.msra.mxu0 0.0
        %2572 = vmatpush.msra.mxu0 0.0
        %2573 = vmatpush.msra.mxu0 0.0
        %2574 = vmatpush.msra.mxu0 0.0
        %2575 = vmatpush.msra.mxu0 0.0
        %2576 = vmatpush.msra.mxu0 0.0
        %2577 = vmatpush.msra.mxu0 0.0
        %2578 = vmatpush.msra.mxu0 %v2510
        %2579 = vmatmul.f32.gmra.mxu0 %v2504
        %v2580 = vpop.f32.mrf.mxu0
        %v2581 = vadd.f32 0.0, %v2580
        %2582 = vdwg.mxu0
        %2583 = vmatpush.msra.mxu0 0.0
        %2584 = vmatpush.msra.mxu0 0.0
        %2585 = vmatpush.msra.mxu0 0.0
        %2586 = vmatpush.msra.mxu0 0.0
        %2587 = vmatpush.msra.mxu0 0.0
        %2588 = vmatpush.msra.mxu0 0.0
        %2589 = vmatpush.msra.mxu0 0.0
        %2590 = vmatpush.msra.mxu0 0.0
        %2591 = vmatpush.msra.mxu0 0.0
        %2592 = vmatpush.msra.mxu0 0.0
        %2593 = vmatpush.msra.mxu0 0.0
        %2594 = vmatpush.msra.mxu0 0.0
        %2595 = vmatpush.msra.mxu0 0.0
        %2596 = vmatpush.msra.mxu0 0.0
        %2597 = vmatpush.msra.mxu0 0.0
        %2598 = vmatpush.msra.mxu0 %v2512
        %2599 = vmatmul.f32.gmra.mxu0 %v2504
        %v2600 = vpop.f32.mrf.mxu0
        %v2601 = vadd.f32 0.0, %v2600
        %2602 = vdwg.mxu0
        %2603 = vmatpush.msra.mxu0 0.0
        %2604 = vmatpush.msra.mxu0 0.0
        %2605 = vmatpush.msra.mxu0 0.0
        %2606 = vmatpush.msra.mxu0 0.0
        %2607 = vmatpush.msra.mxu0 0.0
        %2608 = vmatpush.msra.mxu0 0.0
        %2609 = vmatpush.msra.mxu0 0.0
        %2610 = vmatpush.msra.mxu0 0.0
        %2611 = vmatpush.msra.mxu0 0.0
        %2612 = vmatpush.msra.mxu0 0.0
        %2613 = vmatpush.msra.mxu0 0.0
        %2614 = vmatpush.msra.mxu0 0.0
        %2615 = vmatpush.msra.mxu0 0.0
        %2616 = vmatpush.msra.mxu0 0.0
        %2617 = vmatpush.msra.mxu0 0.0
        %2618 = vmatpush.msra.mxu0 %v2514
        %2619 = vmatmul.f32.gmra.mxu0 %v2504
        %v2620 = vpop.f32.mrf.mxu0
        %v2621 = vadd.f32 0.0, %v2620
        %2622 = vdwg.mxu0
        %2623 = vmatpush.msra.mxu0 0.0
        %2624 = vmatpush.msra.mxu0 0.0
        %2625 = vmatpush.msra.mxu0 0.0
        %2626 = vmatpush.msra.mxu0 0.0
        %2627 = vmatpush.msra.mxu0 0.0
        %2628 = vmatpush.msra.mxu0 0.0
        %2629 = vmatpush.msra.mxu0 0.0
        %2630 = vmatpush.msra.mxu0 0.0
        %2631 = vmatpush.msra.mxu0 0.0
        %2632 = vmatpush.msra.mxu0 0.0
        %2633 = vmatpush.msra.mxu0 0.0
        %2634 = vmatpush.msra.mxu0 0.0
        %2635 = vmatpush.msra.mxu0 0.0
        %2636 = vmatpush.msra.mxu0 0.0
        %2637 = vmatpush.msra.mxu0 0.0
        %2638 = vmatpush.msra.mxu0 %v2516
        %2639 = vmatmul.f32.gmra.mxu0 %v2504
        %v2640 = vpop.f32.mrf.mxu0
        %v2641 = vadd.f32 0.0, %v2640
        %2642 = vdwg.mxu0
        %2643 = vmatpush.msra.mxu0 0.0
        %2644 = vmatpush.msra.mxu0 0.0
        %2645 = vmatpush.msra.mxu0 0.0
        %2646 = vmatpush.msra.mxu0 0.0
        %2647 = vmatpush.msra.mxu0 0.0
        %2648 = vmatpush.msra.mxu0 0.0
        %2649 = vmatpush.msra.mxu0 0.0
        %2650 = vmatpush.msra.mxu0 0.0
        %2651 = vmatpush.msra.mxu0 0.0
        %2652 = vmatpush.msra.mxu0 0.0
        %2653 = vmatpush.msra.mxu0 0.0
        %2654 = vmatpush.msra.mxu0 0.0
        %2655 = vmatpush.msra.mxu0 0.0
        %2656 = vmatpush.msra.mxu0 0.0
        %2657 = vmatpush.msra.mxu0 0.0
        %2658 = vmatpush.msra.mxu0 %v2518
        %2659 = vmatmul.f32.gmra.mxu0 %v2504
        %v2660 = vpop.f32.mrf.mxu0
        %v2661 = vadd.f32 0.0, %v2660
        %2662 = vdwg.mxu0
        %2663 = vmatpush.msra.mxu0 0.0
        %2664 = vmatpush.msra.mxu0 0.0
        %2665 = vmatpush.msra.mxu0 0.0
        %2666 = vmatpush.msra.mxu0 0.0
        %2667 = vmatpush.msra.mxu0 0.0
        %2668 = vmatpush.msra.mxu0 0.0
        %2669 = vmatpush.msra.mxu0 0.0
        %2670 = vmatpush.msra.mxu0 0.0
        %2671 = vmatpush.msra.mxu0 0.0
        %2672 = vmatpush.msra.mxu0 0.0
        %2673 = vmatpush.msra.mxu0 0.0
        %2674 = vmatpush.msra.mxu0 0.0
        %2675 = vmatpush.msra.mxu0 0.0
        %2676 = vmatpush.msra.mxu0 0.0
        %2677 = vmatpush.msra.mxu0 0.0
        %2678 = vmatpush.msra.mxu0 %v2521
        %2679 = vmatmul.f32.gmra.mxu0 %v2504
        %v2680 = vpop.f32.mrf.mxu0
        %v2681 = vadd.f32 0.0, %v2680
        %2682 = vdwg.mxu0
        %v2683 = vadd.f32 %v2467, %v2541
        %v2684 = vadd.f32 %v2468, %v2561
        %v2685 = vadd.f32 %v2469, %v2581
        %v2686 = vadd.f32 %v2470, %v2601
        %v2687 = vadd.f32 %v2471, %v2621
        %v2688 = vadd.f32 %v2472, %v2641
        %v2689 = vadd.f32 %v2473, %v2661
        %v2690 = vadd.f32 %v2474, %v2681
        %2691 = vrot.lane.b32.xlu0 %v568, 95
        %v2692 = vpop.permute.xlu0 %2691
        %2693 = vrot.lane.b32.xlu0 %v608, 95
        %v2694 = vpop.permute.xlu0 %2693
        %2695 = vrot.lane.b32.xlu0 %v648, 95
        %v2696 = vpop.permute.xlu0 %2695
        %2697 = vrot.lane.b32.xlu0 %v688, 95
        %v2698 = vpop.permute.xlu0 %2697
        %2699 = vrot.lane.b32.xlu0 %v728, 95
        %v2700 = vpop.permute.xlu0 %2699
        %2701 = vrot.lane.b32.xlu0 %v768, 95
        %v2702 = vpop.permute.xlu0 %2701
        %2703 = vrot.lane.b32.xlu0 %v808, 95
        %v2704 = vpop.permute.xlu0 %2703
        %2705 = vrot.lane.b32.xlu0 %v848, 95
        %v2706 = vpop.permute.xlu0 %2705
        %vm2707 = vcmask 777216
        %v2708 = vsel %vm2707, %v2692, %v2694
        %v2709 = vsel %vm2707, %v2694, %v2696
        %v2710 = vsel %vm2707, %v2696, %v2698
        %v2711 = vsel %vm2707, %v2698, %v2700
        %v2712 = vsel %vm2707, %v2700, %v2702
        %v2713 = vsel %vm2707, %v2702, %v2704
        %v2714 = vsel %vm2707, %v2704, %v2706
        %v2723 = vsel %vm2707, %v2706, 0.0
        %v2724 = vmul.f32 %v2708, %v1351
        %v2725 = vmul.f32 %v2709, %v1352
        %v2726 = vmul.f32 %v2710, %v1353
        %v2727 = vmul.f32 %v2711, %v1354
        %v2728 = vmul.f32 %v2712, %v1355
        %v2729 = vmul.f32 %v2713, %v1356
        %v2730 = vmul.f32 %v2714, %v1357
        %v2731 = vmul.f32 %v2723, %v1358
        %s2732 = scalar_lea.vmem %s2, 64
        %v2733 = vld [vmem:[%s2732] sm:$0xff]
        %v2735 = vsel %vm946, %v2733, 0
        %v2738 = vsel %vm950, %v2724, 0
        %v2741 = vsel %vm950, %v2725, 0
        %v2744 = vsel %vm950, %v2726, 0
        %v2747 = vsel %vm950, %v2727, 0
        %v2750 = vsel %vm950, %v2728, 0
        %v2753 = vsel %vm950, %v2729, 0
        %v2756 = vsel %vm950, %v2730, 0
        %v2759 = vsel %vm950, %v2731, 0
        %2761 = vmatpush.msra.mxu0 0.0
        %2762 = vmatpush.msra.mxu0 0.0
        %2763 = vmatpush.msra.mxu0 0.0
        %2764 = vmatpush.msra.mxu0 0.0
        %2765 = vmatpush.msra.mxu0 0.0
        %2766 = vmatpush.msra.mxu0 0.0
        %2767 = vmatpush.msra.mxu0 0.0
        %2768 = vmatpush.msra.mxu0 0.0
        %2769 = vmatpush.msra.mxu0 0.0
        %2770 = vmatpush.msra.mxu0 0.0
        %2771 = vmatpush.msra.mxu0 0.0
        %2772 = vmatpush.msra.mxu0 0.0
        %2773 = vmatpush.msra.mxu0 0.0
        %2774 = vmatpush.msra.mxu0 0.0
        %2775 = vmatpush.msra.mxu0 0.0
        %2776 = vmatpush.msra.mxu0 %v2738
        %2777 = vmatmul.f32.gmra.mxu0 %v2735
        %v2778 = vpop.f32.mrf.mxu0
        %v2779 = vadd.f32 0.0, %v2778
        %2780 = vdwg.mxu0
        %2781 = vmatpush.msra.mxu0 0.0
        %2782 = vmatpush.msra.mxu0 0.0
        %2783 = vmatpush.msra.mxu0 0.0
        %2784 = vmatpush.msra.mxu0 0.0
        %2785 = vmatpush.msra.mxu0 0.0
        %2786 = vmatpush.msra.mxu0 0.0
        %2787 = vmatpush.msra.mxu0 0.0
        %2788 = vmatpush.msra.mxu0 0.0
        %2789 = vmatpush.msra.mxu0 0.0
        %2790 = vmatpush.msra.mxu0 0.0
        %2791 = vmatpush.msra.mxu0 0.0
        %2792 = vmatpush.msra.mxu0 0.0
        %2793 = vmatpush.msra.mxu0 0.0
        %2794 = vmatpush.msra.mxu0 0.0
        %2795 = vmatpush.msra.mxu0 0.0
        %2796 = vmatpush.msra.mxu0 %v2741
        %2797 = vmatmul.f32.gmra.mxu0 %v2735
        %v2798 = vpop.f32.mrf.mxu0
        %v2799 = vadd.f32 0.0, %v2798
        %2800 = vdwg.mxu0
        %2801 = vmatpush.msra.mxu0 0.0
        %2802 = vmatpush.msra.mxu0 0.0
        %2803 = vmatpush.msra.mxu0 0.0
        %2804 = vmatpush.msra.mxu0 0.0
        %2805 = vmatpush.msra.mxu0 0.0
        %2806 = vmatpush.msra.mxu0 0.0
        %2807 = vmatpush.msra.mxu0 0.0
        %2808 = vmatpush.msra.mxu0 0.0
        %2809 = vmatpush.msra.mxu0 0.0
        %2810 = vmatpush.msra.mxu0 0.0
        %2811 = vmatpush.msra.mxu0 0.0
        %2812 = vmatpush.msra.mxu0 0.0
        %2813 = vmatpush.msra.mxu0 0.0
        %2814 = vmatpush.msra.mxu0 0.0
        %2815 = vmatpush.msra.mxu0 0.0
        %2816 = vmatpush.msra.mxu0 %v2744
        %2817 = vmatmul.f32.gmra.mxu0 %v2735
        %v2818 = vpop.f32.mrf.mxu0
        %v2819 = vadd.f32 0.0, %v2818
        %2820 = vdwg.mxu0
        %2821 = vmatpush.msra.mxu0 0.0
        %2822 = vmatpush.msra.mxu0 0.0
        %2823 = vmatpush.msra.mxu0 0.0
        %2824 = vmatpush.msra.mxu0 0.0
        %2825 = vmatpush.msra.mxu0 0.0
        %2826 = vmatpush.msra.mxu0 0.0
        %2827 = vmatpush.msra.mxu0 0.0
        %2828 = vmatpush.msra.mxu0 0.0
        %2829 = vmatpush.msra.mxu0 0.0
        %2830 = vmatpush.msra.mxu0 0.0
        %2831 = vmatpush.msra.mxu0 0.0
        %2832 = vmatpush.msra.mxu0 0.0
        %2833 = vmatpush.msra.mxu0 0.0
        %2834 = vmatpush.msra.mxu0 0.0
        %2835 = vmatpush.msra.mxu0 0.0
        %2836 = vmatpush.msra.mxu0 %v2747
        %2837 = vmatmul.f32.gmra.mxu0 %v2735
        %v2838 = vpop.f32.mrf.mxu0
        %v2839 = vadd.f32 0.0, %v2838
        %2840 = vdwg.mxu0
        %2841 = vmatpush.msra.mxu0 0.0
        %2842 = vmatpush.msra.mxu0 0.0
        %2843 = vmatpush.msra.mxu0 0.0
        %2844 = vmatpush.msra.mxu0 0.0
        %2845 = vmatpush.msra.mxu0 0.0
        %2846 = vmatpush.msra.mxu0 0.0
        %2847 = vmatpush.msra.mxu0 0.0
        %2848 = vmatpush.msra.mxu0 0.0
        %2849 = vmatpush.msra.mxu0 0.0
        %2850 = vmatpush.msra.mxu0 0.0
        %2851 = vmatpush.msra.mxu0 0.0
        %2852 = vmatpush.msra.mxu0 0.0
        %2853 = vmatpush.msra.mxu0 0.0
        %2854 = vmatpush.msra.mxu0 0.0
        %2855 = vmatpush.msra.mxu0 0.0
        %2856 = vmatpush.msra.mxu0 %v2750
        %2857 = vmatmul.f32.gmra.mxu0 %v2735
        %v2858 = vpop.f32.mrf.mxu0
        %v2859 = vadd.f32 0.0, %v2858
        %2860 = vdwg.mxu0
        %2861 = vmatpush.msra.mxu0 0.0
        %2862 = vmatpush.msra.mxu0 0.0
        %2863 = vmatpush.msra.mxu0 0.0
        %2864 = vmatpush.msra.mxu0 0.0
        %2865 = vmatpush.msra.mxu0 0.0
        %2866 = vmatpush.msra.mxu0 0.0
        %2867 = vmatpush.msra.mxu0 0.0
        %2868 = vmatpush.msra.mxu0 0.0
        %2869 = vmatpush.msra.mxu0 0.0
        %2870 = vmatpush.msra.mxu0 0.0
        %2871 = vmatpush.msra.mxu0 0.0
        %2872 = vmatpush.msra.mxu0 0.0
        %2873 = vmatpush.msra.mxu0 0.0
        %2874 = vmatpush.msra.mxu0 0.0
        %2875 = vmatpush.msra.mxu0 0.0
        %2876 = vmatpush.msra.mxu0 %v2753
        %2877 = vmatmul.f32.gmra.mxu0 %v2735
        %v2878 = vpop.f32.mrf.mxu0
        %v2879 = vadd.f32 0.0, %v2878
        %2880 = vdwg.mxu0
        %2881 = vmatpush.msra.mxu0 0.0
        %2882 = vmatpush.msra.mxu0 0.0
        %2883 = vmatpush.msra.mxu0 0.0
        %2884 = vmatpush.msra.mxu0 0.0
        %2885 = vmatpush.msra.mxu0 0.0
        %2886 = vmatpush.msra.mxu0 0.0
        %2887 = vmatpush.msra.mxu0 0.0
        %2888 = vmatpush.msra.mxu0 0.0
        %2889 = vmatpush.msra.mxu0 0.0
        %2890 = vmatpush.msra.mxu0 0.0
        %2891 = vmatpush.msra.mxu0 0.0
        %2892 = vmatpush.msra.mxu0 0.0
        %2893 = vmatpush.msra.mxu0 0.0
        %2894 = vmatpush.msra.mxu0 0.0
        %2895 = vmatpush.msra.mxu0 0.0
        %2896 = vmatpush.msra.mxu0 %v2756
        %2897 = vmatmul.f32.gmra.mxu0 %v2735
        %v2898 = vpop.f32.mrf.mxu0
        %v2899 = vadd.f32 0.0, %v2898
        %2900 = vdwg.mxu0
        %2901 = vmatpush.msra.mxu0 0.0
        %2902 = vmatpush.msra.mxu0 0.0
        %2903 = vmatpush.msra.mxu0 0.0
        %2904 = vmatpush.msra.mxu0 0.0
        %2905 = vmatpush.msra.mxu0 0.0
        %2906 = vmatpush.msra.mxu0 0.0
        %2907 = vmatpush.msra.mxu0 0.0
        %2908 = vmatpush.msra.mxu0 0.0
        %2909 = vmatpush.msra.mxu0 0.0
        %2910 = vmatpush.msra.mxu0 0.0
        %2911 = vmatpush.msra.mxu0 0.0
        %2912 = vmatpush.msra.mxu0 0.0
        %2913 = vmatpush.msra.mxu0 0.0
        %2914 = vmatpush.msra.mxu0 0.0
        %2915 = vmatpush.msra.mxu0 0.0
        %2916 = vmatpush.msra.mxu0 %v2759
        %2917 = vmatmul.f32.gmra.mxu0 %v2735
        %v2918 = vpop.f32.mrf.mxu0
        %v2919 = vadd.f32 0.0, %v2918
        %2920 = vdwg.mxu0
        %v2921 = vadd.f32 %v2683, %v2779
        %v2922 = vadd.f32 %v2684, %v2799
        %v2923 = vadd.f32 %v2685, %v2819
        %v2924 = vadd.f32 %v2686, %v2839
        %v2925 = vadd.f32 %v2687, %v2859
        %v2926 = vadd.f32 %v2688, %v2879
        %v2927 = vadd.f32 %v2689, %v2899
        %v2928 = vadd.f32 %v2690, %v2919
        %v2929 = vadd.f32 %v2921, %v2922
        %v2930 = vadd.f32 %v2929, %v2923
        %v2931 = vadd.f32 %v2930, %v2924
        %v2932 = vadd.f32 %v2931, %v2925
        %v2933 = vadd.f32 %v2932, %v2926
        %v2934 = vadd.f32 %v2933, %v2927
        %v2935 = vadd.f32 %v2934, %v2928
        %2936 = vadd.xlane.f32.xlu0 %v2935
        %v2937 = vpop.xlane.xlu0 %2936
        %v2938 = vrcp.pop 1024.0
        %v2939 = vmul.f32 1024.0, %v2938
        %v2940 = vsub.f32 1.0, %v2939
        %v2941 = vmul.f32 %v2938, %v2940
        %v2942 = vadd.f32 %v2938, %v2941
        %vm2943 = vweird.f32 %v2938
        %v2944 = vsel %vm2943, %v2938, %v2942
        %v2945 = vmul.f32 %v2937, %v2944
        %v2946 = vsub.f32 %v2921, %v2945
        %v2947 = vsub.f32 %v2922, %v2945
        %v2948 = vsub.f32 %v2923, %v2945
        %v2949 = vsub.f32 %v2924, %v2945
        %v2950 = vsub.f32 %v2925, %v2945
        %v2951 = vsub.f32 %v2926, %v2945
        %v2952 = vsub.f32 %v2927, %v2945
        %v2953 = vsub.f32 %v2928, %v2945
        %v2954 = vmul.f32 %v2946, %v2946
        %v2955 = vmul.f32 %v2947, %v2947
        %v2956 = vmul.f32 %v2948, %v2948
        %v2957 = vmul.f32 %v2949, %v2949
        %v2958 = vmul.f32 %v2950, %v2950
        %v2959 = vmul.f32 %v2951, %v2951
        %v2960 = vmul.f32 %v2952, %v2952
        %v2961 = vmul.f32 %v2953, %v2953
        %v2962 = vadd.f32 %v2954, %v2955
        %v2963 = vadd.f32 %v2962, %v2956
        %v2964 = vadd.f32 %v2963, %v2957
        %v2965 = vadd.f32 %v2964, %v2958
        %v2966 = vadd.f32 %v2965, %v2959
        %v2967 = vadd.f32 %v2966, %v2960
        %v2968 = vadd.f32 %v2967, %v2961
        %2969 = vadd.xlane.f32.xlu0 %v2968
        %v2970 = vpop.xlane.xlu0 %2969
        %v2971 = vmul.f32 %v2970, %v2944
        %v2972 = vadd.f32 %v2971, 1e-05
        %v2973 = vrsqrt.pop %v2972
        %v2974 = vmul.f32 %v2973, %v2972
        %v2975 = vmul.f32 %v2974, %v2973
        %v2976 = vmul.f32 0.5, %v2975
        %v2977 = vsub.f32 1.5, %v2976
        %v2978 = vmul.f32 %v2973, %v2977
        %vm2979 = vweird.f32 %v2972
        %vm2980 = vweird.f32 %v2973
        %vm2981 = vmor %vm2979, %vm2980
        %v2982 = vsel %vm2981, %v2973, %v2978
        %v2983 = vld [vmem:[%s4] sm:$0xff]
        %v2984 = vmul.f32 %v2982, %v2983
        %2986 = vset.pattern.permute.xlu0 0
        %2987 = vperm.xlu0 %2986, %v2984
        %v2988 = vpop.permute.xlu0 %2987
        %v2990 = vmul.f32 %v2946, %v2988
        %v2991 = vmul.f32 %v2947, %v2988
        %v2992 = vmul.f32 %v2948, %v2988
        %v2993 = vmul.f32 %v2949, %v2988
        %v2994 = vmul.f32 %v2950, %v2988
        %v2995 = vmul.f32 %v2951, %v2988
        %v2996 = vmul.f32 %v2952, %v2988
        %v2997 = vmul.f32 %v2953, %v2988
        %v2998 = vld [vmem:[%s5] sm:$0xff]
        %3000 = vset.pattern.permute.xlu0 0
        %3001 = vperm.xlu0 %3000, %v2998
        %v3002 = vpop.permute.xlu0 %3001
        %v3004 = vadd.f32 %v2990, %v3002
        %v3005 = vadd.f32 %v2991, %v3002
        %v3006 = vadd.f32 %v2992, %v3002
        %v3007 = vadd.f32 %v2993, %v3002
        %v3008 = vadd.f32 %v2994, %v3002
        %v3009 = vadd.f32 %v2995, %v3002
        %v3010 = vadd.f32 %v2996, %v3002
        %v3011 = vadd.f32 %v2997, %v3002
        %vm3012 = vcmp.ge.f32.partialorder %v3004, 0.0
        %vm3013 = vcmp.ge.f32.partialorder %v3005, 0.0
        %vm3014 = vcmp.ge.f32.partialorder %v3006, 0.0
        %vm3015 = vcmp.ge.f32.partialorder %v3007, 0.0
        %vm3016 = vcmp.ge.f32.partialorder %v3008, 0.0
        %vm3017 = vcmp.ge.f32.partialorder %v3009, 0.0
        %vm3018 = vcmp.ge.f32.partialorder %v3010, 0.0
        %vm3019 = vcmp.ge.f32.partialorder %v3011, 0.0
        %v3020 = vmul.f32 %v3004, 0.01
        %v3021 = vmul.f32 %v3005, 0.01
        %v3022 = vmul.f32 %v3006, 0.01
        %v3023 = vmul.f32 %v3007, 0.01
        %v3024 = vmul.f32 %v3008, 0.01
        %v3025 = vmul.f32 %v3009, 0.01
        %v3026 = vmul.f32 %v3010, 0.01
        %v3027 = vmul.f32 %v3011, 0.01
        %v3028 = vsel %vm3012, %v3004, %v3020
        %v3029 = vsel %vm3013, %v3005, %v3021
        %v3030 = vsel %vm3014, %v3006, %v3022
        %v3031 = vsel %vm3015, %v3007, %v3023
        %v3032 = vsel %vm3016, %v3008, %v3024
        %v3033 = vsel %vm3017, %v3009, %v3025
        %v3034 = vsel %vm3018, %v3010, %v3026
        %v3035 = vsel %vm3019, %v3011, %v3027
        %3036 = vst [vmem:[%s261] sm:$0xff] %v3028
        %3037 = vst [vmem:[%s261 + $0x8] sm:$0xff] %v3029
        %3038 = vst [vmem:[%s261 + $0x10] sm:$0xff] %v3030
        %3039 = vst [vmem:[%s261 + $0x18] sm:$0xff] %v3031
        %3040 = vst [vmem:[%s261 + $0x20] sm:$0xff] %v3032
        %3041 = vst [vmem:[%s261 + $0x28] sm:$0xff] %v3033
        %3042 = vst [vmem:[%s261 + $0x30] sm:$0xff] %v3034
        %3043 = vst [vmem:[%s261 + $0x38] sm:$0xff] %v3035
        %s3044 = sand.u32 %s160, 1
        %s3045 = scalar_lea.sflag [#allocation4], %s3044
        %s3046 = sand.u32 %s160, 1
        %s3047 = smul.addr %s3046, 64
        %s3048 = scalar_lea.vmem [#allocation5], %s3047
        // Predicated region
        $region49: #{tpu_custom_call.1} parent=43 // pred_check
          %p3049 = pneg %p170
        $region50: #{tpu_custom_call.1} parent=43 // pred_check_branch
          %3051 = sbr.rel (%p3049) target = $region52
        $region51: #{tpu_custom_call.1} parent=43 // pred_region
          %3053 = vsyncadd %s3045, 0
          %s3054 = smul.addr %s21, 8
          %s3055 = smul.addr %s3054, 8
          %s3056 = scalar_lea.hbm %s6, %s3055
          %s3058 = sshll.u32 %s3048, 4
          %s3059 = int_to_ptr.vmem [resolvable:$true] %s3058
          %s3060 = sshll.u32 %s3056, 4
          %s3061 = int_to_ptr.hbm [resolvable:$true] %s3060
          %3063 = dma.vmem_to_hbm [thread:$0]  %s3059, 1024, %s3061, %s3045
        $region52: #{tpu_custom_call.1} parent=43 // pred_fallthru
          _
      $region44: #{tpu_custom_call.1} parent=5 // pred_fallthru
        _
      %p3064 = scmp.le.s32.totalorder 2, %s16
      // Predicated region
      $region53: #{tpu_custom_call.1} parent=5 // pred_check
        %p3065 = pneg %p3064
      $region54: #{tpu_custom_call.1} parent=5 // pred_check_branch
        %3067 = sbr.rel (%p3065) target = $region56
      $region55: #{tpu_custom_call.1} parent=5 // pred_region
        %s3068 = ssub.s32 %s16, 2
        // Predicated region
        $region57: #{tpu_custom_call.1} parent=55 // pred_check
          %p3069 = pneg %p176
        $region58: #{tpu_custom_call.1} parent=55 // pred_check_branch
          %3071 = sbr.rel (%p3069) target = $region60
        $region59: #{tpu_custom_call.1} parent=55 // pred_region
          %s3072 = sand.u32 %s161, 1
          %s3073 = scalar_lea.sflag [#allocation4], %s3072
          %s3074 = sand.u32 %s161, 1
          %s3075 = smul.addr %s3074, 64
          %s3076 = scalar_lea.vmem [#allocation5], %s3075
          %3078 = dma.done %s3073, 1024
        $region60: #{tpu_custom_call.1} parent=55 // pred_fallthru
          _
      $region56: #{tpu_custom_call.1} parent=5 // pred_fallthru
        _
    $region6: #{tpu_custom_call.1} parent=1 // loop_footer
      %s20 = sadd.s32 1, %s16
    $region7: #{tpu_custom_call.1} parent=1 // loop_footer_branch
      %15 = sbr.rel target = $region3
    $region8: #{tpu_custom_call.1} parent=1 // loop_exit
      _
    %3079 = vsyncpa [#allocation3], 1
    %s3080 = scalar_lea.sflag [#allocation3], 1
    %3081 = vsyncpa %s3080, 1
    %3082 = vsyncpa [#allocation4], 1
    %s3083 = scalar_lea.sflag [#allocation4], 1
    %3084 = vsyncpa %s3083, 1

</llo_original>
